<compile_context>
chip_gen: v7x
topology: tpu7x:2x2x1
jax: 0.10.0
libtpu: 0.0.40
codegen_flags: <defaults>
</compile_context>

<pallas_src>
import jax
import jax.numpy as jnp
from jax import lax
from jax.experimental import pallas as pl
from jax.experimental.pallas import tpu as pltpu


# (Cin, Cout, maxpool, bn+relu) -- mirrors ColorfulCNN.__init__
LAYER_CFG = [
    (1, 4, False, True),     # conv0
    (4, 8, False, True),     # conv1
    (8, 16, False, True),    # conv2
    (16, 32, False, True),   # conv3
    (32, 16, True, True),    # conv4 (conv -> pool -> BN -> ReLU)
    (16, 8, True, True),     # conv5 (conv -> pool -> BN -> ReLU)
    (8, 2, False, False),    # out   (conv only)
]

H0 = W0 = 16                       # input spatial size
MAX_C = 32                         # widest layer
PAD = W0 + 1                       # covers the largest flat tap offset |dy*W+dx|
MAX_HW = H0 * W0                   # 256
SCRATCH_COLS = MAX_HW + 2 * PAD    # 290
MAX_K = 9 * MAX_C                  # 288


def _fused_kernel(*refs):
    n_layers = len(LAYER_CFG)
    x_ref = refs[0]
    layer_refs = refs[1:1 + 3 * n_layers]          # (w, scale, shift) x 7
    s1_ref = refs[1 + 3 * n_layers]                # (256, 64) pool-select 16x16 -> 8x8
    s2_ref = refs[2 + 3 * n_layers]                # (64, 16)  pool-select  8x8 -> 4x4
    o_ref = refs[3 + 3 * n_layers]                 # (1, 2, 16) output block
    act_ref = refs[4 + 3 * n_layers]               # (MAX_C, SCRATCH_COLS) padded act
    col_ref = refs[5 + 3 * n_layers]               # (MAX_K, MAX_HW)       im2col

    # Zero the padded-activation scratch ONCE per grid step.  All later writes
    # stay inside [PAD, PAD + HW), so the halo columns remain zero; the only
    # re-zeroing needed is the small stale tail after each max-pool shrink.
    act_ref[...] = jnp.zeros((MAX_C, SCRATCH_COLS), jnp.float32)

    # horizontal-tap validity masks, cached per distinct W (trace-time)
    mask_cache = {}

    def get_masks(w, hw):
        if w not in mask_cache:
            p_idx = lax.broadcasted_iota(jnp.int32, (1, hw), 1)
            x_idx = jnp.bitwise_and(p_idx, w - 1)   # p % W (W is a power of 2)
            mask_cache[w] = (x_idx >= 1, x_idx <= w - 2)
        return mask_cache[w]

    a = x_ref[0]                                    # (1, 256) f32
    H, W = H0, W0
    just_pooled = False                             # trace-time flag

    for li, (cin, cout, pool, bn_relu) in enumerate(LAYER_CFG):
        w_ref, sc_ref, sh_ref = layer_refs[3 * li:3 * li + 3]
        HW = H * W

        # After a pool the spatial extent shrank: the previous (larger)
        # activation left stale data just past the new extent inside the
        # dy=+1 tap window -> zero exactly that tail for the rows we read.
        if just_pooled:
            tail = W + 1
            act_ref[0:cin, PAD + HW:PAD + HW + tail] = jnp.zeros(
                (cin, tail), jnp.float32)
            just_pooled = False

        # --- place the activation in the zero-padded flat scratch ------------
        act_ref[0:cin, PAD:PAD + HW] = a
        mask_l, mask_r = get_masks(W, HW)           # dx = -1 / dx = +1 validity

        # --- im2col: 9 shifted static-slice reads of the padded scratch ------
        # vertical out-of-bounds taps land in the zero pad automatically; only
        # the horizontal wrap (dx = +-1) needs masking.
        t = 0
        for dy in (-1, 0, 1):
            for dx in (-1, 0, 1):
                off = dy * W + dx
                piece = act_ref[0:cin, PAD + off:PAD + off + HW]
                if dx == -1:
                    piece = jnp.where(mask_l, piece, 0.0)
                elif dx == 1:
                    piece = jnp.where(mask_r, piece, 0.0)
                col_ref[t * cin:(t + 1) * cin, 0:HW] = piece
                t += 1

        # --- one lane-dense MXU matmul: (Cout, 9*Cin) @ (9*Cin, H*W) ----------
        y = jnp.dot(w_ref[...], col_ref[0:9 * cin, 0:HW],
                    preferred_element_type=jnp.float32)         # (cout, HW)

        # --- fused 2x2 max-pool + stride-2 subsample --------------------------
        if pool:
            # conv output goes back into the (still zero-padded) scratch so the
            # three window neighbours are plain shifted slices; the 0/1
            # selection matmul then picks the even-(y,x) anchors directly.
            act_ref[0:cout, PAD:PAD + HW] = y
            w01 = act_ref[0:cout, PAD + 1:PAD + 1 + HW]
            w10 = act_ref[0:cout, PAD + W:PAD + W + HW]
            w11 = act_ref[0:cout, PAD + W + 1:PAD + W + 1 + HW]
            window = jnp.maximum(jnp.maximum(y, w01), jnp.maximum(w10, w11))
            s_sel = s1_ref[...] if HW == MAX_HW else s2_ref[...]
            y = jnp.dot(window, s_sel,
                        preferred_element_type=jnp.float32)     # (cout, HW/4)
            H, W = H // 2, W // 2
            HW = H * W
            just_pooled = True

        # --- (folded bias +) BN affine + ReLU ---------------------------------
        y = y * sc_ref[...] + sh_ref[...]
        if bn_relu:
            y = jnp.maximum(y, 0.0)
        a = y

    o_ref[0] = a.astype(o_ref.dtype)


def _make_pool_select(h, w):
    """0/1 matrix S with S[p, q] = 1 iff flat position p is the top-left
    (even-y, even-x) anchor of pooled output q."""
    ho, wo = h // 2, w // 2
    p = jnp.arange(h * w)[:, None]
    q = jnp.arange(ho * wo)[None, :]
    anchor = (2 * (q // wo)) * w + 2 * (q % wo)
    return (p == anchor).astype(jnp.float32)


def prepare_params(raw_params):
    """Fold conv bias + eval-mode BatchNorm into (w_flat, scale, shift).

    w_flat[co, t*cin + ci] with t = ky*3 + kx matches the kernel im2col order.
    """
    # TODO(synk): training-mode BatchNorm (batch statistics / running-stat
    # updates) is not implemented; BN is folded in inference mode.
    eps = 1e-5
    prepped = []
    for (w, b, gamma, beta, mean, var), (cin, cout, _pool, bn) in zip(raw_params, LAYER_CFG):
        w_flat = jnp.transpose(w, (0, 2, 3, 1)).reshape(cout, 9 * cin)
        if bn:
            scale = gamma / jnp.sqrt(var + eps)
            shift = beta + (b - mean) * scale   # bias folded through the pool (exact)
        else:
            scale = jnp.ones((cout,), jnp.float32)
            shift = b
        prepped.append((w_flat, scale.reshape(cout, 1), shift.reshape(cout, 1)))
    return prepped


def colorful_cnn_forward(x_nchw, prepped):
    n = x_nchw.shape[0]
    x_flat = x_nchw.reshape(n, 1, H0 * W0).astype(jnp.float32)  # NCHW -> (N, C, H*W)
    s1 = _make_pool_select(16, 16)
    s2 = _make_pool_select(8, 8)

    inputs = [x_flat]
    in_specs = [pl.BlockSpec((1, 1, H0 * W0), lambda i: (i, 0, 0))]
    for (w_flat, scale, shift) in prepped:
        for arr in (w_flat, scale, shift):
            inputs.append(arr)
            in_specs.append(pl.BlockSpec(arr.shape, lambda i: (0, 0)))
    for s in (s1, s2):
        inputs.append(s)
        in_specs.append(pl.BlockSpec(s.shape, lambda i: (0, 0)))

    out = pl.pallas_call(
        _fused_kernel,
        out_shape=jax.ShapeDtypeStruct((n, 2, 16), jnp.float32),
        grid=(n,),
        in_specs=in_specs,
        out_specs=pl.BlockSpec((1, 2, 16), lambda i: (i, 0, 0)),
        scratch_shapes=[
            pltpu.VMEM((MAX_C, SCRATCH_COLS), jnp.float32),   # padded activations
            pltpu.VMEM((MAX_K, MAX_HW), jnp.float32),         # im2col
        ],
        compiler_params=pltpu.CompilerParams(
            dimension_semantics=("parallel",)),               # 2 TCs on v7x
    )(*inputs)

    return out.reshape(n, 2, 4, 4)                            # NCHW


def init_params(key):
    """Deterministic synthetic parameters in PyTorch layout:
    (weight (Cout,Cin,3,3), bias, gamma, beta, running_mean, running_var)."""
    raw = []
    for (cin, cout, _pool, bn) in LAYER_CFG:
        key, kw, kb, kg, kbe, km, kv = jax.random.split(key, 7)
        w = 0.2 * jax.random.normal(kw, (cout, cin, 3, 3), jnp.float32)
        b = 0.1 * jax.random.normal(kb, (cout,), jnp.float32)
        if bn:
            gamma = 1.0 + 0.1 * jax.random.normal(kg, (cout,), jnp.float32)
            beta = 0.1 * jax.random.normal(kbe, (cout,), jnp.float32)
            mean = 0.1 * jax.random.normal(km, (cout,), jnp.float32)
            var = jax.random.uniform(kv, (cout,), jnp.float32, 0.5, 1.5)
        else:
            gamma = jnp.ones((cout,), jnp.float32)
            beta = jnp.zeros((cout,), jnp.float32)
            mean = jnp.zeros((cout,), jnp.float32)
            var = jnp.ones((cout,), jnp.float32)
        raw.append((w, b, gamma, beta, mean, var))
    return raw


def reference_forward(x, raw_params):
    """Pure-JAX (XLA) reference with PyTorch semantics (eval mode)."""
    eps = 1e-5
    out = x
    for (w, b, gamma, beta, mean, var), (_cin, cout, pool, bn) in zip(raw_params, LAYER_CFG):
        out = lax.conv_general_dilated(
            out, w, window_strides=(1, 1), padding=((1, 1), (1, 1)),
            dimension_numbers=("NCHW", "OIHW", "NCHW"),
            precision=lax.Precision.HIGHEST)
        out = out + b.reshape(1, cout, 1, 1)
        if pool:
            out = lax.reduce_window(out, -jnp.inf, lax.max,
                                    (1, 1, 2, 2), (1, 1, 2, 2), "VALID")
        if bn:
            scale = gamma / jnp.sqrt(var + eps)
            shift = beta - mean * scale
            out = out * scale.reshape(1, cout, 1, 1) + shift.reshape(1, cout, 1, 1)
            out = jnp.maximum(out, 0.0)
    return out


if __name__ == "__main__":
    key = jax.random.PRNGKey(0)
    key, xkey = jax.random.split(key)
    # grayscale input (Conv2d(1, 4, ...) expects 1 channel): (N=2, C=1, H=16, W=16)
    x = jax.random.normal(xkey, (2, 1, 16, 16), jnp.float32)

    raw = init_params(key)
    prepped = prepare_params(raw)

    fwd = jax.jit(lambda inp: colorful_cnn_forward(inp, prepped))
    out = fwd(x)
    jax.block_until_ready(out)

    assert out.shape == (2, 2, 4, 4), out.shape     # two 2x pools: 16 -> 8 -> 4
    assert out.dtype == jnp.float32
    assert bool(jnp.all(jnp.isfinite(out)))

    ref = reference_forward(x, raw)
    max_err = float(jnp.max(jnp.abs(out - ref)))
    assert max_err < 3e-2, max_err

    print("KERNEL_OK")
</pallas_src>

<mosaic_0001>
module attributes {stable_mosaic.version = 11 : i64} {
  func.func @_fused_kernel(%arg0: i32, %arg1: memref<1x1x256xf32, #tpu.memory_space<vmem>>, %arg2: memref<4x9xf32, #tpu.memory_space<vmem>>, %arg3: memref<4x1xf32, #tpu.memory_space<vmem>>, %arg4: memref<4x1xf32, #tpu.memory_space<vmem>>, %arg5: memref<8x36xf32, #tpu.memory_space<vmem>>, %arg6: memref<8x1xf32, #tpu.memory_space<vmem>>, %arg7: memref<8x1xf32, #tpu.memory_space<vmem>>, %arg8: memref<16x72xf32, #tpu.memory_space<vmem>>, %arg9: memref<16x1xf32, #tpu.memory_space<vmem>>, %arg10: memref<16x1xf32, #tpu.memory_space<vmem>>, %arg11: memref<32x144xf32, #tpu.memory_space<vmem>>, %arg12: memref<32x1xf32, #tpu.memory_space<vmem>>, %arg13: memref<32x1xf32, #tpu.memory_space<vmem>>, %arg14: memref<16x288xf32, #tpu.memory_space<vmem>>, %arg15: memref<16x1xf32, #tpu.memory_space<vmem>>, %arg16: memref<16x1xf32, #tpu.memory_space<vmem>>, %arg17: memref<8x144xf32, #tpu.memory_space<vmem>>, %arg18: memref<8x1xf32, #tpu.memory_space<vmem>>, %arg19: memref<8x1xf32, #tpu.memory_space<vmem>>, %arg20: memref<2x72xf32, #tpu.memory_space<vmem>>, %arg21: memref<2x1xf32, #tpu.memory_space<vmem>>, %arg22: memref<2x1xf32, #tpu.memory_space<vmem>>, %arg23: memref<256x64xf32, #tpu.memory_space<vmem>>, %arg24: memref<64x16xf32, #tpu.memory_space<vmem>>, %arg25: memref<1x2x16xf32, #tpu.memory_space<vmem>>, %arg26: memref<32x290xf32, #tpu.memory_space<vmem>>, %arg27: memref<288x256xf32, #tpu.memory_space<vmem>>) attributes {dimension_semantics = [#tpu.dimension_semantics<parallel>], iteration_bounds = array<i64: 2>, scalar_prefetch = 0 : i64, scratch_operands = 2 : i64, tpu.core_type = #tpu.core_type<tc>, window_params = [{transform_indices = @transform_0, window_bounds = array<i64: 1, 1, 256>}, {pipeline_mode = #tpu.pipeline_mode<synchronous>, transform_indices = @transform_1, window_bounds = array<i64: 4, 9>}, {pipeline_mode = #tpu.pipeline_mode<synchronous>, transform_indices = @transform_2, window_bounds = array<i64: 4, 1>}, {pipeline_mode = #tpu.pipeline_mode<synchronous>, transform_indices = @transform_3, window_bounds = array<i64: 4, 1>}, {pipeline_mode = #tpu.pipeline_mode<synchronous>, transform_indices = @transform_4, window_bounds = array<i64: 8, 36>}, {pipeline_mode = #tpu.pipeline_mode<synchronous>, transform_indices = @transform_5, window_bounds = array<i64: 8, 1>}, {pipeline_mode = #tpu.pipeline_mode<synchronous>, transform_indices = @transform_6, window_bounds = array<i64: 8, 1>}, {pipeline_mode = #tpu.pipeline_mode<synchronous>, transform_indices = @transform_7, window_bounds = array<i64: 16, 72>}, {pipeline_mode = #tpu.pipeline_mode<synchronous>, transform_indices = @transform_8, window_bounds = array<i64: 16, 1>}, {pipeline_mode = #tpu.pipeline_mode<synchronous>, transform_indices = @transform_9, window_bounds = array<i64: 16, 1>}, {pipeline_mode = #tpu.pipeline_mode<synchronous>, transform_indices = @transform_10, window_bounds = array<i64: 32, 144>}, {pipeline_mode = #tpu.pipeline_mode<synchronous>, transform_indices = @transform_11, window_bounds = array<i64: 32, 1>}, {pipeline_mode = #tpu.pipeline_mode<synchronous>, transform_indices = @transform_12, window_bounds = array<i64: 32, 1>}, {pipeline_mode = #tpu.pipeline_mode<synchronous>, transform_indices = @transform_13, window_bounds = array<i64: 16, 288>}, {pipeline_mode = #tpu.pipeline_mode<synchronous>, transform_indices = @transform_14, window_bounds = array<i64: 16, 1>}, {pipeline_mode = #tpu.pipeline_mode<synchronous>, transform_indices = @transform_15, window_bounds = array<i64: 16, 1>}, {pipeline_mode = #tpu.pipeline_mode<synchronous>, transform_indices = @transform_16, window_bounds = array<i64: 8, 144>}, {pipeline_mode = #tpu.pipeline_mode<synchronous>, transform_indices = @transform_17, window_bounds = array<i64: 8, 1>}, {pipeline_mode = #tpu.pipeline_mode<synchronous>, transform_indices = @transform_18, window_bounds = array<i64: 8, 1>}, {pipeline_mode = #tpu.pipeline_mode<synchronous>, transform_indices = @transform_19, window_bounds = array<i64: 2, 72>}, {pipeline_mode = #tpu.pipeline_mode<synchronous>, transform_indices = @transform_20, window_bounds = array<i64: 2, 1>}, {pipeline_mode = #tpu.pipeline_mode<synchronous>, transform_indices = @transform_21, window_bounds = array<i64: 2, 1>}, {pipeline_mode = #tpu.pipeline_mode<synchronous>, transform_indices = @transform_22, window_bounds = array<i64: 256, 64>}, {pipeline_mode = #tpu.pipeline_mode<synchronous>, transform_indices = @transform_23, window_bounds = array<i64: 64, 16>}, {transform_indices = @transform_24, window_bounds = array<i64: 1, 2, 16>}]} {
    %cst = arith.constant 0.000000e+00 : f32
    %0 = vector.broadcast %cst : f32 to vector<32x290xf32>
    %c0 = arith.constant 0 : index
    %c0_0 = arith.constant 0 : index
    %1 = vector.load %arg26[%c0, %c0_0] : memref<32x290xf32, #tpu.memory_space<vmem>>, vector<32x290xf32>
    tpu.vector_store %arg26[%c0, %c0_0], %0 {strides = array<i32>} : memref<32x290xf32, #tpu.memory_space<vmem>>, vector<32x290xf32>,
    %c0_1 = arith.constant 0 : index
    %c0_2 = arith.constant 0 : index
    %c0_3 = arith.constant 0 : index
    %2 = vector.load %arg1[%c0_1, %c0_2, %c0_3] : memref<1x1x256xf32, #tpu.memory_space<vmem>>, vector<1x1x256xf32>
    %3 = vector.shape_cast %2 : vector<1x1x256xf32> to vector<1x256xf32>
    %c0_4 = arith.constant 0 : index
    %c17 = arith.constant 17 : index
    %4 = vector.load %arg26[%c0_4, %c17] : memref<32x290xf32, #tpu.memory_space<vmem>>, vector<1x256xf32>
    tpu.vector_store %arg26[%c0_4, %c17], %3 {strides = array<i32>} : memref<32x290xf32, #tpu.memory_space<vmem>>, vector<1x256xf32>,
    %5 = tpu.iota {dimensions = array<i32: 1>} : vector<1x256xi32>
    %c15_i32 = arith.constant 15 : i32
    %6 = vector.broadcast %c15_i32 : i32 to vector<1x256xi32>
    %7 = arith.andi %5, %6 : vector<1x256xi32>
    %c1_i32 = arith.constant 1 : i32
    %8 = vector.broadcast %c1_i32 : i32 to vector<1x256xi32>
    %9 = arith.cmpi sge, %7, %8 : vector<1x256xi32>
    %c14_i32 = arith.constant 14 : i32
    %10 = vector.broadcast %c14_i32 : i32 to vector<1x256xi32>
    %11 = arith.cmpi sle, %7, %10 : vector<1x256xi32>
    %c0_5 = arith.constant 0 : index
    %c0_6 = arith.constant 0 : index
    %12 = vector.load %arg26[%c0_5, %c0_6] : memref<32x290xf32, #tpu.memory_space<vmem>>, vector<1x256xf32>
    %cst_7 = arith.constant 0.000000e+00 : f32
    %13 = vector.broadcast %cst_7 : f32 to vector<1x256xf32>
    %14 = arith.select %9, %12, %13 : vector<1x256xi1>, vector<1x256xf32>
    %c0_8 = arith.constant 0 : index
    %c0_9 = arith.constant 0 : index
    %15 = vector.load %arg27[%c0_8, %c0_9] : memref<288x256xf32, #tpu.memory_space<vmem>>, vector<1x256xf32>
    tpu.vector_store %arg27[%c0_8, %c0_9], %14 {strides = array<i32>} : memref<288x256xf32, #tpu.memory_space<vmem>>, vector<1x256xf32>,
    %c0_10 = arith.constant 0 : index
    %c1 = arith.constant 1 : index
    %16 = vector.load %arg26[%c0_10, %c1] : memref<32x290xf32, #tpu.memory_space<vmem>>, vector<1x256xf32>
    %c1_11 = arith.constant 1 : index
    %c0_12 = arith.constant 0 : index
    %17 = vector.load %arg27[%c1_11, %c0_12] : memref<288x256xf32, #tpu.memory_space<vmem>>, vector<1x256xf32>
    tpu.vector_store %arg27[%c1_11, %c0_12], %16 {strides = array<i32>} : memref<288x256xf32, #tpu.memory_space<vmem>>, vector<1x256xf32>,
    %c0_13 = arith.constant 0 : index
    %c2 = arith.constant 2 : index
    %18 = vector.load %arg26[%c0_13, %c2] : memref<32x290xf32, #tpu.memory_space<vmem>>, vector<1x256xf32>
    %cst_14 = arith.constant 0.000000e+00 : f32
    %19 = vector.broadcast %cst_14 : f32 to vector<1x256xf32>
    %20 = arith.select %11, %18, %19 : vector<1x256xi1>, vector<1x256xf32>
    %c2_15 = arith.constant 2 : index
    %c0_16 = arith.constant 0 : index
    %21 = vector.load %arg27[%c2_15, %c0_16] : memref<288x256xf32, #tpu.memory_space<vmem>>, vector<1x256xf32>
    tpu.vector_store %arg27[%c2_15, %c0_16], %20 {strides = array<i32>} : memref<288x256xf32, #tpu.memory_space<vmem>>, vector<1x256xf32>,
    %c0_17 = arith.constant 0 : index
    %c16 = arith.constant 16 : index
    %22 = vector.load %arg26[%c0_17, %c16] : memref<32x290xf32, #tpu.memory_space<vmem>>, vector<1x256xf32>
    %cst_18 = arith.constant 0.000000e+00 : f32
    %23 = vector.broadcast %cst_18 : f32 to vector<1x256xf32>
    %24 = arith.select %9, %22, %23 : vector<1x256xi1>, vector<1x256xf32>
    %c3 = arith.constant 3 : index
    %c0_19 = arith.constant 0 : index
    %25 = vector.load %arg27[%c3, %c0_19] : memref<288x256xf32, #tpu.memory_space<vmem>>, vector<1x256xf32>
    tpu.vector_store %arg27[%c3, %c0_19], %24 {strides = array<i32>} : memref<288x256xf32, #tpu.memory_space<vmem>>, vector<1x256xf32>,
    %c0_20 = arith.constant 0 : index
    %c17_21 = arith.constant 17 : index
    %26 = vector.load %arg26[%c0_20, %c17_21] : memref<32x290xf32, #tpu.memory_space<vmem>>, vector<1x256xf32>
    %c4 = arith.constant 4 : index
    %c0_22 = arith.constant 0 : index
    %27 = vector.load %arg27[%c4, %c0_22] : memref<288x256xf32, #tpu.memory_space<vmem>>, vector<1x256xf32>
    tpu.vector_store %arg27[%c4, %c0_22], %26 {strides = array<i32>} : memref<288x256xf32, #tpu.memory_space<vmem>>, vector<1x256xf32>,
    %c0_23 = arith.constant 0 : index
    %c18 = arith.constant 18 : index
    %28 = vector.load %arg26[%c0_23, %c18] : memref<32x290xf32, #tpu.memory_space<vmem>>, vector<1x256xf32>
    %cst_24 = arith.constant 0.000000e+00 : f32
    %29 = vector.broadcast %cst_24 : f32 to vector<1x256xf32>
    %30 = arith.select %11, %28, %29 : vector<1x256xi1>, vector<1x256xf32>
    %c5 = arith.constant 5 : index
    %c0_25 = arith.constant 0 : index
    %31 = vector.load %arg27[%c5, %c0_25] : memref<288x256xf32, #tpu.memory_space<vmem>>, vector<1x256xf32>
    tpu.vector_store %arg27[%c5, %c0_25], %30 {strides = array<i32>} : memref<288x256xf32, #tpu.memory_space<vmem>>, vector<1x256xf32>,
    %c0_26 = arith.constant 0 : index
    %c32 = arith.constant 32 : index
    %32 = vector.load %arg26[%c0_26, %c32] : memref<32x290xf32, #tpu.memory_space<vmem>>, vector<1x256xf32>
    %cst_27 = arith.constant 0.000000e+00 : f32
    %33 = vector.broadcast %cst_27 : f32 to vector<1x256xf32>
    %34 = arith.select %9, %32, %33 : vector<1x256xi1>, vector<1x256xf32>
    %c6 = arith.constant 6 : index
    %c0_28 = arith.constant 0 : index
    %35 = vector.load %arg27[%c6, %c0_28] : memref<288x256xf32, #tpu.memory_space<vmem>>, vector<1x256xf32>
    tpu.vector_store %arg27[%c6, %c0_28], %34 {strides = array<i32>} : memref<288x256xf32, #tpu.memory_space<vmem>>, vector<1x256xf32>,
    %c0_29 = arith.constant 0 : index
    %c33 = arith.constant 33 : index
    %36 = vector.load %arg26[%c0_29, %c33] : memref<32x290xf32, #tpu.memory_space<vmem>>, vector<1x256xf32>
    %c7 = arith.constant 7 : index
    %c0_30 = arith.constant 0 : index
    %37 = vector.load %arg27[%c7, %c0_30] : memref<288x256xf32, #tpu.memory_space<vmem>>, vector<1x256xf32>
    tpu.vector_store %arg27[%c7, %c0_30], %36 {strides = array<i32>} : memref<288x256xf32, #tpu.memory_space<vmem>>, vector<1x256xf32>,
    %c0_31 = arith.constant 0 : index
    %c34 = arith.constant 34 : index
    %38 = vector.load %arg26[%c0_31, %c34] : memref<32x290xf32, #tpu.memory_space<vmem>>, vector<1x256xf32>
    %cst_32 = arith.constant 0.000000e+00 : f32
    %39 = vector.broadcast %cst_32 : f32 to vector<1x256xf32>
    %40 = arith.select %11, %38, %39 : vector<1x256xi1>, vector<1x256xf32>
    %c8 = arith.constant 8 : index
    %c0_33 = arith.constant 0 : index
    %41 = vector.load %arg27[%c8, %c0_33] : memref<288x256xf32, #tpu.memory_space<vmem>>, vector<1x256xf32>
    tpu.vector_store %arg27[%c8, %c0_33], %40 {strides = array<i32>} : memref<288x256xf32, #tpu.memory_space<vmem>>, vector<1x256xf32>,
    %c0_34 = arith.constant 0 : index
    %c0_35 = arith.constant 0 : index
    %42 = vector.load %arg2[%c0_34, %c0_35] : memref<4x9xf32, #tpu.memory_space<vmem>>, vector<4x9xf32>
    %c0_36 = arith.constant 0 : index
    %c0_37 = arith.constant 0 : index
    %43 = vector.load %arg27[%c0_36, %c0_37] : memref<288x256xf32, #tpu.memory_space<vmem>>, vector<9x256xf32>
    %cst_38 = arith.constant dense<0.000000e+00> : vector<4x256xf32>
    %44 = tpu.matmul %42, %43, %cst_38 {dimension_numbers = #tpu.dot_dimension_numbers<[1], [0], [0], [1], [0, 0, 1, 1], [], []>} : vector<4x9xf32>, vector<9x256xf32>, vector<4x256xf32> -> vector<4x256xf32>
    %c0_39 = arith.constant 0 : index
    %c0_40 = arith.constant 0 : index
    %45 = vector.load %arg3[%c0_39, %c0_40] : memref<4x1xf32, #tpu.memory_space<vmem>>, vector<4x1xf32>
    %46 = vector.broadcast %45 : vector<4x1xf32> to vector<4x256xf32>
    %47 = arith.mulf %44, %46 : vector<4x256xf32>
    %c0_41 = arith.constant 0 : index
    %c0_42 = arith.constant 0 : index
    %48 = vector.load %arg4[%c0_41, %c0_42] : memref<4x1xf32, #tpu.memory_space<vmem>>, vector<4x1xf32>
    %49 = vector.broadcast %48 : vector<4x1xf32> to vector<4x256xf32>
    %50 = arith.addf %47, %49 : vector<4x256xf32>
    %cst_43 = arith.constant 0.000000e+00 : f32
    %51 = vector.broadcast %cst_43 : f32 to vector<4x256xf32>
    %52 = arith.maximumf %50, %51 : vector<4x256xf32>
    %c0_44 = arith.constant 0 : index
    %c17_45 = arith.constant 17 : index
    %53 = vector.load %arg26[%c0_44, %c17_45] : memref<32x290xf32, #tpu.memory_space<vmem>>, vector<4x256xf32>
    tpu.vector_store %arg26[%c0_44, %c17_45], %52 {strides = array<i32>} : memref<32x290xf32, #tpu.memory_space<vmem>>, vector<4x256xf32>,
    %c0_46 = arith.constant 0 : index
    %c0_47 = arith.constant 0 : index
    %54 = vector.load %arg26[%c0_46, %c0_47] : memref<32x290xf32, #tpu.memory_space<vmem>>, vector<4x256xf32>
    %cst_48 = arith.constant 0.000000e+00 : f32
    %55 = vector.shape_cast %9 : vector<1x256xi1> to vector<1x256xi1>
    %56 = vector.broadcast %55 : vector<1x256xi1> to vector<4x256xi1>
    %57 = vector.broadcast %cst_48 : f32 to vector<4x256xf32>
    %58 = arith.select %56, %54, %57 : vector<4x256xi1>, vector<4x256xf32>
    %c0_49 = arith.constant 0 : index
    %c0_50 = arith.constant 0 : index
    %59 = vector.load %arg27[%c0_49, %c0_50] : memref<288x256xf32, #tpu.memory_space<vmem>>, vector<4x256xf32>
    tpu.vector_store %arg27[%c0_49, %c0_50], %58 {strides = array<i32>} : memref<288x256xf32, #tpu.memory_space<vmem>>, vector<4x256xf32>,
    %c0_51 = arith.constant 0 : index
    %c1_52 = arith.constant 1 : index
    %60 = vector.load %arg26[%c0_51, %c1_52] : memref<32x290xf32, #tpu.memory_space<vmem>>, vector<4x256xf32>
    %c4_53 = arith.constant 4 : index
    %c0_54 = arith.constant 0 : index
    %61 = vector.load %arg27[%c4_53, %c0_54] : memref<288x256xf32, #tpu.memory_space<vmem>>, vector<4x256xf32>
    tpu.vector_store %arg27[%c4_53, %c0_54], %60 {strides = array<i32>} : memref<288x256xf32, #tpu.memory_space<vmem>>, vector<4x256xf32>,
    %c0_55 = arith.constant 0 : index
    %c2_56 = arith.constant 2 : index
    %62 = vector.load %arg26[%c0_55, %c2_56] : memref<32x290xf32, #tpu.memory_space<vmem>>, vector<4x256xf32>
    %cst_57 = arith.constant 0.000000e+00 : f32
    %63 = vector.shape_cast %11 : vector<1x256xi1> to vector<1x256xi1>
    %64 = vector.broadcast %63 : vector<1x256xi1> to vector<4x256xi1>
    %65 = vector.broadcast %cst_57 : f32 to vector<4x256xf32>
    %66 = arith.select %64, %62, %65 : vector<4x256xi1>, vector<4x256xf32>
    %c8_58 = arith.constant 8 : index
    %c0_59 = arith.constant 0 : index
    %67 = vector.load %arg27[%c8_58, %c0_59] : memref<288x256xf32, #tpu.memory_space<vmem>>, vector<4x256xf32>
    tpu.vector_store %arg27[%c8_58, %c0_59], %66 {strides = array<i32>} : memref<288x256xf32, #tpu.memory_space<vmem>>, vector<4x256xf32>,
    %c0_60 = arith.constant 0 : index
    %c16_61 = arith.constant 16 : index
    %68 = vector.load %arg26[%c0_60, %c16_61] : memref<32x290xf32, #tpu.memory_space<vmem>>, vector<4x256xf32>
    %cst_62 = arith.constant 0.000000e+00 : f32
    %69 = vector.shape_cast %9 : vector<1x256xi1> to vector<1x256xi1>
    %70 = vector.broadcast %69 : vector<1x256xi1> to vector<4x256xi1>
    %71 = vector.broadcast %cst_62 : f32 to vector<4x256xf32>
    %72 = arith.select %70, %68, %71 : vector<4x256xi1>, vector<4x256xf32>
    %c12 = arith.constant 12 : index
    %c0_63 = arith.constant 0 : index
    %73 = vector.load %arg27[%c12, %c0_63] : memref<288x256xf32, #tpu.memory_space<vmem>>, vector<4x256xf32>
    tpu.vector_store %arg27[%c12, %c0_63], %72 {strides = array<i32>} : memref<288x256xf32, #tpu.memory_space<vmem>>, vector<4x256xf32>,
    %c0_64 = arith.constant 0 : index
    %c17_65 = arith.constant 17 : index
    %74 = vector.load %arg26[%c0_64, %c17_65] : memref<32x290xf32, #tpu.memory_space<vmem>>, vector<4x256xf32>
    %c16_66 = arith.constant 16 : index
    %c0_67 = arith.constant 0 : index
    %75 = vector.load %arg27[%c16_66, %c0_67] : memref<288x256xf32, #tpu.memory_space<vmem>>, vector<4x256xf32>
    tpu.vector_store %arg27[%c16_66, %c0_67], %74 {strides = array<i32>} : memref<288x256xf32, #tpu.memory_space<vmem>>, vector<4x256xf32>,
    %c0_68 = arith.constant 0 : index
    %c18_69 = arith.constant 18 : index
    %76 = vector.load %arg26[%c0_68, %c18_69] : memref<32x290xf32, #tpu.memory_space<vmem>>, vector<4x256xf32>
    %cst_70 = arith.constant 0.000000e+00 : f32
    %77 = vector.shape_cast %11 : vector<1x256xi1> to vector<1x256xi1>
    %78 = vector.broadcast %77 : vector<1x256xi1> to vector<4x256xi1>
    %79 = vector.broadcast %cst_70 : f32 to vector<4x256xf32>
    %80 = arith.select %78, %76, %79 : vector<4x256xi1>, vector<4x256xf32>
    %c20 = arith.constant 20 : index
    %c0_71 = arith.constant 0 : index
    %81 = vector.load %arg27[%c20, %c0_71] : memref<288x256xf32, #tpu.memory_space<vmem>>, vector<4x256xf32>
    tpu.vector_store %arg27[%c20, %c0_71], %80 {strides = array<i32>} : memref<288x256xf32, #tpu.memory_space<vmem>>, vector<4x256xf32>,
    %c0_72 = arith.constant 0 : index
    %c32_73 = arith.constant 32 : index
    %82 = vector.load %arg26[%c0_72, %c32_73] : memref<32x290xf32, #tpu.memory_space<vmem>>, vector<4x256xf32>
    %cst_74 = arith.constant 0.000000e+00 : f32
    %83 = vector.shape_cast %9 : vector<1x256xi1> to vector<1x256xi1>
    %84 = vector.broadcast %83 : vector<1x256xi1> to vector<4x256xi1>
    %85 = vector.broadcast %cst_74 : f32 to vector<4x256xf32>
    %86 = arith.select %84, %82, %85 : vector<4x256xi1>, vector<4x256xf32>
    %c24 = arith.constant 24 : index
    %c0_75 = arith.constant 0 : index
    %87 = vector.load %arg27[%c24, %c0_75] : memref<288x256xf32, #tpu.memory_space<vmem>>, vector<4x256xf32>
    tpu.vector_store %arg27[%c24, %c0_75], %86 {strides = array<i32>} : memref<288x256xf32, #tpu.memory_space<vmem>>, vector<4x256xf32>,
    %c0_76 = arith.constant 0 : index
    %c33_77 = arith.constant 33 : index
    %88 = vector.load %arg26[%c0_76, %c33_77] : memref<32x290xf32, #tpu.memory_space<vmem>>, vector<4x256xf32>
    %c28 = arith.constant 28 : index
    %c0_78 = arith.constant 0 : index
    %89 = vector.load %arg27[%c28, %c0_78] : memref<288x256xf32, #tpu.memory_space<vmem>>, vector<4x256xf32>
    tpu.vector_store %arg27[%c28, %c0_78], %88 {strides = array<i32>} : memref<288x256xf32, #tpu.memory_space<vmem>>, vector<4x256xf32>,
    %c0_79 = arith.constant 0 : index
    %c34_80 = arith.constant 34 : index
    %90 = vector.load %arg26[%c0_79, %c34_80] : memref<32x290xf32, #tpu.memory_space<vmem>>, vector<4x256xf32>
    %cst_81 = arith.constant 0.000000e+00 : f32
    %91 = vector.shape_cast %11 : vector<1x256xi1> to vector<1x256xi1>
    %92 = vector.broadcast %91 : vector<1x256xi1> to vector<4x256xi1>
    %93 = vector.broadcast %cst_81 : f32 to vector<4x256xf32>
    %94 = arith.select %92, %90, %93 : vector<4x256xi1>, vector<4x256xf32>
    %c32_82 = arith.constant 32 : index
    %c0_83 = arith.constant 0 : index
    %95 = vector.load %arg27[%c32_82, %c0_83] : memref<288x256xf32, #tpu.memory_space<vmem>>, vector<4x256xf32>
    tpu.vector_store %arg27[%c32_82, %c0_83], %94 {strides = array<i32>} : memref<288x256xf32, #tpu.memory_space<vmem>>, vector<4x256xf32>,
    %c0_84 = arith.constant 0 : index
    %c0_85 = arith.constant 0 : index
    %96 = vector.load %arg5[%c0_84, %c0_85] : memref<8x36xf32, #tpu.memory_space<vmem>>, vector<8x36xf32>
    %c0_86 = arith.constant 0 : index
    %c0_87 = arith.constant 0 : index
    %97 = vector.load %arg27[%c0_86, %c0_87] : memref<288x256xf32, #tpu.memory_space<vmem>>, vector<36x256xf32>
    %cst_88 = arith.constant dense<0.000000e+00> : vector<8x256xf32>
    %98 = tpu.matmul %96, %97, %cst_88 {dimension_numbers = #tpu.dot_dimension_numbers<[1], [0], [0], [1], [0, 0, 1, 1], [], []>} : vector<8x36xf32>, vector<36x256xf32>, vector<8x256xf32> -> vector<8x256xf32>
    %c0_89 = arith.constant 0 : index
    %c0_90 = arith.constant 0 : index
    %99 = vector.load %arg6[%c0_89, %c0_90] : memref<8x1xf32, #tpu.memory_space<vmem>>, vector<8x1xf32>
    %100 = vector.broadcast %99 : vector<8x1xf32> to vector<8x256xf32>
    %101 = arith.mulf %98, %100 : vector<8x256xf32>
    %c0_91 = arith.constant 0 : index
    %c0_92 = arith.constant 0 : index
    %102 = vector.load %arg7[%c0_91, %c0_92] : memref<8x1xf32, #tpu.memory_space<vmem>>, vector<8x1xf32>
    %103 = vector.broadcast %102 : vector<8x1xf32> to vector<8x256xf32>
    %104 = arith.addf %101, %103 : vector<8x256xf32>
    %cst_93 = arith.constant 0.000000e+00 : f32
    %105 = vector.broadcast %cst_93 : f32 to vector<8x256xf32>
    %106 = arith.maximumf %104, %105 : vector<8x256xf32>
    %c0_94 = arith.constant 0 : index
    %c17_95 = arith.constant 17 : index
    %107 = vector.load %arg26[%c0_94, %c17_95] : memref<32x290xf32, #tpu.memory_space<vmem>>, vector<8x256xf32>
    tpu.vector_store %arg26[%c0_94, %c17_95], %106 {strides = array<i32>} : memref<32x290xf32, #tpu.memory_space<vmem>>, vector<8x256xf32>,
    %c0_96 = arith.constant 0 : index
    %c0_97 = arith.constant 0 : index
    %108 = vector.load %arg26[%c0_96, %c0_97] : memref<32x290xf32, #tpu.memory_space<vmem>>, vector<8x256xf32>
    %cst_98 = arith.constant 0.000000e+00 : f32
    %109 = vector.shape_cast %9 : vector<1x256xi1> to vector<1x256xi1>
    %110 = vector.broadcast %109 : vector<1x256xi1> to vector<8x256xi1>
    %111 = vector.broadcast %cst_98 : f32 to vector<8x256xf32>
    %112 = arith.select %110, %108, %111 : vector<8x256xi1>, vector<8x256xf32>
    %c0_99 = arith.constant 0 : index
    %c0_100 = arith.constant 0 : index
    %113 = vector.load %arg27[%c0_99, %c0_100] : memref<288x256xf32, #tpu.memory_space<vmem>>, vector<8x256xf32>
    tpu.vector_store %arg27[%c0_99, %c0_100], %112 {strides = array<i32>} : memref<288x256xf32, #tpu.memory_space<vmem>>, vector<8x256xf32>,
    %c0_101 = arith.constant 0 : index
    %c1_102 = arith.constant 1 : index
    %114 = vector.load %arg26[%c0_101, %c1_102] : memref<32x290xf32, #tpu.memory_space<vmem>>, vector<8x256xf32>
    %c8_103 = arith.constant 8 : index
    %c0_104 = arith.constant 0 : index
    %115 = vector.load %arg27[%c8_103, %c0_104] : memref<288x256xf32, #tpu.memory_space<vmem>>, vector<8x256xf32>
    tpu.vector_store %arg27[%c8_103, %c0_104], %114 {strides = array<i32>} : memref<288x256xf32, #tpu.memory_space<vmem>>, vector<8x256xf32>,
    %c0_105 = arith.constant 0 : index
    %c2_106 = arith.constant 2 : index
    %116 = vector.load %arg26[%c0_105, %c2_106] : memref<32x290xf32, #tpu.memory_space<vmem>>, vector<8x256xf32>
    %cst_107 = arith.constant 0.000000e+00 : f32
    %117 = vector.shape_cast %11 : vector<1x256xi1> to vector<1x256xi1>
    %118 = vector.broadcast %117 : vector<1x256xi1> to vector<8x256xi1>
    %119 = vector.broadcast %cst_107 : f32 to vector<8x256xf32>
    %120 = arith.select %118, %116, %119 : vector<8x256xi1>, vector<8x256xf32>
    %c16_108 = arith.constant 16 : index
    %c0_109 = arith.constant 0 : index
    %121 = vector.load %arg27[%c16_108, %c0_109] : memref<288x256xf32, #tpu.memory_space<vmem>>, vector<8x256xf32>
    tpu.vector_store %arg27[%c16_108, %c0_109], %120 {strides = array<i32>} : memref<288x256xf32, #tpu.memory_space<vmem>>, vector<8x256xf32>,
    %c0_110 = arith.constant 0 : index
    %c16_111 = arith.constant 16 : index
    %122 = vector.load %arg26[%c0_110, %c16_111] : memref<32x290xf32, #tpu.memory_space<vmem>>, vector<8x256xf32>
    %cst_112 = arith.constant 0.000000e+00 : f32
    %123 = vector.shape_cast %9 : vector<1x256xi1> to vector<1x256xi1>
    %124 = vector.broadcast %123 : vector<1x256xi1> to vector<8x256xi1>
    %125 = vector.broadcast %cst_112 : f32 to vector<8x256xf32>
    %126 = arith.select %124, %122, %125 : vector<8x256xi1>, vector<8x256xf32>
    %c24_113 = arith.constant 24 : index
    %c0_114 = arith.constant 0 : index
    %127 = vector.load %arg27[%c24_113, %c0_114] : memref<288x256xf32, #tpu.memory_space<vmem>>, vector<8x256xf32>
    tpu.vector_store %arg27[%c24_113, %c0_114], %126 {strides = array<i32>} : memref<288x256xf32, #tpu.memory_space<vmem>>, vector<8x256xf32>,
    %c0_115 = arith.constant 0 : index
    %c17_116 = arith.constant 17 : index
    %128 = vector.load %arg26[%c0_115, %c17_116] : memref<32x290xf32, #tpu.memory_space<vmem>>, vector<8x256xf32>
    %c32_117 = arith.constant 32 : index
    %c0_118 = arith.constant 0 : index
    %129 = vector.load %arg27[%c32_117, %c0_118] : memref<288x256xf32, #tpu.memory_space<vmem>>, vector<8x256xf32>
    tpu.vector_store %arg27[%c32_117, %c0_118], %128 {strides = array<i32>} : memref<288x256xf32, #tpu.memory_space<vmem>>, vector<8x256xf32>,
    %c0_119 = arith.constant 0 : index
    %c18_120 = arith.constant 18 : index
    %130 = vector.load %arg26[%c0_119, %c18_120] : memref<32x290xf32, #tpu.memory_space<vmem>>, vector<8x256xf32>
    %cst_121 = arith.constant 0.000000e+00 : f32
    %131 = vector.shape_cast %11 : vector<1x256xi1> to vector<1x256xi1>
    %132 = vector.broadcast %131 : vector<1x256xi1> to vector<8x256xi1>
    %133 = vector.broadcast %cst_121 : f32 to vector<8x256xf32>
    %134 = arith.select %132, %130, %133 : vector<8x256xi1>, vector<8x256xf32>
    %c40 = arith.constant 40 : index
    %c0_122 = arith.constant 0 : index
    %135 = vector.load %arg27[%c40, %c0_122] : memref<288x256xf32, #tpu.memory_space<vmem>>, vector<8x256xf32>
    tpu.vector_store %arg27[%c40, %c0_122], %134 {strides = array<i32>} : memref<288x256xf32, #tpu.memory_space<vmem>>, vector<8x256xf32>,
    %c0_123 = arith.constant 0 : index
    %c32_124 = arith.constant 32 : index
    %136 = vector.load %arg26[%c0_123, %c32_124] : memref<32x290xf32, #tpu.memory_space<vmem>>, vector<8x256xf32>
    %cst_125 = arith.constant 0.000000e+00 : f32
    %137 = vector.shape_cast %9 : vector<1x256xi1> to vector<1x256xi1>
    %138 = vector.broadcast %137 : vector<1x256xi1> to vector<8x256xi1>
    %139 = vector.broadcast %cst_125 : f32 to vector<8x256xf32>
    %140 = arith.select %138, %136, %139 : vector<8x256xi1>, vector<8x256xf32>
    %c48 = arith.constant 48 : index
    %c0_126 = arith.constant 0 : index
    %141 = vector.load %arg27[%c48, %c0_126] : memref<288x256xf32, #tpu.memory_space<vmem>>, vector<8x256xf32>
    tpu.vector_store %arg27[%c48, %c0_126], %140 {strides = array<i32>} : memref<288x256xf32, #tpu.memory_space<vmem>>, vector<8x256xf32>,
    %c0_127 = arith.constant 0 : index
    %c33_128 = arith.constant 33 : index
    %142 = vector.load %arg26[%c0_127, %c33_128] : memref<32x290xf32, #tpu.memory_space<vmem>>, vector<8x256xf32>
    %c56 = arith.constant 56 : index
    %c0_129 = arith.constant 0 : index
    %143 = vector.load %arg27[%c56, %c0_129] : memref<288x256xf32, #tpu.memory_space<vmem>>, vector<8x256xf32>
    tpu.vector_store %arg27[%c56, %c0_129], %142 {strides = array<i32>} : memref<288x256xf32, #tpu.memory_space<vmem>>, vector<8x256xf32>,
    %c0_130 = arith.constant 0 : index
    %c34_131 = arith.constant 34 : index
    %144 = vector.load %arg26[%c0_130, %c34_131] : memref<32x290xf32, #tpu.memory_space<vmem>>, vector<8x256xf32>
    %cst_132 = arith.constant 0.000000e+00 : f32
    %145 = vector.shape_cast %11 : vector<1x256xi1> to vector<1x256xi1>
    %146 = vector.broadcast %145 : vector<1x256xi1> to vector<8x256xi1>
    %147 = vector.broadcast %cst_132 : f32 to vector<8x256xf32>
    %148 = arith.select %146, %144, %147 : vector<8x256xi1>, vector<8x256xf32>
    %c64 = arith.constant 64 : index
    %c0_133 = arith.constant 0 : index
    %149 = vector.load %arg27[%c64, %c0_133] : memref<288x256xf32, #tpu.memory_space<vmem>>, vector<8x256xf32>
    tpu.vector_store %arg27[%c64, %c0_133], %148 {strides = array<i32>} : memref<288x256xf32, #tpu.memory_space<vmem>>, vector<8x256xf32>,
    %c0_134 = arith.constant 0 : index
    %c0_135 = arith.constant 0 : index
    %150 = vector.load %arg8[%c0_134, %c0_135] : memref<16x72xf32, #tpu.memory_space<vmem>>, vector<16x72xf32>
    %c0_136 = arith.constant 0 : index
    %c0_137 = arith.constant 0 : index
    %151 = vector.load %arg27[%c0_136, %c0_137] : memref<288x256xf32, #tpu.memory_space<vmem>>, vector<72x256xf32>
    %cst_138 = arith.constant dense<0.000000e+00> : vector<16x256xf32>
    %152 = tpu.matmul %150, %151, %cst_138 {dimension_numbers = #tpu.dot_dimension_numbers<[1], [0], [0], [1], [0, 0, 1, 1], [], []>} : vector<16x72xf32>, vector<72x256xf32>, vector<16x256xf32> -> vector<16x256xf32>
    %c0_139 = arith.constant 0 : index
    %c0_140 = arith.constant 0 : index
    %153 = vector.load %arg9[%c0_139, %c0_140] : memref<16x1xf32, #tpu.memory_space<vmem>>, vector<16x1xf32>
    %154 = vector.broadcast %153 : vector<16x1xf32> to vector<16x256xf32>
    %155 = arith.mulf %152, %154 : vector<16x256xf32>
    %c0_141 = arith.constant 0 : index
    %c0_142 = arith.constant 0 : index
    %156 = vector.load %arg10[%c0_141, %c0_142] : memref<16x1xf32, #tpu.memory_space<vmem>>, vector<16x1xf32>
    %157 = vector.broadcast %156 : vector<16x1xf32> to vector<16x256xf32>
    %158 = arith.addf %155, %157 : vector<16x256xf32>
    %cst_143 = arith.constant 0.000000e+00 : f32
    %159 = vector.broadcast %cst_143 : f32 to vector<16x256xf32>
    %160 = arith.maximumf %158, %159 : vector<16x256xf32>
    %c0_144 = arith.constant 0 : index
    %c17_145 = arith.constant 17 : index
    %161 = vector.load %arg26[%c0_144, %c17_145] : memref<32x290xf32, #tpu.memory_space<vmem>>, vector<16x256xf32>
    tpu.vector_store %arg26[%c0_144, %c17_145], %160 {strides = array<i32>} : memref<32x290xf32, #tpu.memory_space<vmem>>, vector<16x256xf32>,
    %c0_146 = arith.constant 0 : index
    %c0_147 = arith.constant 0 : index
    %162 = vector.load %arg26[%c0_146, %c0_147] : memref<32x290xf32, #tpu.memory_space<vmem>>, vector<16x256xf32>
    %cst_148 = arith.constant 0.000000e+00 : f32
    %163 = vector.shape_cast %9 : vector<1x256xi1> to vector<1x256xi1>
    %164 = vector.broadcast %163 : vector<1x256xi1> to vector<16x256xi1>
    %165 = vector.broadcast %cst_148 : f32 to vector<16x256xf32>
    %166 = arith.select %164, %162, %165 : vector<16x256xi1>, vector<16x256xf32>
    %c0_149 = arith.constant 0 : index
    %c0_150 = arith.constant 0 : index
    %167 = vector.load %arg27[%c0_149, %c0_150] : memref<288x256xf32, #tpu.memory_space<vmem>>, vector<16x256xf32>
    tpu.vector_store %arg27[%c0_149, %c0_150], %166 {strides = array<i32>} : memref<288x256xf32, #tpu.memory_space<vmem>>, vector<16x256xf32>,
    %c0_151 = arith.constant 0 : index
    %c1_152 = arith.constant 1 : index
    %168 = vector.load %arg26[%c0_151, %c1_152] : memref<32x290xf32, #tpu.memory_space<vmem>>, vector<16x256xf32>
    %c16_153 = arith.constant 16 : index
    %c0_154 = arith.constant 0 : index
    %169 = vector.load %arg27[%c16_153, %c0_154] : memref<288x256xf32, #tpu.memory_space<vmem>>, vector<16x256xf32>
    tpu.vector_store %arg27[%c16_153, %c0_154], %168 {strides = array<i32>} : memref<288x256xf32, #tpu.memory_space<vmem>>, vector<16x256xf32>,
    %c0_155 = arith.constant 0 : index
    %c2_156 = arith.constant 2 : index
    %170 = vector.load %arg26[%c0_155, %c2_156] : memref<32x290xf32, #tpu.memory_space<vmem>>, vector<16x256xf32>
    %cst_157 = arith.constant 0.000000e+00 : f32
    %171 = vector.shape_cast %11 : vector<1x256xi1> to vector<1x256xi1>
    %172 = vector.broadcast %171 : vector<1x256xi1> to vector<16x256xi1>
    %173 = vector.broadcast %cst_157 : f32 to vector<16x256xf32>
    %174 = arith.select %172, %170, %173 : vector<16x256xi1>, vector<16x256xf32>
    %c32_158 = arith.constant 32 : index
    %c0_159 = arith.constant 0 : index
    %175 = vector.load %arg27[%c32_158, %c0_159] : memref<288x256xf32, #tpu.memory_space<vmem>>, vector<16x256xf32>
    tpu.vector_store %arg27[%c32_158, %c0_159], %174 {strides = array<i32>} : memref<288x256xf32, #tpu.memory_space<vmem>>, vector<16x256xf32>,
    %c0_160 = arith.constant 0 : index
    %c16_161 = arith.constant 16 : index
    %176 = vector.load %arg26[%c0_160, %c16_161] : memref<32x290xf32, #tpu.memory_space<vmem>>, vector<16x256xf32>
    %cst_162 = arith.constant 0.000000e+00 : f32
    %177 = vector.shape_cast %9 : vector<1x256xi1> to vector<1x256xi1>
    %178 = vector.broadcast %177 : vector<1x256xi1> to vector<16x256xi1>
    %179 = vector.broadcast %cst_162 : f32 to vector<16x256xf32>
    %180 = arith.select %178, %176, %179 : vector<16x256xi1>, vector<16x256xf32>
    %c48_163 = arith.constant 48 : index
    %c0_164 = arith.constant 0 : index
    %181 = vector.load %arg27[%c48_163, %c0_164] : memref<288x256xf32, #tpu.memory_space<vmem>>, vector<16x256xf32>
    tpu.vector_store %arg27[%c48_163, %c0_164], %180 {strides = array<i32>} : memref<288x256xf32, #tpu.memory_space<vmem>>, vector<16x256xf32>,
    %c0_165 = arith.constant 0 : index
    %c17_166 = arith.constant 17 : index
    %182 = vector.load %arg26[%c0_165, %c17_166] : memref<32x290xf32, #tpu.memory_space<vmem>>, vector<16x256xf32>
    %c64_167 = arith.constant 64 : index
    %c0_168 = arith.constant 0 : index
    %183 = vector.load %arg27[%c64_167, %c0_168] : memref<288x256xf32, #tpu.memory_space<vmem>>, vector<16x256xf32>
    tpu.vector_store %arg27[%c64_167, %c0_168], %182 {strides = array<i32>} : memref<288x256xf32, #tpu.memory_space<vmem>>, vector<16x256xf32>,
    %c0_169 = arith.constant 0 : index
    %c18_170 = arith.constant 18 : index
    %184 = vector.load %arg26[%c0_169, %c18_170] : memref<32x290xf32, #tpu.memory_space<vmem>>, vector<16x256xf32>
    %cst_171 = arith.constant 0.000000e+00 : f32
    %185 = vector.shape_cast %11 : vector<1x256xi1> to vector<1x256xi1>
    %186 = vector.broadcast %185 : vector<1x256xi1> to vector<16x256xi1>
    %187 = vector.broadcast %cst_171 : f32 to vector<16x256xf32>
    %188 = arith.select %186, %184, %187 : vector<16x256xi1>, vector<16x256xf32>
    %c80 = arith.constant 80 : index
    %c0_172 = arith.constant 0 : index
    %189 = vector.load %arg27[%c80, %c0_172] : memref<288x256xf32, #tpu.memory_space<vmem>>, vector<16x256xf32>
    tpu.vector_store %arg27[%c80, %c0_172], %188 {strides = array<i32>} : memref<288x256xf32, #tpu.memory_space<vmem>>, vector<16x256xf32>,
    %c0_173 = arith.constant 0 : index
    %c32_174 = arith.constant 32 : index
    %190 = vector.load %arg26[%c0_173, %c32_174] : memref<32x290xf32, #tpu.memory_space<vmem>>, vector<16x256xf32>
    %cst_175 = arith.constant 0.000000e+00 : f32
    %191 = vector.shape_cast %9 : vector<1x256xi1> to vector<1x256xi1>
    %192 = vector.broadcast %191 : vector<1x256xi1> to vector<16x256xi1>
    %193 = vector.broadcast %cst_175 : f32 to vector<16x256xf32>
    %194 = arith.select %192, %190, %193 : vector<16x256xi1>, vector<16x256xf32>
    %c96 = arith.constant 96 : index
    %c0_176 = arith.constant 0 : index
    %195 = vector.load %arg27[%c96, %c0_176] : memref<288x256xf32, #tpu.memory_space<vmem>>, vector<16x256xf32>
    tpu.vector_store %arg27[%c96, %c0_176], %194 {strides = array<i32>} : memref<288x256xf32, #tpu.memory_space<vmem>>, vector<16x256xf32>,
    %c0_177 = arith.constant 0 : index
    %c33_178 = arith.constant 33 : index
    %196 = vector.load %arg26[%c0_177, %c33_178] : memref<32x290xf32, #tpu.memory_space<vmem>>, vector<16x256xf32>
    %c112 = arith.constant 112 : index
    %c0_179 = arith.constant 0 : index
    %197 = vector.load %arg27[%c112, %c0_179] : memref<288x256xf32, #tpu.memory_space<vmem>>, vector<16x256xf32>
    tpu.vector_store %arg27[%c112, %c0_179], %196 {strides = array<i32>} : memref<288x256xf32, #tpu.memory_space<vmem>>, vector<16x256xf32>,
    %c0_180 = arith.constant 0 : index
    %c34_181 = arith.constant 34 : index
    %198 = vector.load %arg26[%c0_180, %c34_181] : memref<32x290xf32, #tpu.memory_space<vmem>>, vector<16x256xf32>
    %cst_182 = arith.constant 0.000000e+00 : f32
    %199 = vector.shape_cast %11 : vector<1x256xi1> to vector<1x256xi1>
    %200 = vector.broadcast %199 : vector<1x256xi1> to vector<16x256xi1>
    %201 = vector.broadcast %cst_182 : f32 to vector<16x256xf32>
    %202 = arith.select %200, %198, %201 : vector<16x256xi1>, vector<16x256xf32>
    %c128 = arith.constant 128 : index
    %c0_183 = arith.constant 0 : index
    %203 = vector.load %arg27[%c128, %c0_183] : memref<288x256xf32, #tpu.memory_space<vmem>>, vector<16x256xf32>
    tpu.vector_store %arg27[%c128, %c0_183], %202 {strides = array<i32>} : memref<288x256xf32, #tpu.memory_space<vmem>>, vector<16x256xf32>,
    %c0_184 = arith.constant 0 : index
    %c0_185 = arith.constant 0 : index
    %204 = vector.load %arg11[%c0_184, %c0_185] : memref<32x144xf32, #tpu.memory_space<vmem>>, vector<32x144xf32>
    %c0_186 = arith.constant 0 : index
    %c0_187 = arith.constant 0 : index
    %205 = vector.load %arg27[%c0_186, %c0_187] : memref<288x256xf32, #tpu.memory_space<vmem>>, vector<144x256xf32>
    %cst_188 = arith.constant dense<0.000000e+00> : vector<32x256xf32>
    %206 = tpu.matmul %204, %205, %cst_188 {dimension_numbers = #tpu.dot_dimension_numbers<[1], [0], [0], [1], [0, 0, 1, 1], [], []>} : vector<32x144xf32>, vector<144x256xf32>, vector<32x256xf32> -> vector<32x256xf32>
    %c0_189 = arith.constant 0 : index
    %c0_190 = arith.constant 0 : index
    %207 = vector.load %arg12[%c0_189, %c0_190] : memref<32x1xf32, #tpu.memory_space<vmem>>, vector<32x1xf32>
    %208 = vector.broadcast %207 : vector<32x1xf32> to vector<32x256xf32>
    %209 = arith.mulf %206, %208 : vector<32x256xf32>
    %c0_191 = arith.constant 0 : index
    %c0_192 = arith.constant 0 : index
    %210 = vector.load %arg13[%c0_191, %c0_192] : memref<32x1xf32, #tpu.memory_space<vmem>>, vector<32x1xf32>
    %211 = vector.broadcast %210 : vector<32x1xf32> to vector<32x256xf32>
    %212 = arith.addf %209, %211 : vector<32x256xf32>
    %cst_193 = arith.constant 0.000000e+00 : f32
    %213 = vector.broadcast %cst_193 : f32 to vector<32x256xf32>
    %214 = arith.maximumf %212, %213 : vector<32x256xf32>
    %c0_194 = arith.constant 0 : index
    %c17_195 = arith.constant 17 : index
    %215 = vector.load %arg26[%c0_194, %c17_195] : memref<32x290xf32, #tpu.memory_space<vmem>>, vector<32x256xf32>
    tpu.vector_store %arg26[%c0_194, %c17_195], %214 {strides = array<i32>} : memref<32x290xf32, #tpu.memory_space<vmem>>, vector<32x256xf32>,
    %c0_196 = arith.constant 0 : index
    %c0_197 = arith.constant 0 : index
    %216 = vector.load %arg26[%c0_196, %c0_197] : memref<32x290xf32, #tpu.memory_space<vmem>>, vector<32x256xf32>
    %cst_198 = arith.constant 0.000000e+00 : f32
    %217 = vector.shape_cast %9 : vector<1x256xi1> to vector<1x256xi1>
    %218 = vector.broadcast %217 : vector<1x256xi1> to vector<32x256xi1>
    %219 = vector.broadcast %cst_198 : f32 to vector<32x256xf32>
    %220 = arith.select %218, %216, %219 : vector<32x256xi1>, vector<32x256xf32>
    %c0_199 = arith.constant 0 : index
    %c0_200 = arith.constant 0 : index
    %221 = vector.load %arg27[%c0_199, %c0_200] : memref<288x256xf32, #tpu.memory_space<vmem>>, vector<32x256xf32>
    tpu.vector_store %arg27[%c0_199, %c0_200], %220 {strides = array<i32>} : memref<288x256xf32, #tpu.memory_space<vmem>>, vector<32x256xf32>,
    %c0_201 = arith.constant 0 : index
    %c1_202 = arith.constant 1 : index
    %222 = vector.load %arg26[%c0_201, %c1_202] : memref<32x290xf32, #tpu.memory_space<vmem>>, vector<32x256xf32>
    %c32_203 = arith.constant 32 : index
    %c0_204 = arith.constant 0 : index
    %223 = vector.load %arg27[%c32_203, %c0_204] : memref<288x256xf32, #tpu.memory_space<vmem>>, vector<32x256xf32>
    tpu.vector_store %arg27[%c32_203, %c0_204], %222 {strides = array<i32>} : memref<288x256xf32, #tpu.memory_space<vmem>>, vector<32x256xf32>,
    %c0_205 = arith.constant 0 : index
    %c2_206 = arith.constant 2 : index
    %224 = vector.load %arg26[%c0_205, %c2_206] : memref<32x290xf32, #tpu.memory_space<vmem>>, vector<32x256xf32>
    %cst_207 = arith.constant 0.000000e+00 : f32
    %225 = vector.shape_cast %11 : vector<1x256xi1> to vector<1x256xi1>
    %226 = vector.broadcast %225 : vector<1x256xi1> to vector<32x256xi1>
    %227 = vector.broadcast %cst_207 : f32 to vector<32x256xf32>
    %228 = arith.select %226, %224, %227 : vector<32x256xi1>, vector<32x256xf32>
    %c64_208 = arith.constant 64 : index
    %c0_209 = arith.constant 0 : index
    %229 = vector.load %arg27[%c64_208, %c0_209] : memref<288x256xf32, #tpu.memory_space<vmem>>, vector<32x256xf32>
    tpu.vector_store %arg27[%c64_208, %c0_209], %228 {strides = array<i32>} : memref<288x256xf32, #tpu.memory_space<vmem>>, vector<32x256xf32>,
    %c0_210 = arith.constant 0 : index
    %c16_211 = arith.constant 16 : index
    %230 = vector.load %arg26[%c0_210, %c16_211] : memref<32x290xf32, #tpu.memory_space<vmem>>, vector<32x256xf32>
    %cst_212 = arith.constant 0.000000e+00 : f32
    %231 = vector.shape_cast %9 : vector<1x256xi1> to vector<1x256xi1>
    %232 = vector.broadcast %231 : vector<1x256xi1> to vector<32x256xi1>
    %233 = vector.broadcast %cst_212 : f32 to vector<32x256xf32>
    %234 = arith.select %232, %230, %233 : vector<32x256xi1>, vector<32x256xf32>
    %c96_213 = arith.constant 96 : index
    %c0_214 = arith.constant 0 : index
    %235 = vector.load %arg27[%c96_213, %c0_214] : memref<288x256xf32, #tpu.memory_space<vmem>>, vector<32x256xf32>
    tpu.vector_store %arg27[%c96_213, %c0_214], %234 {strides = array<i32>} : memref<288x256xf32, #tpu.memory_space<vmem>>, vector<32x256xf32>,
    %c0_215 = arith.constant 0 : index
    %c17_216 = arith.constant 17 : index
    %236 = vector.load %arg26[%c0_215, %c17_216] : memref<32x290xf32, #tpu.memory_space<vmem>>, vector<32x256xf32>
    %c128_217 = arith.constant 128 : index
    %c0_218 = arith.constant 0 : index
    %237 = vector.load %arg27[%c128_217, %c0_218] : memref<288x256xf32, #tpu.memory_space<vmem>>, vector<32x256xf32>
    tpu.vector_store %arg27[%c128_217, %c0_218], %236 {strides = array<i32>} : memref<288x256xf32, #tpu.memory_space<vmem>>, vector<32x256xf32>,
    %c0_219 = arith.constant 0 : index
    %c18_220 = arith.constant 18 : index
    %238 = vector.load %arg26[%c0_219, %c18_220] : memref<32x290xf32, #tpu.memory_space<vmem>>, vector<32x256xf32>
    %cst_221 = arith.constant 0.000000e+00 : f32
    %239 = vector.shape_cast %11 : vector<1x256xi1> to vector<1x256xi1>
    %240 = vector.broadcast %239 : vector<1x256xi1> to vector<32x256xi1>
    %241 = vector.broadcast %cst_221 : f32 to vector<32x256xf32>
    %242 = arith.select %240, %238, %241 : vector<32x256xi1>, vector<32x256xf32>
    %c160 = arith.constant 160 : index
    %c0_222 = arith.constant 0 : index
    %243 = vector.load %arg27[%c160, %c0_222] : memref<288x256xf32, #tpu.memory_space<vmem>>, vector<32x256xf32>
    tpu.vector_store %arg27[%c160, %c0_222], %242 {strides = array<i32>} : memref<288x256xf32, #tpu.memory_space<vmem>>, vector<32x256xf32>,
    %c0_223 = arith.constant 0 : index
    %c32_224 = arith.constant 32 : index
    %244 = vector.load %arg26[%c0_223, %c32_224] : memref<32x290xf32, #tpu.memory_space<vmem>>, vector<32x256xf32>
    %cst_225 = arith.constant 0.000000e+00 : f32
    %245 = vector.shape_cast %9 : vector<1x256xi1> to vector<1x256xi1>
    %246 = vector.broadcast %245 : vector<1x256xi1> to vector<32x256xi1>
    %247 = vector.broadcast %cst_225 : f32 to vector<32x256xf32>
    %248 = arith.select %246, %244, %247 : vector<32x256xi1>, vector<32x256xf32>
    %c192 = arith.constant 192 : index
    %c0_226 = arith.constant 0 : index
    %249 = vector.load %arg27[%c192, %c0_226] : memref<288x256xf32, #tpu.memory_space<vmem>>, vector<32x256xf32>
    tpu.vector_store %arg27[%c192, %c0_226], %248 {strides = array<i32>} : memref<288x256xf32, #tpu.memory_space<vmem>>, vector<32x256xf32>,
    %c0_227 = arith.constant 0 : index
    %c33_228 = arith.constant 33 : index
    %250 = vector.load %arg26[%c0_227, %c33_228] : memref<32x290xf32, #tpu.memory_space<vmem>>, vector<32x256xf32>
    %c224 = arith.constant 224 : index
    %c0_229 = arith.constant 0 : index
    %251 = vector.load %arg27[%c224, %c0_229] : memref<288x256xf32, #tpu.memory_space<vmem>>, vector<32x256xf32>
    tpu.vector_store %arg27[%c224, %c0_229], %250 {strides = array<i32>} : memref<288x256xf32, #tpu.memory_space<vmem>>, vector<32x256xf32>,
    %c0_230 = arith.constant 0 : index
    %c34_231 = arith.constant 34 : index
    %252 = vector.load %arg26[%c0_230, %c34_231] : memref<32x290xf32, #tpu.memory_space<vmem>>, vector<32x256xf32>
    %cst_232 = arith.constant 0.000000e+00 : f32
    %253 = vector.shape_cast %11 : vector<1x256xi1> to vector<1x256xi1>
    %254 = vector.broadcast %253 : vector<1x256xi1> to vector<32x256xi1>
    %255 = vector.broadcast %cst_232 : f32 to vector<32x256xf32>
    %256 = arith.select %254, %252, %255 : vector<32x256xi1>, vector<32x256xf32>
    %c256 = arith.constant 256 : index
    %c0_233 = arith.constant 0 : index
    %257 = vector.load %arg27[%c256, %c0_233] : memref<288x256xf32, #tpu.memory_space<vmem>>, vector<32x256xf32>
    tpu.vector_store %arg27[%c256, %c0_233], %256 {strides = array<i32>} : memref<288x256xf32, #tpu.memory_space<vmem>>, vector<32x256xf32>,
    %c0_234 = arith.constant 0 : index
    %c0_235 = arith.constant 0 : index
    %258 = vector.load %arg14[%c0_234, %c0_235] : memref<16x288xf32, #tpu.memory_space<vmem>>, vector<16x288xf32>
    %c0_236 = arith.constant 0 : index
    %c0_237 = arith.constant 0 : index
    %259 = vector.load %arg27[%c0_236, %c0_237] : memref<288x256xf32, #tpu.memory_space<vmem>>, vector<288x256xf32>
    %cst_238 = arith.constant dense<0.000000e+00> : vector<16x256xf32>
    %260 = tpu.matmul %258, %259, %cst_238 {dimension_numbers = #tpu.dot_dimension_numbers<[1], [0], [0], [1], [0, 0, 1, 1], [], []>} : vector<16x288xf32>, vector<288x256xf32>, vector<16x256xf32> -> vector<16x256xf32>
    %c0_239 = arith.constant 0 : index
    %c17_240 = arith.constant 17 : index
    %261 = vector.load %arg26[%c0_239, %c17_240] : memref<32x290xf32, #tpu.memory_space<vmem>>, vector<16x256xf32>
    tpu.vector_store %arg26[%c0_239, %c17_240], %260 {strides = array<i32>} : memref<32x290xf32, #tpu.memory_space<vmem>>, vector<16x256xf32>,
    %c0_241 = arith.constant 0 : index
    %c18_242 = arith.constant 18 : index
    %262 = vector.load %arg26[%c0_241, %c18_242] : memref<32x290xf32, #tpu.memory_space<vmem>>, vector<16x256xf32>
    %c0_243 = arith.constant 0 : index
    %c33_244 = arith.constant 33 : index
    %263 = vector.load %arg26[%c0_243, %c33_244] : memref<32x290xf32, #tpu.memory_space<vmem>>, vector<16x256xf32>
    %c0_245 = arith.constant 0 : index
    %c34_246 = arith.constant 34 : index
    %264 = vector.load %arg26[%c0_245, %c34_246] : memref<32x290xf32, #tpu.memory_space<vmem>>, vector<16x256xf32>
    %265 = arith.maximumf %260, %262 : vector<16x256xf32>
    %266 = arith.maximumf %263, %264 : vector<16x256xf32>
    %267 = arith.maximumf %265, %266 : vector<16x256xf32>
    %c0_247 = arith.constant 0 : index
    %c0_248 = arith.constant 0 : index
    %268 = vector.load %arg23[%c0_247, %c0_248] : memref<256x64xf32, #tpu.memory_space<vmem>>, vector<256x64xf32>
    %cst_249 = arith.constant dense<0.000000e+00> : vector<16x64xf32>
    %269 = tpu.matmul %267, %268, %cst_249 {dimension_numbers = #tpu.dot_dimension_numbers<[1], [0], [0], [1], [0, 0, 1, 1], [], []>} : vector<16x256xf32>, vector<256x64xf32>, vector<16x64xf32> -> vector<16x64xf32>
    %c0_250 = arith.constant 0 : index
    %c0_251 = arith.constant 0 : index
    %270 = vector.load %arg15[%c0_250, %c0_251] : memref<16x1xf32, #tpu.memory_space<vmem>>, vector<16x1xf32>
    %271 = vector.broadcast %270 : vector<16x1xf32> to vector<16x64xf32>
    %272 = arith.mulf %269, %271 : vector<16x64xf32>
    %c0_252 = arith.constant 0 : index
    %c0_253 = arith.constant 0 : index
    %273 = vector.load %arg16[%c0_252, %c0_253] : memref<16x1xf32, #tpu.memory_space<vmem>>, vector<16x1xf32>
    %274 = vector.broadcast %273 : vector<16x1xf32> to vector<16x64xf32>
    %275 = arith.addf %272, %274 : vector<16x64xf32>
    %cst_254 = arith.constant 0.000000e+00 : f32
    %276 = vector.broadcast %cst_254 : f32 to vector<16x64xf32>
    %277 = arith.maximumf %275, %276 : vector<16x64xf32>
    %cst_255 = arith.constant 0.000000e+00 : f32
    %278 = vector.broadcast %cst_255 : f32 to vector<16x9xf32>
    %c0_256 = arith.constant 0 : index
    %c81 = arith.constant 81 : index
    %279 = vector.load %arg26[%c0_256, %c81] : memref<32x290xf32, #tpu.memory_space<vmem>>, vector<16x9xf32>
    tpu.vector_store %arg26[%c0_256, %c81], %278 {strides = array<i32>} : memref<32x290xf32, #tpu.memory_space<vmem>>, vector<16x9xf32>,
    %c0_257 = arith.constant 0 : index
    %c17_258 = arith.constant 17 : index
    %280 = vector.load %arg26[%c0_257, %c17_258] : memref<32x290xf32, #tpu.memory_space<vmem>>, vector<16x64xf32>
    tpu.vector_store %arg26[%c0_257, %c17_258], %277 {strides = array<i32>} : memref<32x290xf32, #tpu.memory_space<vmem>>, vector<16x64xf32>,
    %281 = tpu.iota {dimensions = array<i32: 1>} : vector<1x64xi32>
    %c7_i32 = arith.constant 7 : i32
    %282 = vector.broadcast %c7_i32 : i32 to vector<1x64xi32>
    %283 = arith.andi %281, %282 : vector<1x64xi32>
    %c1_i32_259 = arith.constant 1 : i32
    %284 = vector.broadcast %c1_i32_259 : i32 to vector<1x64xi32>
    %285 = arith.cmpi sge, %283, %284 : vector<1x64xi32>
    %c6_i32 = arith.constant 6 : i32
    %286 = vector.broadcast %c6_i32 : i32 to vector<1x64xi32>
    %287 = arith.cmpi sle, %283, %286 : vector<1x64xi32>
    %c0_260 = arith.constant 0 : index
    %c8_261 = arith.constant 8 : index
    %288 = vector.load %arg26[%c0_260, %c8_261] : memref<32x290xf32, #tpu.memory_space<vmem>>, vector<16x64xf32>
    %cst_262 = arith.constant 0.000000e+00 : f32
    %289 = vector.shape_cast %285 : vector<1x64xi1> to vector<1x64xi1>
    %290 = vector.broadcast %289 : vector<1x64xi1> to vector<16x64xi1>
    %291 = vector.broadcast %cst_262 : f32 to vector<16x64xf32>
    %292 = arith.select %290, %288, %291 : vector<16x64xi1>, vector<16x64xf32>
    %c0_263 = arith.constant 0 : index
    %c0_264 = arith.constant 0 : index
    %293 = vector.load %arg27[%c0_263, %c0_264] : memref<288x256xf32, #tpu.memory_space<vmem>>, vector<16x64xf32>
    tpu.vector_store %arg27[%c0_263, %c0_264], %292 {strides = array<i32>} : memref<288x256xf32, #tpu.memory_space<vmem>>, vector<16x64xf32>,
    %c0_265 = arith.constant 0 : index
    %c9 = arith.constant 9 : index
    %294 = vector.load %arg26[%c0_265, %c9] : memref<32x290xf32, #tpu.memory_space<vmem>>, vector<16x64xf32>
    %c16_266 = arith.constant 16 : index
    %c0_267 = arith.constant 0 : index
    %295 = vector.load %arg27[%c16_266, %c0_267] : memref<288x256xf32, #tpu.memory_space<vmem>>, vector<16x64xf32>
    tpu.vector_store %arg27[%c16_266, %c0_267], %294 {strides = array<i32>} : memref<288x256xf32, #tpu.memory_space<vmem>>, vector<16x64xf32>,
    %c0_268 = arith.constant 0 : index
    %c10 = arith.constant 10 : index
    %296 = vector.load %arg26[%c0_268, %c10] : memref<32x290xf32, #tpu.memory_space<vmem>>, vector<16x64xf32>
    %cst_269 = arith.constant 0.000000e+00 : f32
    %297 = vector.shape_cast %287 : vector<1x64xi1> to vector<1x64xi1>
    %298 = vector.broadcast %297 : vector<1x64xi1> to vector<16x64xi1>
    %299 = vector.broadcast %cst_269 : f32 to vector<16x64xf32>
    %300 = arith.select %298, %296, %299 : vector<16x64xi1>, vector<16x64xf32>
    %c32_270 = arith.constant 32 : index
    %c0_271 = arith.constant 0 : index
    %301 = vector.load %arg27[%c32_270, %c0_271] : memref<288x256xf32, #tpu.memory_space<vmem>>, vector<16x64xf32>
    tpu.vector_store %arg27[%c32_270, %c0_271], %300 {strides = array<i32>} : memref<288x256xf32, #tpu.memory_space<vmem>>, vector<16x64xf32>,
    %c0_272 = arith.constant 0 : index
    %c16_273 = arith.constant 16 : index
    %302 = vector.load %arg26[%c0_272, %c16_273] : memref<32x290xf32, #tpu.memory_space<vmem>>, vector<16x64xf32>
    %cst_274 = arith.constant 0.000000e+00 : f32
    %303 = vector.shape_cast %285 : vector<1x64xi1> to vector<1x64xi1>
    %304 = vector.broadcast %303 : vector<1x64xi1> to vector<16x64xi1>
    %305 = vector.broadcast %cst_274 : f32 to vector<16x64xf32>
    %306 = arith.select %304, %302, %305 : vector<16x64xi1>, vector<16x64xf32>
    %c48_275 = arith.constant 48 : index
    %c0_276 = arith.constant 0 : index
    %307 = vector.load %arg27[%c48_275, %c0_276] : memref<288x256xf32, #tpu.memory_space<vmem>>, vector<16x64xf32>
    tpu.vector_store %arg27[%c48_275, %c0_276], %306 {strides = array<i32>} : memref<288x256xf32, #tpu.memory_space<vmem>>, vector<16x64xf32>,
    %c0_277 = arith.constant 0 : index
    %c17_278 = arith.constant 17 : index
    %308 = vector.load %arg26[%c0_277, %c17_278] : memref<32x290xf32, #tpu.memory_space<vmem>>, vector<16x64xf32>
    %c64_279 = arith.constant 64 : index
    %c0_280 = arith.constant 0 : index
    %309 = vector.load %arg27[%c64_279, %c0_280] : memref<288x256xf32, #tpu.memory_space<vmem>>, vector<16x64xf32>
    tpu.vector_store %arg27[%c64_279, %c0_280], %308 {strides = array<i32>} : memref<288x256xf32, #tpu.memory_space<vmem>>, vector<16x64xf32>,
    %c0_281 = arith.constant 0 : index
    %c18_282 = arith.constant 18 : index
    %310 = vector.load %arg26[%c0_281, %c18_282] : memref<32x290xf32, #tpu.memory_space<vmem>>, vector<16x64xf32>
    %cst_283 = arith.constant 0.000000e+00 : f32
    %311 = vector.shape_cast %287 : vector<1x64xi1> to vector<1x64xi1>
    %312 = vector.broadcast %311 : vector<1x64xi1> to vector<16x64xi1>
    %313 = vector.broadcast %cst_283 : f32 to vector<16x64xf32>
    %314 = arith.select %312, %310, %313 : vector<16x64xi1>, vector<16x64xf32>
    %c80_284 = arith.constant 80 : index
    %c0_285 = arith.constant 0 : index
    %315 = vector.load %arg27[%c80_284, %c0_285] : memref<288x256xf32, #tpu.memory_space<vmem>>, vector<16x64xf32>
    tpu.vector_store %arg27[%c80_284, %c0_285], %314 {strides = array<i32>} : memref<288x256xf32, #tpu.memory_space<vmem>>, vector<16x64xf32>,
    %c0_286 = arith.constant 0 : index
    %c24_287 = arith.constant 24 : index
    %316 = vector.load %arg26[%c0_286, %c24_287] : memref<32x290xf32, #tpu.memory_space<vmem>>, vector<16x64xf32>
    %cst_288 = arith.constant 0.000000e+00 : f32
    %317 = vector.shape_cast %285 : vector<1x64xi1> to vector<1x64xi1>
    %318 = vector.broadcast %317 : vector<1x64xi1> to vector<16x64xi1>
    %319 = vector.broadcast %cst_288 : f32 to vector<16x64xf32>
    %320 = arith.select %318, %316, %319 : vector<16x64xi1>, vector<16x64xf32>
    %c96_289 = arith.constant 96 : index
    %c0_290 = arith.constant 0 : index
    %321 = vector.load %arg27[%c96_289, %c0_290] : memref<288x256xf32, #tpu.memory_space<vmem>>, vector<16x64xf32>
    tpu.vector_store %arg27[%c96_289, %c0_290], %320 {strides = array<i32>} : memref<288x256xf32, #tpu.memory_space<vmem>>, vector<16x64xf32>,
    %c0_291 = arith.constant 0 : index
    %c25 = arith.constant 25 : index
    %322 = vector.load %arg26[%c0_291, %c25] : memref<32x290xf32, #tpu.memory_space<vmem>>, vector<16x64xf32>
    %c112_292 = arith.constant 112 : index
    %c0_293 = arith.constant 0 : index
    %323 = vector.load %arg27[%c112_292, %c0_293] : memref<288x256xf32, #tpu.memory_space<vmem>>, vector<16x64xf32>
    tpu.vector_store %arg27[%c112_292, %c0_293], %322 {strides = array<i32>} : memref<288x256xf32, #tpu.memory_space<vmem>>, vector<16x64xf32>,
    %c0_294 = arith.constant 0 : index
    %c26 = arith.constant 26 : index
    %324 = vector.load %arg26[%c0_294, %c26] : memref<32x290xf32, #tpu.memory_space<vmem>>, vector<16x64xf32>
    %cst_295 = arith.constant 0.000000e+00 : f32
    %325 = vector.shape_cast %287 : vector<1x64xi1> to vector<1x64xi1>
    %326 = vector.broadcast %325 : vector<1x64xi1> to vector<16x64xi1>
    %327 = vector.broadcast %cst_295 : f32 to vector<16x64xf32>
    %328 = arith.select %326, %324, %327 : vector<16x64xi1>, vector<16x64xf32>
    %c128_296 = arith.constant 128 : index
    %c0_297 = arith.constant 0 : index
    %329 = vector.load %arg27[%c128_296, %c0_297] : memref<288x256xf32, #tpu.memory_space<vmem>>, vector<16x64xf32>
    tpu.vector_store %arg27[%c128_296, %c0_297], %328 {strides = array<i32>} : memref<288x256xf32, #tpu.memory_space<vmem>>, vector<16x64xf32>,
    %c0_298 = arith.constant 0 : index
    %c0_299 = arith.constant 0 : index
    %330 = vector.load %arg17[%c0_298, %c0_299] : memref<8x144xf32, #tpu.memory_space<vmem>>, vector<8x144xf32>
    %c0_300 = arith.constant 0 : index
    %c0_301 = arith.constant 0 : index
    %331 = vector.load %arg27[%c0_300, %c0_301] : memref<288x256xf32, #tpu.memory_space<vmem>>, vector<144x64xf32>
    %cst_302 = arith.constant dense<0.000000e+00> : vector<8x64xf32>
    %332 = tpu.matmul %330, %331, %cst_302 {dimension_numbers = #tpu.dot_dimension_numbers<[1], [0], [0], [1], [0, 0, 1, 1], [], []>} : vector<8x144xf32>, vector<144x64xf32>, vector<8x64xf32> -> vector<8x64xf32>
    %c0_303 = arith.constant 0 : index
    %c17_304 = arith.constant 17 : index
    %333 = vector.load %arg26[%c0_303, %c17_304] : memref<32x290xf32, #tpu.memory_space<vmem>>, vector<8x64xf32>
    tpu.vector_store %arg26[%c0_303, %c17_304], %332 {strides = array<i32>} : memref<32x290xf32, #tpu.memory_space<vmem>>, vector<8x64xf32>,
    %c0_305 = arith.constant 0 : index
    %c18_306 = arith.constant 18 : index
    %334 = vector.load %arg26[%c0_305, %c18_306] : memref<32x290xf32, #tpu.memory_space<vmem>>, vector<8x64xf32>
    %c0_307 = arith.constant 0 : index
    %c25_308 = arith.constant 25 : index
    %335 = vector.load %arg26[%c0_307, %c25_308] : memref<32x290xf32, #tpu.memory_space<vmem>>, vector<8x64xf32>
    %c0_309 = arith.constant 0 : index
    %c26_310 = arith.constant 26 : index
    %336 = vector.load %arg26[%c0_309, %c26_310] : memref<32x290xf32, #tpu.memory_space<vmem>>, vector<8x64xf32>
    %337 = arith.maximumf %332, %334 : vector<8x64xf32>
    %338 = arith.maximumf %335, %336 : vector<8x64xf32>
    %339 = arith.maximumf %337, %338 : vector<8x64xf32>
    %c0_311 = arith.constant 0 : index
    %c0_312 = arith.constant 0 : index
    %340 = vector.load %arg24[%c0_311, %c0_312] : memref<64x16xf32, #tpu.memory_space<vmem>>, vector<64x16xf32>
    %cst_313 = arith.constant dense<0.000000e+00> : vector<8x16xf32>
    %341 = tpu.matmul %339, %340, %cst_313 {dimension_numbers = #tpu.dot_dimension_numbers<[1], [0], [0], [1], [0, 0, 1, 1], [], []>} : vector<8x64xf32>, vector<64x16xf32>, vector<8x16xf32> -> vector<8x16xf32>
    %c0_314 = arith.constant 0 : index
    %c0_315 = arith.constant 0 : index
    %342 = vector.load %arg18[%c0_314, %c0_315] : memref<8x1xf32, #tpu.memory_space<vmem>>, vector<8x1xf32>
    %343 = vector.broadcast %342 : vector<8x1xf32> to vector<8x16xf32>
    %344 = arith.mulf %341, %343 : vector<8x16xf32>
    %c0_316 = arith.constant 0 : index
    %c0_317 = arith.constant 0 : index
    %345 = vector.load %arg19[%c0_316, %c0_317] : memref<8x1xf32, #tpu.memory_space<vmem>>, vector<8x1xf32>
    %346 = vector.broadcast %345 : vector<8x1xf32> to vector<8x16xf32>
    %347 = arith.addf %344, %346 : vector<8x16xf32>
    %cst_318 = arith.constant 0.000000e+00 : f32
    %348 = vector.broadcast %cst_318 : f32 to vector<8x16xf32>
    %349 = arith.maximumf %347, %348 : vector<8x16xf32>
    %cst_319 = arith.constant 0.000000e+00 : f32
    %350 = vector.broadcast %cst_319 : f32 to vector<8x5xf32>
    %c0_320 = arith.constant 0 : index
    %c33_321 = arith.constant 33 : index
    %351 = vector.load %arg26[%c0_320, %c33_321] : memref<32x290xf32, #tpu.memory_space<vmem>>, vector<8x5xf32>
    tpu.vector_store %arg26[%c0_320, %c33_321], %350 {strides = array<i32>} : memref<32x290xf32, #tpu.memory_space<vmem>>, vector<8x5xf32>,
    %c0_322 = arith.constant 0 : index
    %c17_323 = arith.constant 17 : index
    %352 = vector.load %arg26[%c0_322, %c17_323] : memref<32x290xf32, #tpu.memory_space<vmem>>, vector<8x16xf32>
    tpu.vector_store %arg26[%c0_322, %c17_323], %349 {strides = array<i32>} : memref<32x290xf32, #tpu.memory_space<vmem>>, vector<8x16xf32>,
    %353 = tpu.iota {dimensions = array<i32: 1>} : vector<1x16xi32>
    %c3_i32 = arith.constant 3 : i32
    %354 = vector.broadcast %c3_i32 : i32 to vector<1x16xi32>
    %355 = arith.andi %353, %354 : vector<1x16xi32>
    %c1_i32_324 = arith.constant 1 : i32
    %356 = vector.broadcast %c1_i32_324 : i32 to vector<1x16xi32>
    %357 = arith.cmpi sge, %355, %356 : vector<1x16xi32>
    %c2_i32 = arith.constant 2 : i32
    %358 = vector.broadcast %c2_i32 : i32 to vector<1x16xi32>
    %359 = arith.cmpi sle, %355, %358 : vector<1x16xi32>
    %c0_325 = arith.constant 0 : index
    %c12_326 = arith.constant 12 : index
    %360 = vector.load %arg26[%c0_325, %c12_326] : memref<32x290xf32, #tpu.memory_space<vmem>>, vector<8x16xf32>
    %cst_327 = arith.constant 0.000000e+00 : f32
    %361 = vector.shape_cast %357 : vector<1x16xi1> to vector<1x16xi1>
    %362 = vector.broadcast %361 : vector<1x16xi1> to vector<8x16xi1>
    %363 = vector.broadcast %cst_327 : f32 to vector<8x16xf32>
    %364 = arith.select %362, %360, %363 : vector<8x16xi1>, vector<8x16xf32>
    %c0_328 = arith.constant 0 : index
    %c0_329 = arith.constant 0 : index
    %365 = vector.load %arg27[%c0_328, %c0_329] : memref<288x256xf32, #tpu.memory_space<vmem>>, vector<8x16xf32>
    tpu.vector_store %arg27[%c0_328, %c0_329], %364 {strides = array<i32>} : memref<288x256xf32, #tpu.memory_space<vmem>>, vector<8x16xf32>,
    %c0_330 = arith.constant 0 : index
    %c13 = arith.constant 13 : index
    %366 = vector.load %arg26[%c0_330, %c13] : memref<32x290xf32, #tpu.memory_space<vmem>>, vector<8x16xf32>
    %c8_331 = arith.constant 8 : index
    %c0_332 = arith.constant 0 : index
    %367 = vector.load %arg27[%c8_331, %c0_332] : memref<288x256xf32, #tpu.memory_space<vmem>>, vector<8x16xf32>
    tpu.vector_store %arg27[%c8_331, %c0_332], %366 {strides = array<i32>} : memref<288x256xf32, #tpu.memory_space<vmem>>, vector<8x16xf32>,
    %c0_333 = arith.constant 0 : index
    %c14 = arith.constant 14 : index
    %368 = vector.load %arg26[%c0_333, %c14] : memref<32x290xf32, #tpu.memory_space<vmem>>, vector<8x16xf32>
    %cst_334 = arith.constant 0.000000e+00 : f32
    %369 = vector.shape_cast %359 : vector<1x16xi1> to vector<1x16xi1>
    %370 = vector.broadcast %369 : vector<1x16xi1> to vector<8x16xi1>
    %371 = vector.broadcast %cst_334 : f32 to vector<8x16xf32>
    %372 = arith.select %370, %368, %371 : vector<8x16xi1>, vector<8x16xf32>
    %c16_335 = arith.constant 16 : index
    %c0_336 = arith.constant 0 : index
    %373 = vector.load %arg27[%c16_335, %c0_336] : memref<288x256xf32, #tpu.memory_space<vmem>>, vector<8x16xf32>
    tpu.vector_store %arg27[%c16_335, %c0_336], %372 {strides = array<i32>} : memref<288x256xf32, #tpu.memory_space<vmem>>, vector<8x16xf32>,
    %c0_337 = arith.constant 0 : index
    %c16_338 = arith.constant 16 : index
    %374 = vector.load %arg26[%c0_337, %c16_338] : memref<32x290xf32, #tpu.memory_space<vmem>>, vector<8x16xf32>
    %cst_339 = arith.constant 0.000000e+00 : f32
    %375 = vector.shape_cast %357 : vector<1x16xi1> to vector<1x16xi1>
    %376 = vector.broadcast %375 : vector<1x16xi1> to vector<8x16xi1>
    %377 = vector.broadcast %cst_339 : f32 to vector<8x16xf32>
    %378 = arith.select %376, %374, %377 : vector<8x16xi1>, vector<8x16xf32>
    %c24_340 = arith.constant 24 : index
    %c0_341 = arith.constant 0 : index
    %379 = vector.load %arg27[%c24_340, %c0_341] : memref<288x256xf32, #tpu.memory_space<vmem>>, vector<8x16xf32>
    tpu.vector_store %arg27[%c24_340, %c0_341], %378 {strides = array<i32>} : memref<288x256xf32, #tpu.memory_space<vmem>>, vector<8x16xf32>,
    %c0_342 = arith.constant 0 : index
    %c17_343 = arith.constant 17 : index
    %380 = vector.load %arg26[%c0_342, %c17_343] : memref<32x290xf32, #tpu.memory_space<vmem>>, vector<8x16xf32>
    %c32_344 = arith.constant 32 : index
    %c0_345 = arith.constant 0 : index
    %381 = vector.load %arg27[%c32_344, %c0_345] : memref<288x256xf32, #tpu.memory_space<vmem>>, vector<8x16xf32>
    tpu.vector_store %arg27[%c32_344, %c0_345], %380 {strides = array<i32>} : memref<288x256xf32, #tpu.memory_space<vmem>>, vector<8x16xf32>,
    %c0_346 = arith.constant 0 : index
    %c18_347 = arith.constant 18 : index
    %382 = vector.load %arg26[%c0_346, %c18_347] : memref<32x290xf32, #tpu.memory_space<vmem>>, vector<8x16xf32>
    %cst_348 = arith.constant 0.000000e+00 : f32
    %383 = vector.shape_cast %359 : vector<1x16xi1> to vector<1x16xi1>
    %384 = vector.broadcast %383 : vector<1x16xi1> to vector<8x16xi1>
    %385 = vector.broadcast %cst_348 : f32 to vector<8x16xf32>
    %386 = arith.select %384, %382, %385 : vector<8x16xi1>, vector<8x16xf32>
    %c40_349 = arith.constant 40 : index
    %c0_350 = arith.constant 0 : index
    %387 = vector.load %arg27[%c40_349, %c0_350] : memref<288x256xf32, #tpu.memory_space<vmem>>, vector<8x16xf32>
    tpu.vector_store %arg27[%c40_349, %c0_350], %386 {strides = array<i32>} : memref<288x256xf32, #tpu.memory_space<vmem>>, vector<8x16xf32>,
    %c0_351 = arith.constant 0 : index
    %c20_352 = arith.constant 20 : index
    %388 = vector.load %arg26[%c0_351, %c20_352] : memref<32x290xf32, #tpu.memory_space<vmem>>, vector<8x16xf32>
    %cst_353 = arith.constant 0.000000e+00 : f32
    %389 = vector.shape_cast %357 : vector<1x16xi1> to vector<1x16xi1>
    %390 = vector.broadcast %389 : vector<1x16xi1> to vector<8x16xi1>
    %391 = vector.broadcast %cst_353 : f32 to vector<8x16xf32>
    %392 = arith.select %390, %388, %391 : vector<8x16xi1>, vector<8x16xf32>
    %c48_354 = arith.constant 48 : index
    %c0_355 = arith.constant 0 : index
    %393 = vector.load %arg27[%c48_354, %c0_355] : memref<288x256xf32, #tpu.memory_space<vmem>>, vector<8x16xf32>
    tpu.vector_store %arg27[%c48_354, %c0_355], %392 {strides = array<i32>} : memref<288x256xf32, #tpu.memory_space<vmem>>, vector<8x16xf32>,
    %c0_356 = arith.constant 0 : index
    %c21 = arith.constant 21 : index
    %394 = vector.load %arg26[%c0_356, %c21] : memref<32x290xf32, #tpu.memory_space<vmem>>, vector<8x16xf32>
    %c56_357 = arith.constant 56 : index
    %c0_358 = arith.constant 0 : index
    %395 = vector.load %arg27[%c56_357, %c0_358] : memref<288x256xf32, #tpu.memory_space<vmem>>, vector<8x16xf32>
    tpu.vector_store %arg27[%c56_357, %c0_358], %394 {strides = array<i32>} : memref<288x256xf32, #tpu.memory_space<vmem>>, vector<8x16xf32>,
    %c0_359 = arith.constant 0 : index
    %c22 = arith.constant 22 : index
    %396 = vector.load %arg26[%c0_359, %c22] : memref<32x290xf32, #tpu.memory_space<vmem>>, vector<8x16xf32>
    %cst_360 = arith.constant 0.000000e+00 : f32
    %397 = vector.shape_cast %359 : vector<1x16xi1> to vector<1x16xi1>
    %398 = vector.broadcast %397 : vector<1x16xi1> to vector<8x16xi1>
    %399 = vector.broadcast %cst_360 : f32 to vector<8x16xf32>
    %400 = arith.select %398, %396, %399 : vector<8x16xi1>, vector<8x16xf32>
    %c64_361 = arith.constant 64 : index
    %c0_362 = arith.constant 0 : index
    %401 = vector.load %arg27[%c64_361, %c0_362] : memref<288x256xf32, #tpu.memory_space<vmem>>, vector<8x16xf32>
    tpu.vector_store %arg27[%c64_361, %c0_362], %400 {strides = array<i32>} : memref<288x256xf32, #tpu.memory_space<vmem>>, vector<8x16xf32>,
    %c0_363 = arith.constant 0 : index
    %c0_364 = arith.constant 0 : index
    %402 = vector.load %arg20[%c0_363, %c0_364] : memref<2x72xf32, #tpu.memory_space<vmem>>, vector<2x72xf32>
    %c0_365 = arith.constant 0 : index
    %c0_366 = arith.constant 0 : index
    %403 = vector.load %arg27[%c0_365, %c0_366] : memref<288x256xf32, #tpu.memory_space<vmem>>, vector<72x16xf32>
    %cst_367 = arith.constant dense<0.000000e+00> : vector<2x16xf32>
    %404 = tpu.matmul %402, %403, %cst_367 {dimension_numbers = #tpu.dot_dimension_numbers<[1], [0], [0], [1], [0, 0, 1, 1], [], []>} : vector<2x72xf32>, vector<72x16xf32>, vector<2x16xf32> -> vector<2x16xf32>
    %c0_368 = arith.constant 0 : index
    %c0_369 = arith.constant 0 : index
    %405 = vector.load %arg21[%c0_368, %c0_369] : memref<2x1xf32, #tpu.memory_space<vmem>>, vector<2x1xf32>
    %406 = vector.broadcast %405 : vector<2x1xf32> to vector<2x16xf32>
    %407 = arith.mulf %404, %406 : vector<2x16xf32>
    %c0_370 = arith.constant 0 : index
    %c0_371 = arith.constant 0 : index
    %408 = vector.load %arg22[%c0_370, %c0_371] : memref<2x1xf32, #tpu.memory_space<vmem>>, vector<2x1xf32>
    %409 = vector.broadcast %408 : vector<2x1xf32> to vector<2x16xf32>
    %410 = arith.addf %407, %409 : vector<2x16xf32>
    %c0_372 = arith.constant 0 : index
    %c0_373 = arith.constant 0 : index
    %c0_374 = arith.constant 0 : index
    %411 = vector.load %arg25[%c0_372, %c0_373, %c0_374] : memref<1x2x16xf32, #tpu.memory_space<vmem>>, vector<1x2x16xf32>
    %412 = vector.shape_cast %411 : vector<1x2x16xf32> to vector<2x16xf32>
    %413 = vector.shape_cast %410 : vector<2x16xf32> to vector<1x2x16xf32>
    tpu.vector_store %arg25[%c0_372, %c0_373, %c0_374], %413 {strides = array<i32>} : memref<1x2x16xf32, #tpu.memory_space<vmem>>, vector<1x2x16xf32>,
    return
  }
  func.func @transform_0(%arg0: i32) -> (i32, i32, i32) {
    %c0_i32 = arith.constant 0 : i32
    %c0_i32_0 = arith.constant 0 : i32
    %c0_i32_1 = arith.constant 0 : i32
    return %arg0, %c0_i32, %c0_i32_0 : i32, i32, i32
  }
  func.func @transform_1(%arg0: i32) -> (i32, i32) {
    %c0_i32 = arith.constant 0 : i32
    %c0_i32_0 = arith.constant 0 : i32
    %c0_i32_1 = arith.constant 0 : i32
    return %c0_i32, %c0_i32_0 : i32, i32
  }
  func.func @transform_2(%arg0: i32) -> (i32, i32) {
    %c0_i32 = arith.constant 0 : i32
    %c0_i32_0 = arith.constant 0 : i32
    %c0_i32_1 = arith.constant 0 : i32
    return %c0_i32, %c0_i32_0 : i32, i32
  }
  func.func @transform_3(%arg0: i32) -> (i32, i32) {
    %c0_i32 = arith.constant 0 : i32
    %c0_i32_0 = arith.constant 0 : i32
    %c0_i32_1 = arith.constant 0 : i32
    return %c0_i32, %c0_i32_0 : i32, i32
  }
  func.func @transform_4(%arg0: i32) -> (i32, i32) {
    %c0_i32 = arith.constant 0 : i32
    %c0_i32_0 = arith.constant 0 : i32
    %c0_i32_1 = arith.constant 0 : i32
    return %c0_i32, %c0_i32_0 : i32, i32
  }
  func.func @transform_5(%arg0: i32) -> (i32, i32) {
    %c0_i32 = arith.constant 0 : i32
    %c0_i32_0 = arith.constant 0 : i32
    %c0_i32_1 = arith.constant 0 : i32
    return %c0_i32, %c0_i32_0 : i32, i32
  }
  func.func @transform_6(%arg0: i32) -> (i32, i32) {
    %c0_i32 = arith.constant 0 : i32
    %c0_i32_0 = arith.constant 0 : i32
    %c0_i32_1 = arith.constant 0 : i32
    return %c0_i32, %c0_i32_0 : i32, i32
  }
  func.func @transform_7(%arg0: i32) -> (i32, i32) {
    %c0_i32 = arith.constant 0 : i32
    %c0_i32_0 = arith.constant 0 : i32
    %c0_i32_1 = arith.constant 0 : i32
    return %c0_i32, %c0_i32_0 : i32, i32
  }
  func.func @transform_8(%arg0: i32) -> (i32, i32) {
    %c0_i32 = arith.constant 0 : i32
    %c0_i32_0 = arith.constant 0 : i32
    %c0_i32_1 = arith.constant 0 : i32
    return %c0_i32, %c0_i32_0 : i32, i32
  }
  func.func @transform_9(%arg0: i32) -> (i32, i32) {
    %c0_i32 = arith.constant 0 : i32
    %c0_i32_0 = arith.constant 0 : i32
    %c0_i32_1 = arith.constant 0 : i32
    return %c0_i32, %c0_i32_0 : i32, i32
  }
  func.func @transform_10(%arg0: i32) -> (i32, i32) {
    %c0_i32 = arith.constant 0 : i32
    %c0_i32_0 = arith.constant 0 : i32
    %c0_i32_1 = arith.constant 0 : i32
    return %c0_i32, %c0_i32_0 : i32, i32
  }
  func.func @transform_11(%arg0: i32) -> (i32, i32) {
    %c0_i32 = arith.constant 0 : i32
    %c0_i32_0 = arith.constant 0 : i32
    %c0_i32_1 = arith.constant 0 : i32
    return %c0_i32, %c0_i32_0 : i32, i32
  }
  func.func @transform_12(%arg0: i32) -> (i32, i32) {
    %c0_i32 = arith.constant 0 : i32
    %c0_i32_0 = arith.constant 0 : i32
    %c0_i32_1 = arith.constant 0 : i32
    return %c0_i32, %c0_i32_0 : i32, i32
  }
  func.func @transform_13(%arg0: i32) -> (i32, i32) {
    %c0_i32 = arith.constant 0 : i32
    %c0_i32_0 = arith.constant 0 : i32
    %c0_i32_1 = arith.constant 0 : i32
    return %c0_i32, %c0_i32_0 : i32, i32
  }
  func.func @transform_14(%arg0: i32) -> (i32, i32) {
    %c0_i32 = arith.constant 0 : i32
    %c0_i32_0 = arith.constant 0 : i32
    %c0_i32_1 = arith.constant 0 : i32
    return %c0_i32, %c0_i32_0 : i32, i32
  }
  func.func @transform_15(%arg0: i32) -> (i32, i32) {
    %c0_i32 = arith.constant 0 : i32
    %c0_i32_0 = arith.constant 0 : i32
    %c0_i32_1 = arith.constant 0 : i32
    return %c0_i32, %c0_i32_0 : i32, i32
  }
  func.func @transform_16(%arg0: i32) -> (i32, i32) {
    %c0_i32 = arith.constant 0 : i32
    %c0_i32_0 = arith.constant 0 : i32
    %c0_i32_1 = arith.constant 0 : i32
    return %c0_i32, %c0_i32_0 : i32, i32
  }
  func.func @transform_17(%arg0: i32) -> (i32, i32) {
    %c0_i32 = arith.constant 0 : i32
    %c0_i32_0 = arith.constant 0 : i32
    %c0_i32_1 = arith.constant 0 : i32
    return %c0_i32, %c0_i32_0 : i32, i32
  }
  func.func @transform_18(%arg0: i32) -> (i32, i32) {
    %c0_i32 = arith.constant 0 : i32
    %c0_i32_0 = arith.constant 0 : i32
    %c0_i32_1 = arith.constant 0 : i32
    return %c0_i32, %c0_i32_0 : i32, i32
  }
  func.func @transform_19(%arg0: i32) -> (i32, i32) {
    %c0_i32 = arith.constant 0 : i32
    %c0_i32_0 = arith.constant 0 : i32
    %c0_i32_1 = arith.constant 0 : i32
    return %c0_i32, %c0_i32_0 : i32, i32
  }
  func.func @transform_20(%arg0: i32) -> (i32, i32) {
    %c0_i32 = arith.constant 0 : i32
    %c0_i32_0 = arith.constant 0 : i32
    %c0_i32_1 = arith.constant 0 : i32
    return %c0_i32, %c0_i32_0 : i32, i32
  }
  func.func @transform_21(%arg0: i32) -> (i32, i32) {
    %c0_i32 = arith.constant 0 : i32
    %c0_i32_0 = arith.constant 0 : i32
    %c0_i32_1 = arith.constant 0 : i32
    return %c0_i32, %c0_i32_0 : i32, i32
  }
  func.func @transform_22(%arg0: i32) -> (i32, i32) {
    %c0_i32 = arith.constant 0 : i32
    %c0_i32_0 = arith.constant 0 : i32
    %c0_i32_1 = arith.constant 0 : i32
    return %c0_i32, %c0_i32_0 : i32, i32
  }
  func.func @transform_23(%arg0: i32) -> (i32, i32) {
    %c0_i32 = arith.constant 0 : i32
    %c0_i32_0 = arith.constant 0 : i32
    %c0_i32_1 = arith.constant 0 : i32
    return %c0_i32, %c0_i32_0 : i32, i32
  }
  func.func @transform_24(%arg0: i32) -> (i32, i32, i32) {
    %c0_i32 = arith.constant 0 : i32
    %c0_i32_0 = arith.constant 0 : i32
    %c0_i32_1 = arith.constant 0 : i32
    return %arg0, %c0_i32, %c0_i32_0 : i32, i32, i32
  }
}

</mosaic_0001>

<llo_original>
// kernel: _lambda_.1
$region0: #{_lambda_.1}
  #allocation0 [shape = 'u32[]', space=smem, size = 0x4, offset = 0x4, fixed_abs, tag = 'smem constant byte address 0x4 - core index']
  #allocation1 [shape = 'u32[144,128]{1,0:T(1,128)}', space=vmem, size = 0x12000, scoped, tag = 'internal scratch']
  #allocation2 [shape = 'f32[32,290]{1,0:T(8,128)}', space=vmem, size = 0xc000, scoped, tag = 'scratch operand']
  #allocation3 [shape = 'f32[288,256]{1,0:T(8,128)}', space=vmem, size = 0x48000, scoped, tag = 'scratch operand']
  %s0 = inlined_call_operand.vmem [shape: f32[2,1,256], index: 0, kind: input, shape index: {}]
  %s1 = inlined_call_operand.vmem [shape: f32[4,9], index: 1, kind: input, shape index: {}]
  %s2 = inlined_call_operand.vmem [shape: f32[4,1], index: 2, kind: input, shape index: {}]
  %s3 = inlined_call_operand.vmem [shape: f32[4,1], index: 3, kind: input, shape index: {}]
  %s4 = inlined_call_operand.vmem [shape: f32[8,36], index: 4, kind: input, shape index: {}]
  %s5 = inlined_call_operand.vmem [shape: f32[8,1], index: 5, kind: input, shape index: {}]
  %s6 = inlined_call_operand.vmem [shape: f32[8,1], index: 6, kind: input, shape index: {}]
  %s7 = inlined_call_operand.vmem [shape: f32[16,72], index: 7, kind: input, shape index: {}]
  %s8 = inlined_call_operand.vmem [shape: f32[16,1], index: 8, kind: input, shape index: {}]
  %s9 = inlined_call_operand.vmem [shape: f32[16,1], index: 9, kind: input, shape index: {}]
  %s10 = inlined_call_operand.vmem [shape: f32[32,144], index: 10, kind: input, shape index: {}]
  %s11 = inlined_call_operand.vmem [shape: f32[32,1], index: 11, kind: input, shape index: {}]
  %s12 = inlined_call_operand.vmem [shape: f32[32,1], index: 12, kind: input, shape index: {}]
  %s13 = inlined_call_operand.vmem [shape: f32[16,288], index: 13, kind: input, shape index: {}]
  %s14 = inlined_call_operand.vmem [shape: f32[16,1], index: 14, kind: input, shape index: {}]
  %s15 = inlined_call_operand.vmem [shape: f32[16,1], index: 15, kind: input, shape index: {}]
  %s16 = inlined_call_operand.vmem [shape: f32[8,144], index: 16, kind: input, shape index: {}]
  %s17 = inlined_call_operand.vmem [shape: f32[8,1], index: 17, kind: input, shape index: {}]
  %s18 = inlined_call_operand.vmem [shape: f32[8,1], index: 18, kind: input, shape index: {}]
  %s19 = inlined_call_operand.vmem [shape: f32[2,72], index: 19, kind: input, shape index: {}]
  %s20 = inlined_call_operand.vmem [shape: f32[2,1], index: 20, kind: input, shape index: {}]
  %s21 = inlined_call_operand.vmem [shape: f32[2,1], index: 21, kind: input, shape index: {}]
  %s22 = inlined_call_operand.vmem [shape: f32[256,64], index: 22, kind: input, shape index: {}]
  %s23 = inlined_call_operand.vmem [shape: f32[64,16], index: 23, kind: input, shape index: {}]
  %s24 = inlined_call_operand.vmem [shape: f32[2,2,16], index: 24, kind: output, shape index: {}]
  %s25 = sld [smem:[#allocation0]]
  $region129: #{_lambda_.1} parent=0
    _
  %s27 = ssub.s32 1, %s25
  %s28 = scalar_select 0, %s27, %s25
  loop: start=0, step=1, limit=4
  $region2: #{_lambda_.1} parent=0 // loop_pre_header
    _
  $region3: #{_lambda_.1} parent=0 // loop_header
    %s30 = sphi 0, %s34
    %p31 = scmp.ge.s32.totalorder %s30, 4
    %s40 = sphi 0, %s42
    %s43 = sphi 0, %s40
    %s44 = sphi 0, %s43
    %s60 = sphi 0, %s44
    %s64 = sphi 0, %s64
    %s66 = sphi 0, %s64
    %s67 = sphi 0, %s66
    %s81 = sphi 0, %s67
    %s85 = sphi 0, %s85
    %s87 = sphi 0, %s85
    %s88 = sphi 0, %s87
    %s102 = sphi 0, %s88
    %s106 = sphi 0, %s106
    %s108 = sphi 0, %s106
    %s109 = sphi 0, %s108
    %s123 = sphi 0, %s109
    %s127 = sphi 0, %s127
    %s129 = sphi 0, %s127
    %s130 = sphi 0, %s129
    %s144 = sphi 0, %s130
    %s148 = sphi 0, %s148
    %s150 = sphi 0, %s148
    %s151 = sphi 0, %s150
    %s165 = sphi 0, %s151
    %s169 = sphi 0, %s169
    %s171 = sphi 0, %s169
    %s172 = sphi 0, %s171
    %s186 = sphi 0, %s172
    %s190 = sphi 0, %s190
    %s192 = sphi 0, %s190
    %s193 = sphi 0, %s192
    %s207 = sphi 0, %s193
    %s211 = sphi 0, %s211
    %s213 = sphi 0, %s211
    %s214 = sphi 0, %s213
    %s228 = sphi 0, %s214
    %s232 = sphi 0, %s232
    %s234 = sphi 0, %s232
    %s235 = sphi 0, %s234
    %s249 = sphi 0, %s235
    %s253 = sphi 0, %s253
    %s255 = sphi 0, %s253
    %s256 = sphi 0, %s255
    %s270 = sphi 0, %s256
    %s274 = sphi 0, %s274
    %s276 = sphi 0, %s274
    %s277 = sphi 0, %s276
    %s291 = sphi 0, %s277
    %s295 = sphi 0, %s295
    %s297 = sphi 0, %s295
    %s298 = sphi 0, %s297
    %s312 = sphi 0, %s298
    %s316 = sphi 0, %s316
    %s318 = sphi 0, %s316
    %s319 = sphi 0, %s318
    %s333 = sphi 0, %s319
    %s337 = sphi 0, %s337
    %s339 = sphi 0, %s337
    %s340 = sphi 0, %s339
    %s354 = sphi 0, %s340
    %s358 = sphi 0, %s358
    %s360 = sphi 0, %s358
    %s361 = sphi 0, %s360
    %s375 = sphi 0, %s361
    %s379 = sphi 0, %s379
    %s381 = sphi 0, %s379
    %s382 = sphi 0, %s381
    %s396 = sphi 0, %s382
    %s400 = sphi 0, %s400
    %s402 = sphi 0, %s400
    %s403 = sphi 0, %s402
    %s417 = sphi 0, %s403
    %s421 = sphi 0, %s421
    %s423 = sphi 0, %s421
    %s424 = sphi 0, %s423
    %s438 = sphi 0, %s424
    %s442 = sphi 0, %s442
    %s444 = sphi 0, %s442
    %s445 = sphi 0, %s444
    %s459 = sphi 0, %s445
    %s463 = sphi 0, %s463
    %s465 = sphi 0, %s463
    %s466 = sphi 0, %s465
    %s480 = sphi 0, %s466
    %s484 = sphi 0, %s484
    %s486 = sphi 0, %s484
    %s487 = sphi 0, %s486
    %s501 = sphi 0, %s487
    %s505 = sphi 0, %s505
    %s507 = sphi 0, %s505
    %s508 = sphi 0, %s507
    %s522 = sphi 0, %s508
    %s526 = sphi 0, %s526
    %s528 = sphi 0, %s526
    %s529 = sphi 0, %s528
    %s543 = sphi 0, %s529
    %s549 = sphi 0, %s551
    %s552 = sphi 0, %s549
    %s553 = sphi 0, %s552
    %s569 = sphi 0, %s553
  $region4: #{_lambda_.1} parent=0 // loop_header_branch
    %33 = sbr.rel (%p31) target = $region8
  $region5: #{_lambda_.1} parent=0 // loop_body
    %s35 = ssub.s32 %s30, 1
    %s36 = ssub.s32 %s30, 2
    %s37 = sadd.s32 %s30, 1
    %s38 = ssub.s32 %s30, %s37
    %p39 = scmp.eq.s32.totalorder %s38, 0
    %s41 = sadd.s32 %s40, 1
    %s42 = scalar_select %p39, %s40, %s41
    %p45 = pneg %p39
    %p46 = scmp.eq.s32.totalorder %s30, 1
    %p47 = por %p45, %p46
    %p48 = scmp.ne.s32.totalorder %s40, %s43
    %p49 = scmp.eq.s32.totalorder %s30, 0
    %p50 = por %p48, %p49
    %p51 = scmp.ne.s32.totalorder %s40, %s43
    %p52 = scmp.eq.s32.totalorder %s35, 1
    %p53 = por %p51, %p52
    %p54 = scmp.ne.s32.totalorder %s43, %s44
    %p55 = scmp.eq.s32.totalorder %s35, 0
    %p56 = por %p54, %p55
    %p57 = scmp.ne.s32.totalorder %s43, %s44
    %p58 = scmp.eq.s32.totalorder %s36, 1
    %p59 = por %p57, %p58
    %p61 = scmp.ne.s32.totalorder %s44, %s60
    %p62 = scmp.eq.s32.totalorder %s36, 0
    %p63 = por %p61, %p62
    %s65 = sadd.s32 %s64, 1
    %p68 = scmp.eq.s32.totalorder %s30, 1
    %p69 = scmp.ne.s32.totalorder %s64, %s66
    %p70 = scmp.eq.s32.totalorder %s30, 0
    %p71 = por %p69, %p70
    %p72 = scmp.ne.s32.totalorder %s64, %s66
    %p73 = scmp.eq.s32.totalorder %s35, 1
    %p74 = por %p72, %p73
    %p75 = scmp.ne.s32.totalorder %s66, %s67
    %p76 = scmp.eq.s32.totalorder %s35, 0
    %p77 = por %p75, %p76
    %p78 = scmp.ne.s32.totalorder %s66, %s67
    %p79 = scmp.eq.s32.totalorder %s36, 1
    %p80 = por %p78, %p79
    %p82 = scmp.ne.s32.totalorder %s67, %s81
    %p83 = scmp.eq.s32.totalorder %s36, 0
    %p84 = por %p82, %p83
    %s86 = sadd.s32 %s85, 1
    %p89 = scmp.eq.s32.totalorder %s30, 1
    %p90 = scmp.ne.s32.totalorder %s85, %s87
    %p91 = scmp.eq.s32.totalorder %s30, 0
    %p92 = por %p90, %p91
    %p93 = scmp.ne.s32.totalorder %s85, %s87
    %p94 = scmp.eq.s32.totalorder %s35, 1
    %p95 = por %p93, %p94
    %p96 = scmp.ne.s32.totalorder %s87, %s88
    %p97 = scmp.eq.s32.totalorder %s35, 0
    %p98 = por %p96, %p97
    %p99 = scmp.ne.s32.totalorder %s87, %s88
    %p100 = scmp.eq.s32.totalorder %s36, 1
    %p101 = por %p99, %p100
    %p103 = scmp.ne.s32.totalorder %s88, %s102
    %p104 = scmp.eq.s32.totalorder %s36, 0
    %p105 = por %p103, %p104
    %s107 = sadd.s32 %s106, 1
    %p110 = scmp.eq.s32.totalorder %s30, 1
    %p111 = scmp.ne.s32.totalorder %s106, %s108
    %p112 = scmp.eq.s32.totalorder %s30, 0
    %p113 = por %p111, %p112
    %p114 = scmp.ne.s32.totalorder %s106, %s108
    %p115 = scmp.eq.s32.totalorder %s35, 1
    %p116 = por %p114, %p115
    %p117 = scmp.ne.s32.totalorder %s108, %s109
    %p118 = scmp.eq.s32.totalorder %s35, 0
    %p119 = por %p117, %p118
    %p120 = scmp.ne.s32.totalorder %s108, %s109
    %p121 = scmp.eq.s32.totalorder %s36, 1
    %p122 = por %p120, %p121
    %p124 = scmp.ne.s32.totalorder %s109, %s123
    %p125 = scmp.eq.s32.totalorder %s36, 0
    %p126 = por %p124, %p125
    %s128 = sadd.s32 %s127, 1
    %p131 = scmp.eq.s32.totalorder %s30, 1
    %p132 = scmp.ne.s32.totalorder %s127, %s129
    %p133 = scmp.eq.s32.totalorder %s30, 0
    %p134 = por %p132, %p133
    %p135 = scmp.ne.s32.totalorder %s127, %s129
    %p136 = scmp.eq.s32.totalorder %s35, 1
    %p137 = por %p135, %p136
    %p138 = scmp.ne.s32.totalorder %s129, %s130
    %p139 = scmp.eq.s32.totalorder %s35, 0
    %p140 = por %p138, %p139
    %p141 = scmp.ne.s32.totalorder %s129, %s130
    %p142 = scmp.eq.s32.totalorder %s36, 1
    %p143 = por %p141, %p142
    %p145 = scmp.ne.s32.totalorder %s130, %s144
    %p146 = scmp.eq.s32.totalorder %s36, 0
    %p147 = por %p145, %p146
    %s149 = sadd.s32 %s148, 1
    %p152 = scmp.eq.s32.totalorder %s30, 1
    %p153 = scmp.ne.s32.totalorder %s148, %s150
    %p154 = scmp.eq.s32.totalorder %s30, 0
    %p155 = por %p153, %p154
    %p156 = scmp.ne.s32.totalorder %s148, %s150
    %p157 = scmp.eq.s32.totalorder %s35, 1
    %p158 = por %p156, %p157
    %p159 = scmp.ne.s32.totalorder %s150, %s151
    %p160 = scmp.eq.s32.totalorder %s35, 0
    %p161 = por %p159, %p160
    %p162 = scmp.ne.s32.totalorder %s150, %s151
    %p163 = scmp.eq.s32.totalorder %s36, 1
    %p164 = por %p162, %p163
    %p166 = scmp.ne.s32.totalorder %s151, %s165
    %p167 = scmp.eq.s32.totalorder %s36, 0
    %p168 = por %p166, %p167
    %s170 = sadd.s32 %s169, 1
    %p173 = scmp.eq.s32.totalorder %s30, 1
    %p174 = scmp.ne.s32.totalorder %s169, %s171
    %p175 = scmp.eq.s32.totalorder %s30, 0
    %p176 = por %p174, %p175
    %p177 = scmp.ne.s32.totalorder %s169, %s171
    %p178 = scmp.eq.s32.totalorder %s35, 1
    %p179 = por %p177, %p178
    %p180 = scmp.ne.s32.totalorder %s171, %s172
    %p181 = scmp.eq.s32.totalorder %s35, 0
    %p182 = por %p180, %p181
    %p183 = scmp.ne.s32.totalorder %s171, %s172
    %p184 = scmp.eq.s32.totalorder %s36, 1
    %p185 = por %p183, %p184
    %p187 = scmp.ne.s32.totalorder %s172, %s186
    %p188 = scmp.eq.s32.totalorder %s36, 0
    %p189 = por %p187, %p188
    %s191 = sadd.s32 %s190, 1
    %p194 = scmp.eq.s32.totalorder %s30, 1
    %p195 = scmp.ne.s32.totalorder %s190, %s192
    %p196 = scmp.eq.s32.totalorder %s30, 0
    %p197 = por %p195, %p196
    %p198 = scmp.ne.s32.totalorder %s190, %s192
    %p199 = scmp.eq.s32.totalorder %s35, 1
    %p200 = por %p198, %p199
    %p201 = scmp.ne.s32.totalorder %s192, %s193
    %p202 = scmp.eq.s32.totalorder %s35, 0
    %p203 = por %p201, %p202
    %p204 = scmp.ne.s32.totalorder %s192, %s193
    %p205 = scmp.eq.s32.totalorder %s36, 1
    %p206 = por %p204, %p205
    %p208 = scmp.ne.s32.totalorder %s193, %s207
    %p209 = scmp.eq.s32.totalorder %s36, 0
    %p210 = por %p208, %p209
    %s212 = sadd.s32 %s211, 1
    %p215 = scmp.eq.s32.totalorder %s30, 1
    %p216 = scmp.ne.s32.totalorder %s211, %s213
    %p217 = scmp.eq.s32.totalorder %s30, 0
    %p218 = por %p216, %p217
    %p219 = scmp.ne.s32.totalorder %s211, %s213
    %p220 = scmp.eq.s32.totalorder %s35, 1
    %p221 = por %p219, %p220
    %p222 = scmp.ne.s32.totalorder %s213, %s214
    %p223 = scmp.eq.s32.totalorder %s35, 0
    %p224 = por %p222, %p223
    %p225 = scmp.ne.s32.totalorder %s213, %s214
    %p226 = scmp.eq.s32.totalorder %s36, 1
    %p227 = por %p225, %p226
    %p229 = scmp.ne.s32.totalorder %s214, %s228
    %p230 = scmp.eq.s32.totalorder %s36, 0
    %p231 = por %p229, %p230
    %s233 = sadd.s32 %s232, 1
    %p236 = scmp.eq.s32.totalorder %s30, 1
    %p237 = scmp.ne.s32.totalorder %s232, %s234
    %p238 = scmp.eq.s32.totalorder %s30, 0
    %p239 = por %p237, %p238
    %p240 = scmp.ne.s32.totalorder %s232, %s234
    %p241 = scmp.eq.s32.totalorder %s35, 1
    %p242 = por %p240, %p241
    %p243 = scmp.ne.s32.totalorder %s234, %s235
    %p244 = scmp.eq.s32.totalorder %s35, 0
    %p245 = por %p243, %p244
    %p246 = scmp.ne.s32.totalorder %s234, %s235
    %p247 = scmp.eq.s32.totalorder %s36, 1
    %p248 = por %p246, %p247
    %p250 = scmp.ne.s32.totalorder %s235, %s249
    %p251 = scmp.eq.s32.totalorder %s36, 0
    %p252 = por %p250, %p251
    %s254 = sadd.s32 %s253, 1
    %p257 = scmp.eq.s32.totalorder %s30, 1
    %p258 = scmp.ne.s32.totalorder %s253, %s255
    %p259 = scmp.eq.s32.totalorder %s30, 0
    %p260 = por %p258, %p259
    %p261 = scmp.ne.s32.totalorder %s253, %s255
    %p262 = scmp.eq.s32.totalorder %s35, 1
    %p263 = por %p261, %p262
    %p264 = scmp.ne.s32.totalorder %s255, %s256
    %p265 = scmp.eq.s32.totalorder %s35, 0
    %p266 = por %p264, %p265
    %p267 = scmp.ne.s32.totalorder %s255, %s256
    %p268 = scmp.eq.s32.totalorder %s36, 1
    %p269 = por %p267, %p268
    %p271 = scmp.ne.s32.totalorder %s256, %s270
    %p272 = scmp.eq.s32.totalorder %s36, 0
    %p273 = por %p271, %p272
    %s275 = sadd.s32 %s274, 1
    %p278 = scmp.eq.s32.totalorder %s30, 1
    %p279 = scmp.ne.s32.totalorder %s274, %s276
    %p280 = scmp.eq.s32.totalorder %s30, 0
    %p281 = por %p279, %p280
    %p282 = scmp.ne.s32.totalorder %s274, %s276
    %p283 = scmp.eq.s32.totalorder %s35, 1
    %p284 = por %p282, %p283
    %p285 = scmp.ne.s32.totalorder %s276, %s277
    %p286 = scmp.eq.s32.totalorder %s35, 0
    %p287 = por %p285, %p286
    %p288 = scmp.ne.s32.totalorder %s276, %s277
    %p289 = scmp.eq.s32.totalorder %s36, 1
    %p290 = por %p288, %p289
    %p292 = scmp.ne.s32.totalorder %s277, %s291
    %p293 = scmp.eq.s32.totalorder %s36, 0
    %p294 = por %p292, %p293
    %s296 = sadd.s32 %s295, 1
    %p299 = scmp.eq.s32.totalorder %s30, 1
    %p300 = scmp.ne.s32.totalorder %s295, %s297
    %p301 = scmp.eq.s32.totalorder %s30, 0
    %p302 = por %p300, %p301
    %p303 = scmp.ne.s32.totalorder %s295, %s297
    %p304 = scmp.eq.s32.totalorder %s35, 1
    %p305 = por %p303, %p304
    %p306 = scmp.ne.s32.totalorder %s297, %s298
    %p307 = scmp.eq.s32.totalorder %s35, 0
    %p308 = por %p306, %p307
    %p309 = scmp.ne.s32.totalorder %s297, %s298
    %p310 = scmp.eq.s32.totalorder %s36, 1
    %p311 = por %p309, %p310
    %p313 = scmp.ne.s32.totalorder %s298, %s312
    %p314 = scmp.eq.s32.totalorder %s36, 0
    %p315 = por %p313, %p314
    %s317 = sadd.s32 %s316, 1
    %p320 = scmp.eq.s32.totalorder %s30, 1
    %p321 = scmp.ne.s32.totalorder %s316, %s318
    %p322 = scmp.eq.s32.totalorder %s30, 0
    %p323 = por %p321, %p322
    %p324 = scmp.ne.s32.totalorder %s316, %s318
    %p325 = scmp.eq.s32.totalorder %s35, 1
    %p326 = por %p324, %p325
    %p327 = scmp.ne.s32.totalorder %s318, %s319
    %p328 = scmp.eq.s32.totalorder %s35, 0
    %p329 = por %p327, %p328
    %p330 = scmp.ne.s32.totalorder %s318, %s319
    %p331 = scmp.eq.s32.totalorder %s36, 1
    %p332 = por %p330, %p331
    %p334 = scmp.ne.s32.totalorder %s319, %s333
    %p335 = scmp.eq.s32.totalorder %s36, 0
    %p336 = por %p334, %p335
    %s338 = sadd.s32 %s337, 1
    %p341 = scmp.eq.s32.totalorder %s30, 1
    %p342 = scmp.ne.s32.totalorder %s337, %s339
    %p343 = scmp.eq.s32.totalorder %s30, 0
    %p344 = por %p342, %p343
    %p345 = scmp.ne.s32.totalorder %s337, %s339
    %p346 = scmp.eq.s32.totalorder %s35, 1
    %p347 = por %p345, %p346
    %p348 = scmp.ne.s32.totalorder %s339, %s340
    %p349 = scmp.eq.s32.totalorder %s35, 0
    %p350 = por %p348, %p349
    %p351 = scmp.ne.s32.totalorder %s339, %s340
    %p352 = scmp.eq.s32.totalorder %s36, 1
    %p353 = por %p351, %p352
    %p355 = scmp.ne.s32.totalorder %s340, %s354
    %p356 = scmp.eq.s32.totalorder %s36, 0
    %p357 = por %p355, %p356
    %s359 = sadd.s32 %s358, 1
    %p362 = scmp.eq.s32.totalorder %s30, 1
    %p363 = scmp.ne.s32.totalorder %s358, %s360
    %p364 = scmp.eq.s32.totalorder %s30, 0
    %p365 = por %p363, %p364
    %p366 = scmp.ne.s32.totalorder %s358, %s360
    %p367 = scmp.eq.s32.totalorder %s35, 1
    %p368 = por %p366, %p367
    %p369 = scmp.ne.s32.totalorder %s360, %s361
    %p370 = scmp.eq.s32.totalorder %s35, 0
    %p371 = por %p369, %p370
    %p372 = scmp.ne.s32.totalorder %s360, %s361
    %p373 = scmp.eq.s32.totalorder %s36, 1
    %p374 = por %p372, %p373
    %p376 = scmp.ne.s32.totalorder %s361, %s375
    %p377 = scmp.eq.s32.totalorder %s36, 0
    %p378 = por %p376, %p377
    %s380 = sadd.s32 %s379, 1
    %p383 = scmp.eq.s32.totalorder %s30, 1
    %p384 = scmp.ne.s32.totalorder %s379, %s381
    %p385 = scmp.eq.s32.totalorder %s30, 0
    %p386 = por %p384, %p385
    %p387 = scmp.ne.s32.totalorder %s379, %s381
    %p388 = scmp.eq.s32.totalorder %s35, 1
    %p389 = por %p387, %p388
    %p390 = scmp.ne.s32.totalorder %s381, %s382
    %p391 = scmp.eq.s32.totalorder %s35, 0
    %p392 = por %p390, %p391
    %p393 = scmp.ne.s32.totalorder %s381, %s382
    %p394 = scmp.eq.s32.totalorder %s36, 1
    %p395 = por %p393, %p394
    %p397 = scmp.ne.s32.totalorder %s382, %s396
    %p398 = scmp.eq.s32.totalorder %s36, 0
    %p399 = por %p397, %p398
    %s401 = sadd.s32 %s400, 1
    %p404 = scmp.eq.s32.totalorder %s30, 1
    %p405 = scmp.ne.s32.totalorder %s400, %s402
    %p406 = scmp.eq.s32.totalorder %s30, 0
    %p407 = por %p405, %p406
    %p408 = scmp.ne.s32.totalorder %s400, %s402
    %p409 = scmp.eq.s32.totalorder %s35, 1
    %p410 = por %p408, %p409
    %p411 = scmp.ne.s32.totalorder %s402, %s403
    %p412 = scmp.eq.s32.totalorder %s35, 0
    %p413 = por %p411, %p412
    %p414 = scmp.ne.s32.totalorder %s402, %s403
    %p415 = scmp.eq.s32.totalorder %s36, 1
    %p416 = por %p414, %p415
    %p418 = scmp.ne.s32.totalorder %s403, %s417
    %p419 = scmp.eq.s32.totalorder %s36, 0
    %p420 = por %p418, %p419
    %s422 = sadd.s32 %s421, 1
    %p425 = scmp.eq.s32.totalorder %s30, 1
    %p426 = scmp.ne.s32.totalorder %s421, %s423
    %p427 = scmp.eq.s32.totalorder %s30, 0
    %p428 = por %p426, %p427
    %p429 = scmp.ne.s32.totalorder %s421, %s423
    %p430 = scmp.eq.s32.totalorder %s35, 1
    %p431 = por %p429, %p430
    %p432 = scmp.ne.s32.totalorder %s423, %s424
    %p433 = scmp.eq.s32.totalorder %s35, 0
    %p434 = por %p432, %p433
    %p435 = scmp.ne.s32.totalorder %s423, %s424
    %p436 = scmp.eq.s32.totalorder %s36, 1
    %p437 = por %p435, %p436
    %p439 = scmp.ne.s32.totalorder %s424, %s438
    %p440 = scmp.eq.s32.totalorder %s36, 0
    %p441 = por %p439, %p440
    %s443 = sadd.s32 %s442, 1
    %p446 = scmp.eq.s32.totalorder %s30, 1
    %p447 = scmp.ne.s32.totalorder %s442, %s444
    %p448 = scmp.eq.s32.totalorder %s30, 0
    %p449 = por %p447, %p448
    %p450 = scmp.ne.s32.totalorder %s442, %s444
    %p451 = scmp.eq.s32.totalorder %s35, 1
    %p452 = por %p450, %p451
    %p453 = scmp.ne.s32.totalorder %s444, %s445
    %p454 = scmp.eq.s32.totalorder %s35, 0
    %p455 = por %p453, %p454
    %p456 = scmp.ne.s32.totalorder %s444, %s445
    %p457 = scmp.eq.s32.totalorder %s36, 1
    %p458 = por %p456, %p457
    %p460 = scmp.ne.s32.totalorder %s445, %s459
    %p461 = scmp.eq.s32.totalorder %s36, 0
    %p462 = por %p460, %p461
    %s464 = sadd.s32 %s463, 1
    %p467 = scmp.eq.s32.totalorder %s30, 1
    %p468 = scmp.ne.s32.totalorder %s463, %s465
    %p469 = scmp.eq.s32.totalorder %s30, 0
    %p470 = por %p468, %p469
    %p471 = scmp.ne.s32.totalorder %s463, %s465
    %p472 = scmp.eq.s32.totalorder %s35, 1
    %p473 = por %p471, %p472
    %p474 = scmp.ne.s32.totalorder %s465, %s466
    %p475 = scmp.eq.s32.totalorder %s35, 0
    %p476 = por %p474, %p475
    %p477 = scmp.ne.s32.totalorder %s465, %s466
    %p478 = scmp.eq.s32.totalorder %s36, 1
    %p479 = por %p477, %p478
    %p481 = scmp.ne.s32.totalorder %s466, %s480
    %p482 = scmp.eq.s32.totalorder %s36, 0
    %p483 = por %p481, %p482
    %s485 = sadd.s32 %s484, 1
    %p488 = scmp.eq.s32.totalorder %s30, 1
    %p489 = scmp.ne.s32.totalorder %s484, %s486
    %p490 = scmp.eq.s32.totalorder %s30, 0
    %p491 = por %p489, %p490
    %p492 = scmp.ne.s32.totalorder %s484, %s486
    %p493 = scmp.eq.s32.totalorder %s35, 1
    %p494 = por %p492, %p493
    %p495 = scmp.ne.s32.totalorder %s486, %s487
    %p496 = scmp.eq.s32.totalorder %s35, 0
    %p497 = por %p495, %p496
    %p498 = scmp.ne.s32.totalorder %s486, %s487
    %p499 = scmp.eq.s32.totalorder %s36, 1
    %p500 = por %p498, %p499
    %p502 = scmp.ne.s32.totalorder %s487, %s501
    %p503 = scmp.eq.s32.totalorder %s36, 0
    %p504 = por %p502, %p503
    %s506 = sadd.s32 %s505, 1
    %p509 = scmp.eq.s32.totalorder %s30, 1
    %p510 = scmp.ne.s32.totalorder %s505, %s507
    %p511 = scmp.eq.s32.totalorder %s30, 0
    %p512 = por %p510, %p511
    %p513 = scmp.ne.s32.totalorder %s505, %s507
    %p514 = scmp.eq.s32.totalorder %s35, 1
    %p515 = por %p513, %p514
    %p516 = scmp.ne.s32.totalorder %s507, %s508
    %p517 = scmp.eq.s32.totalorder %s35, 0
    %p518 = por %p516, %p517
    %p519 = scmp.ne.s32.totalorder %s507, %s508
    %p520 = scmp.eq.s32.totalorder %s36, 1
    %p521 = por %p519, %p520
    %p523 = scmp.ne.s32.totalorder %s508, %s522
    %p524 = scmp.eq.s32.totalorder %s36, 0
    %p525 = por %p523, %p524
    %s527 = sadd.s32 %s526, 1
    %p530 = scmp.eq.s32.totalorder %s30, 1
    %p531 = scmp.ne.s32.totalorder %s526, %s528
    %p532 = scmp.eq.s32.totalorder %s30, 0
    %p533 = por %p531, %p532
    %p534 = scmp.ne.s32.totalorder %s526, %s528
    %p535 = scmp.eq.s32.totalorder %s35, 1
    %p536 = por %p534, %p535
    %p537 = scmp.ne.s32.totalorder %s528, %s529
    %p538 = scmp.eq.s32.totalorder %s35, 0
    %p539 = por %p537, %p538
    %p540 = scmp.ne.s32.totalorder %s528, %s529
    %p541 = scmp.eq.s32.totalorder %s36, 1
    %p542 = por %p540, %p541
    %p544 = scmp.ne.s32.totalorder %s529, %s543
    %p545 = scmp.eq.s32.totalorder %s36, 0
    %p546 = por %p544, %p545
    %s547 = ssub.s32 %s30, %s37
    %p548 = scmp.eq.s32.totalorder %s547, 0
    %s550 = sadd.s32 %s549, 1
    %s551 = scalar_select %p548, %s549, %s550
    %p554 = pneg %p548
    %p555 = scmp.eq.s32.totalorder %s30, 1
    %p556 = por %p554, %p555
    %p557 = scmp.ne.s32.totalorder %s549, %s552
    %p558 = scmp.eq.s32.totalorder %s30, 0
    %p559 = por %p557, %p558
    %p560 = scmp.ne.s32.totalorder %s549, %s552
    %p561 = scmp.eq.s32.totalorder %s35, 1
    %p562 = por %p560, %p561
    %p563 = scmp.ne.s32.totalorder %s552, %s553
    %p564 = scmp.eq.s32.totalorder %s35, 0
    %p565 = por %p563, %p564
    %p566 = scmp.ne.s32.totalorder %s552, %s553
    %p567 = scmp.eq.s32.totalorder %s36, 1
    %p568 = por %p566, %p567
    %p570 = scmp.ne.s32.totalorder %s553, %s569
    %p571 = scmp.eq.s32.totalorder %s36, 0
    %p572 = por %p570, %p571
    %p573 = scmp.le.s32.totalorder 1, %s30
    %p574 = scmp.lt.s32.totalorder %s30, 3
    %p575 = pnand %p573, %p574
    %p576 = pneg %p575
    // Predicated region
    $region9: #{_lambda_.1} parent=5 // pred_check
      _
    $region10: #{_lambda_.1} parent=5 // pred_check_branch
      %578 = sbr.rel (%p575) target = $region12
    $region11: #{_lambda_.1} parent=5 // pred_region
      %s579 = ssub.s32 %s30, 1
      // Predicated region
      $region13: #{_lambda_.1} parent=11 // pred_check
        %p580 = pneg %p77
      $region14: #{_lambda_.1} parent=11 // pred_check_branch
        %582 = sbr.rel (%p580) target = $region16
      $region15: #{_lambda_.1} parent=11 // pred_region
        _
      $region16: #{_lambda_.1} parent=11 // pred_fallthru
        _
      // Predicated region
      $region17: #{_lambda_.1} parent=11 // pred_check
        %p583 = pneg %p98
      $region18: #{_lambda_.1} parent=11 // pred_check_branch
        %585 = sbr.rel (%p583) target = $region20
      $region19: #{_lambda_.1} parent=11 // pred_region
        _
      $region20: #{_lambda_.1} parent=11 // pred_fallthru
        _
      // Predicated region
      $region21: #{_lambda_.1} parent=11 // pred_check
        %p586 = pneg %p119
      $region22: #{_lambda_.1} parent=11 // pred_check_branch
        %588 = sbr.rel (%p586) target = $region24
      $region23: #{_lambda_.1} parent=11 // pred_region
        _
      $region24: #{_lambda_.1} parent=11 // pred_fallthru
        _
      // Predicated region
      $region25: #{_lambda_.1} parent=11 // pred_check
        %p589 = pneg %p140
      $region26: #{_lambda_.1} parent=11 // pred_check_branch
        %591 = sbr.rel (%p589) target = $region28
      $region27: #{_lambda_.1} parent=11 // pred_region
        _
      $region28: #{_lambda_.1} parent=11 // pred_fallthru
        _
      // Predicated region
      $region29: #{_lambda_.1} parent=11 // pred_check
        %p592 = pneg %p161
      $region30: #{_lambda_.1} parent=11 // pred_check_branch
        %594 = sbr.rel (%p592) target = $region32
      $region31: #{_lambda_.1} parent=11 // pred_region
        _
      $region32: #{_lambda_.1} parent=11 // pred_fallthru
        _
      // Predicated region
      $region33: #{_lambda_.1} parent=11 // pred_check
        %p595 = pneg %p182
      $region34: #{_lambda_.1} parent=11 // pred_check_branch
        %597 = sbr.rel (%p595) target = $region36
      $region35: #{_lambda_.1} parent=11 // pred_region
        _
      $region36: #{_lambda_.1} parent=11 // pred_fallthru
        _
      // Predicated region
      $region37: #{_lambda_.1} parent=11 // pred_check
        %p598 = pneg %p203
      $region38: #{_lambda_.1} parent=11 // pred_check_branch
        %600 = sbr.rel (%p598) target = $region40
      $region39: #{_lambda_.1} parent=11 // pred_region
        _
      $region40: #{_lambda_.1} parent=11 // pred_fallthru
        _
      // Predicated region
      $region41: #{_lambda_.1} parent=11 // pred_check
        %p601 = pneg %p224
      $region42: #{_lambda_.1} parent=11 // pred_check_branch
        %603 = sbr.rel (%p601) target = $region44
      $region43: #{_lambda_.1} parent=11 // pred_region
        _
      $region44: #{_lambda_.1} parent=11 // pred_fallthru
        _
      // Predicated region
      $region45: #{_lambda_.1} parent=11 // pred_check
        %p604 = pneg %p245
      $region46: #{_lambda_.1} parent=11 // pred_check_branch
        %606 = sbr.rel (%p604) target = $region48
      $region47: #{_lambda_.1} parent=11 // pred_region
        _
      $region48: #{_lambda_.1} parent=11 // pred_fallthru
        _
      // Predicated region
      $region49: #{_lambda_.1} parent=11 // pred_check
        %p607 = pneg %p266
      $region50: #{_lambda_.1} parent=11 // pred_check_branch
        %609 = sbr.rel (%p607) target = $region52
      $region51: #{_lambda_.1} parent=11 // pred_region
        _
      $region52: #{_lambda_.1} parent=11 // pred_fallthru
        _
      // Predicated region
      $region53: #{_lambda_.1} parent=11 // pred_check
        %p610 = pneg %p287
      $region54: #{_lambda_.1} parent=11 // pred_check_branch
        %612 = sbr.rel (%p610) target = $region56
      $region55: #{_lambda_.1} parent=11 // pred_region
        _
      $region56: #{_lambda_.1} parent=11 // pred_fallthru
        _
      // Predicated region
      $region57: #{_lambda_.1} parent=11 // pred_check
        %p613 = pneg %p308
      $region58: #{_lambda_.1} parent=11 // pred_check_branch
        %615 = sbr.rel (%p613) target = $region60
      $region59: #{_lambda_.1} parent=11 // pred_region
        _
      $region60: #{_lambda_.1} parent=11 // pred_fallthru
        _
      // Predicated region
      $region61: #{_lambda_.1} parent=11 // pred_check
        %p616 = pneg %p329
      $region62: #{_lambda_.1} parent=11 // pred_check_branch
        %618 = sbr.rel (%p616) target = $region64
      $region63: #{_lambda_.1} parent=11 // pred_region
        _
      $region64: #{_lambda_.1} parent=11 // pred_fallthru
        _
      // Predicated region
      $region65: #{_lambda_.1} parent=11 // pred_check
        %p619 = pneg %p350
      $region66: #{_lambda_.1} parent=11 // pred_check_branch
        %621 = sbr.rel (%p619) target = $region68
      $region67: #{_lambda_.1} parent=11 // pred_region
        _
      $region68: #{_lambda_.1} parent=11 // pred_fallthru
        _
      // Predicated region
      $region69: #{_lambda_.1} parent=11 // pred_check
        %p622 = pneg %p371
      $region70: #{_lambda_.1} parent=11 // pred_check_branch
        %624 = sbr.rel (%p622) target = $region72
      $region71: #{_lambda_.1} parent=11 // pred_region
        _
      $region72: #{_lambda_.1} parent=11 // pred_fallthru
        _
      // Predicated region
      $region73: #{_lambda_.1} parent=11 // pred_check
        %p625 = pneg %p392
      $region74: #{_lambda_.1} parent=11 // pred_check_branch
        %627 = sbr.rel (%p625) target = $region76
      $region75: #{_lambda_.1} parent=11 // pred_region
        _
      $region76: #{_lambda_.1} parent=11 // pred_fallthru
        _
      // Predicated region
      $region77: #{_lambda_.1} parent=11 // pred_check
        %p628 = pneg %p413
      $region78: #{_lambda_.1} parent=11 // pred_check_branch
        %630 = sbr.rel (%p628) target = $region80
      $region79: #{_lambda_.1} parent=11 // pred_region
        _
      $region80: #{_lambda_.1} parent=11 // pred_fallthru
        _
      // Predicated region
      $region81: #{_lambda_.1} parent=11 // pred_check
        %p631 = pneg %p434
      $region82: #{_lambda_.1} parent=11 // pred_check_branch
        %633 = sbr.rel (%p631) target = $region84
      $region83: #{_lambda_.1} parent=11 // pred_region
        _
      $region84: #{_lambda_.1} parent=11 // pred_fallthru
        _
      // Predicated region
      $region85: #{_lambda_.1} parent=11 // pred_check
        %p634 = pneg %p455
      $region86: #{_lambda_.1} parent=11 // pred_check_branch
        %636 = sbr.rel (%p634) target = $region88
      $region87: #{_lambda_.1} parent=11 // pred_region
        _
      $region88: #{_lambda_.1} parent=11 // pred_fallthru
        _
      // Predicated region
      $region89: #{_lambda_.1} parent=11 // pred_check
        %p637 = pneg %p476
      $region90: #{_lambda_.1} parent=11 // pred_check_branch
        %639 = sbr.rel (%p637) target = $region92
      $region91: #{_lambda_.1} parent=11 // pred_region
        _
      $region92: #{_lambda_.1} parent=11 // pred_fallthru
        _
      // Predicated region
      $region93: #{_lambda_.1} parent=11 // pred_check
        %p640 = pneg %p497
      $region94: #{_lambda_.1} parent=11 // pred_check_branch
        %642 = sbr.rel (%p640) target = $region96
      $region95: #{_lambda_.1} parent=11 // pred_region
        _
      $region96: #{_lambda_.1} parent=11 // pred_fallthru
        _
      // Predicated region
      $region97: #{_lambda_.1} parent=11 // pred_check
        %p643 = pneg %p518
      $region98: #{_lambda_.1} parent=11 // pred_check_branch
        %645 = sbr.rel (%p643) target = $region100
      $region99: #{_lambda_.1} parent=11 // pred_region
        _
      $region100: #{_lambda_.1} parent=11 // pred_fallthru
        _
      // Predicated region
      $region101: #{_lambda_.1} parent=11 // pred_check
        %p646 = pneg %p539
      $region102: #{_lambda_.1} parent=11 // pred_check_branch
        %648 = sbr.rel (%p646) target = $region104
      $region103: #{_lambda_.1} parent=11 // pred_region
        _
      $region104: #{_lambda_.1} parent=11 // pred_fallthru
        _
    $region12: #{_lambda_.1} parent=5 // pred_fallthru
      _
    %p649 = scmp.lt.s32.totalorder %s30, 2
    // Predicated region
    $region105: #{_lambda_.1} parent=5 // pred_check
      %p650 = pneg %p649
    $region106: #{_lambda_.1} parent=5 // pred_check_branch
      %652 = sbr.rel (%p650) target = $region108
    $region107: #{_lambda_.1} parent=5 // pred_region
      // Predicated region
      $region109: #{_lambda_.1} parent=107 // pred_check
        %p653 = pneg %p50
      $region110: #{_lambda_.1} parent=107 // pred_check_branch
        %655 = sbr.rel (%p653) target = $region112
      $region111: #{_lambda_.1} parent=107 // pred_region
        %p656 = scmp.lt.s32.totalorder %s30, 1
        %s657 = scalar_select %p656, %s30, 1
        %s658 = smul.addr %s657, 2
        %s659 = scalar_lea.vmem %s0, %s658
      $region112: #{_lambda_.1} parent=107 // pred_fallthru
        _
    $region108: #{_lambda_.1} parent=5 // pred_fallthru
      _
    %p660 = scmp.le.s32.totalorder 1, %s30
    %p661 = scmp.lt.s32.totalorder %s30, 3
    %p662 = pnand %p660, %p661
    %p663 = pneg %p662
    // Predicated region
    $region113: #{_lambda_.1} parent=5 // pred_check
      _
    $region114: #{_lambda_.1} parent=5 // pred_check_branch
      %665 = sbr.rel (%p662) target = $region116
    $region115: #{_lambda_.1} parent=5 // pred_region
      %s666 = ssub.s32 %s30, 1
      %p667 = scmp.lt.s32.totalorder %s35, 1
      %s668 = scalar_select %p667, %s35, 1
      %s669 = smul.addr %s668, 2
      %s670 = scalar_lea.vmem %s0, %s669
      %p671 = pneg %p56
      %p672 = pneg %p53
      %p673 = pneg %p77
      %p674 = pneg %p74
      %p675 = pneg %p98
      %p676 = pneg %p95
      %p677 = pneg %p119
      %p678 = pneg %p116
      %p679 = pneg %p140
      %p680 = pneg %p137
      %p681 = pneg %p161
      %p682 = pneg %p158
      %p683 = pneg %p182
      %p684 = pneg %p179
      %p685 = pneg %p203
      %p686 = pneg %p200
      %p687 = pneg %p224
      %p688 = pneg %p221
      %p689 = pneg %p245
      %p690 = pneg %p242
      %p691 = pneg %p266
      %p692 = pneg %p263
      %p693 = pneg %p287
      %p694 = pneg %p284
      %p695 = pneg %p308
      %p696 = pneg %p305
      %p697 = pneg %p329
      %p698 = pneg %p326
      %p699 = pneg %p350
      %p700 = pneg %p347
      %p701 = pneg %p371
      %p702 = pneg %p368
      %p703 = pneg %p392
      %p704 = pneg %p389
      %p705 = pneg %p413
      %p706 = pneg %p410
      %p707 = pneg %p434
      %p708 = pneg %p431
      %p709 = pneg %p455
      %p710 = pneg %p452
      %p711 = pneg %p476
      %p712 = pneg %p473
      %p713 = pneg %p497
      %p714 = pneg %p494
      %p715 = pneg %p518
      %p716 = pneg %p515
      %p717 = pneg %p539
      %p718 = pneg %p536
      %p719 = pneg %p565
      %p720 = pneg %p562
      %p721 = scmp.lt.s32.totalorder %s35, 1
      %s722 = scalar_select %p721, %s35, 1
      %s723 = smul.addr %s722, 2
      %s724 = scalar_lea.vmem %s24, %s723
      %p725 = scmp.lt.s32.totalorder %s35, 1
      %s726 = scalar_select %p725, %s35, 1
      %s727 = smul.addr %s726, 2
      %s728 = scalar_lea.vmem %s0, %s727
      %p729 = scmp.lt.s32.totalorder %s35, 1
      %s730 = scalar_select %p729, %s35, 1
      %s731 = smul.addr %s730, 2
      %s732 = scalar_lea.vmem %s24, %s731
      %733 = vst [vmem:[#allocation2] sm:$0xff] 0.0
      %734 = vst [vmem:[#allocation2 + $0x8] sm:$0xff] 0.0
      %vm735 = vcmask 277504
      %736 = vst.msk [vmem:[#allocation2 + $0x10] sm:$0xff] %vm735, 0.0
      %737 = vst [vmem:[#allocation2 + $0x18] sm:$0xff] 0.0
      %738 = vst [vmem:[#allocation2 + $0x20] sm:$0xff] 0.0
      %739 = vst.msk [vmem:[#allocation2 + $0x28] sm:$0xff] %vm735, 0.0
      %740 = vst [vmem:[#allocation2 + $0x30] sm:$0xff] 0.0
      %741 = vst [vmem:[#allocation2 + $0x38] sm:$0xff] 0.0
      %742 = vst.msk [vmem:[#allocation2 + $0x40] sm:$0xff] %vm735, 0.0
      %743 = vst [vmem:[#allocation2 + $0x48] sm:$0xff] 0.0
      %744 = vst [vmem:[#allocation2 + $0x50] sm:$0xff] 0.0
      %745 = vst.msk [vmem:[#allocation2 + $0x58] sm:$0xff] %vm735, 0.0
      %v746 = vld [vmem:[%s728] sm:$0x3]
      %748 = vrot.lane.b32.xlu0 %v746, 17
      %v749 = vpop.permute.xlu0 %748
      %v750 = vrot.slane %v749, 7
      %vm751 = vcmask 138240
      %v752 = vsel %vm751, %v750, %v749
      %v754 = vlaneseq
      %vm755 = vcmp.ge.s32.totalorder %v754, 17
      %vm756 = vcmp.lt.s32.totalorder %v754, 273
      %vm757 = vmand %vm755, %vm756
      %758 = vst.msk [vmem:[#allocation2] ss:$8 sm:$0x7] %vm757, %v752
      %759 = vst.msk [vmem:[#allocation2] ss:$8 sm:$0x0] %vm757, %v752
      %v760 = vlaneseq
      %v761 = vand.u32 %v760, 127
      %v762 = vadd.s32 %v761, 128
      %v763 = vand.u32 %v761, 15
      %v764 = vand.u32 %v762, 15
      %vm765 = vcmp.ge.s32.totalorder %v763, 1
      %vm766 = vcmp.ge.s32.totalorder %v764, 1
      %vm767 = vcmp.le.s32.totalorder %v763, 14
      %vm768 = vcmp.le.s32.totalorder %v764, 14
      %v769 = vld [vmem:[#allocation2] ss:$8 sm:$0x3]
      %v771 = vlaneseq
      %v772 = vshrl.u32 %v771, 7
      %v773 = vsub.s32 0, %v772
      %v774 = vrot.slane %v769, %v773
      %v775 = vlaneseq
      %v776 = vshrl.u32 %v775, 7
      %v777 = vsub.s32 1, %v776
      %v778 = vrot.slane %v769, %v777
      %v781 = vsel %vm765, %v774, 0.0
      %v782 = vsel %vm766, %v778, 0.0
      %v785 = vcombine.low %v781, %v782
      %v787 = vunpack.c.l.s4 1966171168
      %v788 = vunpack.c.0.s8 %v787
      %v789 = vlaneseq
      %v790 = vshrl.u32 %v789, 7
      %v791 = vsub.s32 %v788, %v790
      %v792 = vrot.slane %v785, %v791
      %v794 = vunpack.c.l.s4 1966171168
      %v795 = vunpack.c.0.s8 %v794
      %v796 = vlaneseq
      %v797 = vshrl.u32 %v796, 7
      %v798 = vsub.s32 %v795, %v797
      %v799 = vrot.slane %v792, %v798
      %vm801 = vcmp.ge.s32.totalorder %v754, 0
      %vm802 = vcmp.lt.s32.totalorder %v754, 256
      %vm803 = vmand %vm801, %vm802
      %804 = vst.msk [vmem:[#allocation3] ss:$8 sm:$0x3] %vm803, %v799
      %805 = vst.msk [vmem:[#allocation3] ss:$8 sm:$0x0] %vm803, %v799
      %v806 = vld [vmem:[#allocation2] ss:$8 sm:$0x7]
      %808 = vrot.lane.b32.xlu0 %v806, 127
      %v809 = vpop.permute.xlu0 %808
      %v810 = vrot.slane %v809, 1
      %vm811 = vcmask 1039360
      %v812 = vsel %vm811, %v809, %v810
      %s814 = scalar_lea.vmem [#allocation3], 1
      %815 = vst.msk [vmem:[%s814] ss:$8 sm:$0x3] %vm803, %v812
      %816 = vst.msk [vmem:[%s814] ss:$8 sm:$0x0] %vm803, %v812
      %v817 = vld [vmem:[#allocation2] ss:$8 sm:$0x7]
      %v819 = vlaneseq
      %v820 = vshrl.u32 %v819, 7
      %v821 = vsub.s32 0, %v820
      %v822 = vrot.slane %v817, %v821
      %v823 = vlaneseq
      %v824 = vshrl.u32 %v823, 7
      %v825 = vsub.s32 1, %v824
      %v826 = vrot.slane %v817, %v825
      %v827 = vlaneseq
      %v828 = vshrl.u32 %v827, 7
      %v829 = vsub.s32 2, %v828
      %v830 = vrot.slane %v817, %v829
      %831 = vrot.lane.b32.xlu0 %v822, 126
      %v832 = vpop.permute.xlu0 %831
      %833 = vrot.lane.b32.xlu0 %v826, 126
      %v834 = vpop.permute.xlu0 %833
      %835 = vrot.lane.b32.xlu0 %v830, 126
      %v836 = vpop.permute.xlu0 %835
      %vm837 = vcmask 1031168
      %v838 = vsel %vm837, %v832, %v834
      %v839 = vsel %vm837, %v834, %v836
      %v842 = vsel %vm767, %v838, 0.0
      %v843 = vsel %vm768, %v839, 0.0
      %v846 = vcombine.low %v842, %v843
      %v848 = vunpack.c.l.s4 1966171168
      %v849 = vunpack.c.0.s8 %v848
      %v850 = vlaneseq
      %v851 = vshrl.u32 %v850, 7
      %v852 = vsub.s32 %v849, %v851
      %v853 = vrot.slane %v846, %v852
      %v855 = vunpack.c.l.s4 1966171168
      %v856 = vunpack.c.0.s8 %v855
      %v857 = vlaneseq
      %v858 = vshrl.u32 %v857, 7
      %v859 = vsub.s32 %v856, %v858
      %v860 = vrot.slane %v853, %v859
      %s862 = scalar_lea.vmem [#allocation3], 2
      %863 = vst.msk [vmem:[%s862] ss:$8 sm:$0x3] %vm803, %v860
      %864 = vst.msk [vmem:[%s862] ss:$8 sm:$0x0] %vm803, %v860
      %v865 = vld [vmem:[#allocation2] ss:$8 sm:$0x7]
      %v867 = vlaneseq
      %v868 = vshrl.u32 %v867, 7
      %v869 = vsub.s32 0, %v868
      %v870 = vrot.slane %v865, %v869
      %v871 = vlaneseq
      %v872 = vshrl.u32 %v871, 7
      %v873 = vsub.s32 1, %v872
      %v874 = vrot.slane %v865, %v873
      %v875 = vlaneseq
      %v876 = vshrl.u32 %v875, 7
      %v877 = vsub.s32 2, %v876
      %v878 = vrot.slane %v865, %v877
      %879 = vrot.lane.b32.xlu0 %v870, 112
      %v880 = vpop.permute.xlu0 %879
      %881 = vrot.lane.b32.xlu0 %v874, 112
      %v882 = vpop.permute.xlu0 %881
      %883 = vrot.lane.b32.xlu0 %v878, 112
      %v884 = vpop.permute.xlu0 %883
      %vm885 = vcmask 916480
      %v886 = vsel %vm885, %v880, %v882
      %v887 = vsel %vm885, %v882, %v884
      %v890 = vsel %vm765, %v886, 0.0
      %v891 = vsel %vm766, %v887, 0.0
      %v894 = vcombine.low %v890, %v891
      %v896 = vunpack.c.l.s4 1966171168
      %v897 = vunpack.c.0.s8 %v896
      %v898 = vlaneseq
      %v899 = vshrl.u32 %v898, 7
      %v900 = vsub.s32 %v897, %v899
      %v901 = vrot.slane %v894, %v900
      %v903 = vunpack.c.l.s4 1966171168
      %v904 = vunpack.c.0.s8 %v903
      %v905 = vlaneseq
      %v906 = vshrl.u32 %v905, 7
      %v907 = vsub.s32 %v904, %v906
      %v908 = vrot.slane %v901, %v907
      %s910 = scalar_lea.vmem [#allocation3], 3
      %911 = vst.msk [vmem:[%s910] ss:$8 sm:$0x3] %vm803, %v908
      %912 = vst.msk [vmem:[%s910] ss:$8 sm:$0x0] %vm803, %v908
      %v913 = vld [vmem:[#allocation2] ss:$8 sm:$0x7]
      %915 = vrot.lane.b32.xlu0 %v913, 111
      %v916 = vpop.permute.xlu0 %915
      %v917 = vrot.slane %v916, 1
      %vm918 = vcmask 908288
      %v919 = vsel %vm918, %v916, %v917
      %s921 = scalar_lea.vmem [#allocation3], 4
      %922 = vst.msk [vmem:[%s921] ss:$8 sm:$0x3] %vm803, %v919
      %923 = vst.msk [vmem:[%s921] ss:$8 sm:$0x0] %vm803, %v919
      %v924 = vld [vmem:[#allocation2] ss:$8 sm:$0x7]
      %v926 = vlaneseq
      %v927 = vshrl.u32 %v926, 7
      %v928 = vsub.s32 0, %v927
      %v929 = vrot.slane %v924, %v928
      %v930 = vlaneseq
      %v931 = vshrl.u32 %v930, 7
      %v932 = vsub.s32 1, %v931
      %v933 = vrot.slane %v924, %v932
      %v934 = vlaneseq
      %v935 = vshrl.u32 %v934, 7
      %v936 = vsub.s32 2, %v935
      %v937 = vrot.slane %v924, %v936
      %938 = vrot.lane.b32.xlu0 %v929, 110
      %v939 = vpop.permute.xlu0 %938
      %940 = vrot.lane.b32.xlu0 %v933, 110
      %v941 = vpop.permute.xlu0 %940
      %942 = vrot.lane.b32.xlu0 %v937, 110
      %v943 = vpop.permute.xlu0 %942
      %vm944 = vcmask 900096
      %v945 = vsel %vm944, %v939, %v941
      %v946 = vsel %vm944, %v941, %v943
      %v949 = vsel %vm767, %v945, 0.0
      %v950 = vsel %vm768, %v946, 0.0
      %v953 = vcombine.low %v949, %v950
      %v955 = vunpack.c.l.s4 1966171168
      %v956 = vunpack.c.0.s8 %v955
      %v957 = vlaneseq
      %v958 = vshrl.u32 %v957, 7
      %v959 = vsub.s32 %v956, %v958
      %v960 = vrot.slane %v953, %v959
      %v962 = vunpack.c.l.s4 1966171168
      %v963 = vunpack.c.0.s8 %v962
      %v964 = vlaneseq
      %v965 = vshrl.u32 %v964, 7
      %v966 = vsub.s32 %v963, %v965
      %v967 = vrot.slane %v960, %v966
      %s969 = scalar_lea.vmem [#allocation3], 5
      %970 = vst.msk [vmem:[%s969] ss:$8 sm:$0x3] %vm803, %v967
      %971 = vst.msk [vmem:[%s969] ss:$8 sm:$0x0] %vm803, %v967
      %v972 = vld [vmem:[#allocation2] ss:$8 sm:$0x7]
      %v974 = vlaneseq
      %v975 = vshrl.u32 %v974, 7
      %v976 = vsub.s32 0, %v975
      %v977 = vrot.slane %v972, %v976
      %v978 = vlaneseq
      %v979 = vshrl.u32 %v978, 7
      %v980 = vsub.s32 1, %v979
      %v981 = vrot.slane %v972, %v980
      %v982 = vlaneseq
      %v983 = vshrl.u32 %v982, 7
      %v984 = vsub.s32 2, %v983
      %v985 = vrot.slane %v972, %v984
      %986 = vrot.lane.b32.xlu0 %v977, 96
      %v987 = vpop.permute.xlu0 %986
      %988 = vrot.lane.b32.xlu0 %v981, 96
      %v989 = vpop.permute.xlu0 %988
      %990 = vrot.lane.b32.xlu0 %v985, 96
      %v991 = vpop.permute.xlu0 %990
      %vm992 = vcmask 785408
      %v993 = vsel %vm992, %v987, %v989
      %v994 = vsel %vm992, %v989, %v991
      %v997 = vsel %vm765, %v993, 0.0
      %v998 = vsel %vm766, %v994, 0.0
      %v1001 = vcombine.low %v997, %v998
      %v1003 = vunpack.c.l.s4 1966171168
      %v1004 = vunpack.c.0.s8 %v1003
      %v1005 = vlaneseq
      %v1006 = vshrl.u32 %v1005, 7
      %v1007 = vsub.s32 %v1004, %v1006
      %v1008 = vrot.slane %v1001, %v1007
      %v1010 = vunpack.c.l.s4 1966171168
      %v1011 = vunpack.c.0.s8 %v1010
      %v1012 = vlaneseq
      %v1013 = vshrl.u32 %v1012, 7
      %v1014 = vsub.s32 %v1011, %v1013
      %v1015 = vrot.slane %v1008, %v1014
      %s1017 = scalar_lea.vmem [#allocation3], 6
      %1018 = vst.msk [vmem:[%s1017] ss:$8 sm:$0x3] %vm803, %v1015
      %1019 = vst.msk [vmem:[%s1017] ss:$8 sm:$0x0] %vm803, %v1015
      %v1020 = vld [vmem:[#allocation2] ss:$8 sm:$0x7]
      %1022 = vrot.lane.b32.xlu0 %v1020, 95
      %v1023 = vpop.permute.xlu0 %1022
      %v1024 = vrot.slane %v1023, 1
      %vm1025 = vcmask 777216
      %v1026 = vsel %vm1025, %v1023, %v1024
      %s1028 = scalar_lea.vmem [#allocation3], 7
      %1029 = vst.msk [vmem:[%s1028] ss:$8 sm:$0x3] %vm803, %v1026
      %1030 = vst.msk [vmem:[%s1028] ss:$8 sm:$0x0] %vm803, %v1026
      %v1031 = vld [vmem:[#allocation2] ss:$8 sm:$0x7]
      %v1033 = vlaneseq
      %v1034 = vshrl.u32 %v1033, 7
      %v1035 = vsub.s32 0, %v1034
      %v1036 = vrot.slane %v1031, %v1035
      %v1037 = vlaneseq
      %v1038 = vshrl.u32 %v1037, 7
      %v1039 = vsub.s32 1, %v1038
      %v1040 = vrot.slane %v1031, %v1039
      %v1041 = vlaneseq
      %v1042 = vshrl.u32 %v1041, 7
      %v1043 = vsub.s32 2, %v1042
      %v1044 = vrot.slane %v1031, %v1043
      %1045 = vrot.lane.b32.xlu0 %v1036, 94
      %v1046 = vpop.permute.xlu0 %1045
      %1047 = vrot.lane.b32.xlu0 %v1040, 94
      %v1048 = vpop.permute.xlu0 %1047
      %1049 = vrot.lane.b32.xlu0 %v1044, 94
      %v1050 = vpop.permute.xlu0 %1049
      %vm1051 = vcmask 769024
      %v1052 = vsel %vm1051, %v1046, %v1048
      %v1053 = vsel %vm1051, %v1048, %v1050
      %v1056 = vsel %vm767, %v1052, 0.0
      %v1057 = vsel %vm768, %v1053, 0.0
      %v1060 = vcombine.low %v1056, %v1057
      %v1062 = vunpack.c.l.s4 1966171168
      %v1063 = vunpack.c.0.s8 %v1062
      %v1064 = vlaneseq
      %v1065 = vshrl.u32 %v1064, 7
      %v1066 = vsub.s32 %v1063, %v1065
      %v1067 = vrot.slane %v1060, %v1066
      %v1069 = vunpack.c.l.s4 1966171168
      %v1070 = vunpack.c.0.s8 %v1069
      %v1071 = vlaneseq
      %v1072 = vshrl.u32 %v1071, 7
      %v1073 = vsub.s32 %v1070, %v1072
      %v1074 = vrot.slane %v1067, %v1073
      %s1076 = scalar_lea.vmem [#allocation3], 16
      %1077 = vst.msk [vmem:[%s1076] ss:$8 sm:$0x3] %vm803, %v1074
      %1078 = vst.msk [vmem:[%s1076] ss:$8 sm:$0x0] %vm803, %v1074
      %v1079 = vld [vmem:[%s1] sm:$0xf]
      %v1080 = vld [vmem:[#allocation3] sm:$0xff]
      %v1081 = vld [vmem:[#allocation3 + $0x8] sm:$0xff]
      %v1082 = vld [vmem:[#allocation3 + $0x10] sm:$0x1]
      %v1083 = vld [vmem:[#allocation3 + $0x18] sm:$0x1]
      %vm1084 = vcmask 72704
      %v1086 = vsel %vm1084, %v1079, 0
      %vm1088 = vcmask 1040384
      %v1090 = vsel %vm1088, %v1082, 0
      %v1093 = vsel %vm1088, %v1083, 0
      %1095 = vmatprep.subr.mxu0 %v1081
      %1096 = vmatpush1.msra.mxu0 %v1080
      %1097 = vmatprep.subr.mxu0 %v1093
      %1098 = vmatpush1.msra.mxu0 %v1090
      %1099 = vmatprep.subr.mxu0 0.0
      %1100 = vmatpush1.msra.mxu0 0.0
      %1101 = vmatprep.subr.mxu0 0.0
      %1102 = vmatpush1.msra.mxu0 0.0
      %1103 = vmatprep.subr.mxu0 0.0
      %1104 = vmatpush1.msra.mxu0 0.0
      %1105 = vmatprep.subr.mxu0 0.0
      %1106 = vmatpush1.msra.mxu0 0.0
      %1107 = vmatprep.subr.mxu0 0.0
      %1108 = vmatpush1.msra.mxu0 0.0
      %1109 = vmatprep.subr.mxu0 0.0
      %1110 = vmatpush1.msra.mxu0 0.0
      %1111 = vmatprep.subr.mxu0 0.0
      %1112 = vmatpush1.msra.mxu0 0.0
      %1113 = vmatprep.subr.mxu0 0.0
      %1114 = vmatpush1.msra.mxu0 0.0
      %1115 = vmatprep.subr.mxu0 0.0
      %1116 = vmatpush1.msra.mxu0 0.0
      %1117 = vmatprep.subr.mxu0 0.0
      %1118 = vmatpush1.msra.mxu0 0.0
      %1119 = vmatprep.subr.mxu0 0.0
      %1120 = vmatpush1.msra.mxu0 0.0
      %1121 = vmatprep.subr.mxu0 0.0
      %1122 = vmatpush1.msra.mxu0 0.0
      %1123 = vmatprep.subr.mxu0 0.0
      %1124 = vmatpush1.msra.mxu0 0.0
      %1125 = vmatprep.subr.mxu0 0.0
      %1126 = vmatpush1.msra.mxu0 0.0
      %1127 = vmatprep.subr.mxu0 0.0
      %1128 = vmatpush1.msra.mxu0 0.0
      %1129 = vmatprep.subr.mxu0 0.0
      %1130 = vmatpush1.msra.mxu0 0.0
      %1131 = vmatprep.subr.mxu0 0.0
      %1132 = vmatpush1.msra.mxu0 0.0
      %1133 = vmatprep.subr.mxu0 0.0
      %1134 = vmatpush1.msra.mxu0 0.0
      %1135 = vmatprep.subr.mxu0 0.0
      %1136 = vmatpush1.msra.mxu0 0.0
      %1137 = vmatprep.subr.mxu0 0.0
      %1138 = vmatpush1.msra.mxu0 0.0
      %1139 = vmatprep.subr.mxu0 0.0
      %1140 = vmatpush1.msra.mxu0 0.0
      %1141 = vmatprep.subr.mxu0 0.0
      %1142 = vmatpush1.msra.mxu0 0.0
      %1143 = vmatprep.subr.mxu0 0.0
      %1144 = vmatpush1.msra.mxu0 0.0
      %1145 = vmatprep.subr.mxu0 0.0
      %1146 = vmatpush1.msra.mxu0 0.0
      %1147 = vmatprep.subr.mxu0 0.0
      %1148 = vmatpush1.msra.mxu0 0.0
      %1149 = vmatprep.subr.mxu0 0.0
      %1150 = vmatpush1.msra.mxu0 0.0
      %1151 = vmatprep.subr.mxu0 0.0
      %1152 = vmatpush1.msra.mxu0 0.0
      %1153 = vmatprep.subr.mxu0 0.0
      %1154 = vmatpush1.msra.mxu0 0.0
      %1155 = vmatprep.subr.mxu0 0.0
      %1156 = vmatpush1.msra.mxu0 0.0
      %1157 = vmatprep.subr.mxu0 0.0
      %1158 = vmatpush1.msra.mxu0 0.0
      %1159 = vmatprep.mubr.f32.mxu0 0.0
      %1160 = vmatmul.mubr.f32.gmra.mrb[0].mxu0 %v1086
      %v1161 = vpop.f32.mrb[0].mxu0
      %v1162 = vadd.f32 0.0, %v1161
      %v1163 = vpop.f32.mrb[0].mxu0
      %v1164 = vadd.f32 0.0, %v1163
      %1165 = vdwg.mxu0
      %v1166 = vld [vmem:[%s2] sm:$0xf]
      %1168 = vset.pattern.permute.xlu0 0
      %1169 = vperm.xlu0 %1168, %v1166
      %v1170 = vpop.permute.xlu0 %1169
      %v1172 = vmul.f32 %v1162, %v1170
      %v1173 = vmul.f32 %v1164, %v1170
      %v1174 = vld [vmem:[%s3] sm:$0xf]
      %1176 = vset.pattern.permute.xlu0 0
      %1177 = vperm.xlu0 %1176, %v1174
      %v1178 = vpop.permute.xlu0 %1177
      %v1180 = vadd.f32 %v1172, %v1178
      %v1181 = vadd.f32 %v1173, %v1178
      %v1182 = vmax.f32 %v1180, 0.0
      %v1183 = vmax.f32 %v1181, 0.0
      %1186 = vrot.lane.b32.xlu0 %v1182, 17
      %v1187 = vpop.permute.xlu0 %1186
      %1188 = vrot.lane.b32.xlu0 %v1183, 17
      %v1189 = vpop.permute.xlu0 %1188
      %v1190 = vsel %vm751, %v1187, %v1189
      %vm1194 = vcmask 1043592
      %1195 = vst.msk [vmem:[#allocation2] sm:$0xf] %vm1194, %v1187
      %1196 = vst [vmem:[#allocation2 + $0x8] sm:$0xf] %v1190
      %vm1197 = vcmask 134144
      %1198 = vst.msk [vmem:[#allocation2 + $0x10] sm:$0xf] %vm1197, %v1189
      %v1199 = vld [vmem:[#allocation2] sm:$0xf]
      %v1200 = vld [vmem:[#allocation2 + $0x8] sm:$0xf]
      %v1201 = vsel %vm765, 1, 0
      %v1202 = vsel %vm766, 1, 0
      %vm1203 = vcmp.eq.s32.totalorder %v1201, 1
      %vm1204 = vcmp.eq.s32.totalorder %v1202, 1
      %v1205 = vsel %vm1203, %v1199, 0.0
      %v1206 = vsel %vm1204, %v1200, 0.0
      %1207 = vst [vmem:[#allocation3] sm:$0xf] %v1205
      %1208 = vst [vmem:[#allocation3 + $0x8] sm:$0xf] %v1206
      %v1209 = vld [vmem:[#allocation2] sm:$0xf]
      %v1210 = vld [vmem:[#allocation2 + $0x8] sm:$0xf]
      %v1211 = vld [vmem:[#allocation2 + $0x10] sm:$0xf]
      %v1215 = vrot.slane %v1209, 4
      %v1216 = vrot.slane %v1210, 4
      %v1217 = vrot.slane %v1211, 4
      %1218 = vrot.lane.b32.xlu0 %v1215, 127
      %v1219 = vpop.permute.xlu0 %1218
      %1220 = vrot.lane.b32.xlu0 %v1216, 127
      %v1221 = vpop.permute.xlu0 %1220
      %1222 = vrot.lane.b32.xlu0 %v1217, 127
      %v1223 = vpop.permute.xlu0 %1222
      %v1224 = vsel %vm811, %v1219, %v1221
      %v1225 = vsel %vm811, %v1221, %v1223
      %1228 = vst [vmem:[#allocation3] sm:$0xf0] %v1224
      %1229 = vst [vmem:[#allocation3 + $0x8] sm:$0xf0] %v1225
      %v1230 = vld [vmem:[#allocation2] sm:$0xf]
      %v1231 = vld [vmem:[#allocation2 + $0x8] sm:$0xf]
      %v1232 = vld [vmem:[#allocation2 + $0x10] sm:$0xf]
      %v1233 = vsel %vm767, 1, 0
      %v1234 = vsel %vm768, 1, 0
      %vm1235 = vcmp.eq.s32.totalorder %v1233, 1
      %vm1236 = vcmp.eq.s32.totalorder %v1234, 1
      %1240 = vrot.lane.b32.xlu0 %v1230, 126
      %v1241 = vpop.permute.xlu0 %1240
      %1242 = vrot.lane.b32.xlu0 %v1231, 126
      %v1243 = vpop.permute.xlu0 %1242
      %1244 = vrot.lane.b32.xlu0 %v1232, 126
      %v1245 = vpop.permute.xlu0 %1244
      %v1246 = vsel %vm837, %v1241, %v1243
      %v1247 = vsel %vm837, %v1243, %v1245
      %v1250 = vsel %vm1235, %v1246, 0.0
      %v1251 = vsel %vm1236, %v1247, 0.0
      %1252 = vst [vmem:[#allocation3 + $0x10] sm:$0xf] %v1250
      %1253 = vst [vmem:[#allocation3 + $0x18] sm:$0xf] %v1251
      %v1254 = vld [vmem:[#allocation2] sm:$0xf]
      %v1255 = vld [vmem:[#allocation2 + $0x8] sm:$0xf]
      %v1256 = vld [vmem:[#allocation2 + $0x10] sm:$0xf]
      %1260 = vrot.lane.b32.xlu0 %v1254, 112
      %v1261 = vpop.permute.xlu0 %1260
      %1262 = vrot.lane.b32.xlu0 %v1255, 112
      %v1263 = vpop.permute.xlu0 %1262
      %1264 = vrot.lane.b32.xlu0 %v1256, 112
      %v1265 = vpop.permute.xlu0 %1264
      %v1266 = vsel %vm885, %v1261, %v1263
      %v1267 = vsel %vm885, %v1263, %v1265
      %v1270 = vsel %vm1203, %v1266, 0.0
      %v1271 = vsel %vm1204, %v1267, 0.0
      %v1274 = vrot.slane %v1270, 4
      %v1275 = vrot.slane %v1271, 4
      %1278 = vst [vmem:[#allocation3 + $0x10] sm:$0xf0] %v1274
      %1279 = vst [vmem:[#allocation3 + $0x18] sm:$0xf0] %v1275
      %v1280 = vld [vmem:[#allocation2] sm:$0xf]
      %v1281 = vld [vmem:[#allocation2 + $0x8] sm:$0xf]
      %v1282 = vld [vmem:[#allocation2 + $0x10] sm:$0xf]
      %1286 = vrot.lane.b32.xlu0 %v1280, 111
      %v1287 = vpop.permute.xlu0 %1286
      %1288 = vrot.lane.b32.xlu0 %v1281, 111
      %v1289 = vpop.permute.xlu0 %1288
      %1290 = vrot.lane.b32.xlu0 %v1282, 111
      %v1291 = vpop.permute.xlu0 %1290
      %v1292 = vsel %vm918, %v1287, %v1289
      %v1293 = vsel %vm918, %v1289, %v1291
      %1296 = vst [vmem:[#allocation3 + $0x20] sm:$0xf] %v1292
      %1297 = vst [vmem:[#allocation3 + $0x28] sm:$0xf] %v1293
      %v1298 = vld [vmem:[#allocation2] sm:$0xf]
      %v1299 = vld [vmem:[#allocation2 + $0x8] sm:$0xf]
      %v1300 = vld [vmem:[#allocation2 + $0x10] sm:$0xf]
      %1304 = vrot.lane.b32.xlu0 %v1298, 110
      %v1305 = vpop.permute.xlu0 %1304
      %1306 = vrot.lane.b32.xlu0 %v1299, 110
      %v1307 = vpop.permute.xlu0 %1306
      %1308 = vrot.lane.b32.xlu0 %v1300, 110
      %v1309 = vpop.permute.xlu0 %1308
      %v1310 = vsel %vm944, %v1305, %v1307
      %v1311 = vsel %vm944, %v1307, %v1309
      %v1314 = vsel %vm1235, %v1310, 0.0
      %v1315 = vsel %vm1236, %v1311, 0.0
      %v1318 = vrot.slane %v1314, 4
      %v1319 = vrot.slane %v1315, 4
      %1322 = vst [vmem:[#allocation3 + $0x20] sm:$0xf0] %v1318
      %1323 = vst [vmem:[#allocation3 + $0x28] sm:$0xf0] %v1319
      %v1324 = vld [vmem:[#allocation2] sm:$0xf]
      %v1325 = vld [vmem:[#allocation2 + $0x8] sm:$0xf]
      %v1326 = vld [vmem:[#allocation2 + $0x10] sm:$0xf]
      %1330 = vrot.lane.b32.xlu0 %v1324, 96
      %v1331 = vpop.permute.xlu0 %1330
      %1332 = vrot.lane.b32.xlu0 %v1325, 96
      %v1333 = vpop.permute.xlu0 %1332
      %1334 = vrot.lane.b32.xlu0 %v1326, 96
      %v1335 = vpop.permute.xlu0 %1334
      %v1336 = vsel %vm992, %v1331, %v1333
      %v1337 = vsel %vm992, %v1333, %v1335
      %v1340 = vsel %vm1203, %v1336, 0.0
      %v1341 = vsel %vm1204, %v1337, 0.0
      %1342 = vst [vmem:[#allocation3 + $0x30] sm:$0xf] %v1340
      %1343 = vst [vmem:[#allocation3 + $0x38] sm:$0xf] %v1341
      %v1344 = vld [vmem:[#allocation2] sm:$0xf]
      %v1345 = vld [vmem:[#allocation2 + $0x8] sm:$0xf]
      %v1346 = vld [vmem:[#allocation2 + $0x10] sm:$0xf]
      %v1350 = vrot.slane %v1344, 4
      %v1351 = vrot.slane %v1345, 4
      %v1352 = vrot.slane %v1346, 4
      %1353 = vrot.lane.b32.xlu0 %v1350, 95
      %v1354 = vpop.permute.xlu0 %1353
      %1355 = vrot.lane.b32.xlu0 %v1351, 95
      %v1356 = vpop.permute.xlu0 %1355
      %1357 = vrot.lane.b32.xlu0 %v1352, 95
      %v1358 = vpop.permute.xlu0 %1357
      %v1359 = vsel %vm1025, %v1354, %v1356
      %v1360 = vsel %vm1025, %v1356, %v1358
      %1363 = vst [vmem:[#allocation3 + $0x30] sm:$0xf0] %v1359
      %1364 = vst [vmem:[#allocation3 + $0x38] sm:$0xf0] %v1360
      %v1365 = vld [vmem:[#allocation2] sm:$0xf]
      %v1366 = vld [vmem:[#allocation2 + $0x8] sm:$0xf]
      %v1367 = vld [vmem:[#allocation2 + $0x10] sm:$0xf]
      %1371 = vrot.lane.b32.xlu0 %v1365, 94
      %v1372 = vpop.permute.xlu0 %1371
      %1373 = vrot.lane.b32.xlu0 %v1366, 94
      %v1374 = vpop.permute.xlu0 %1373
      %1375 = vrot.lane.b32.xlu0 %v1367, 94
      %v1376 = vpop.permute.xlu0 %1375
      %v1377 = vsel %vm1051, %v1372, %v1374
      %v1378 = vsel %vm1051, %v1374, %v1376
      %v1381 = vsel %vm1235, %v1377, 0.0
      %v1382 = vsel %vm1236, %v1378, 0.0
      %1383 = vst [vmem:[#allocation3 + $0x40] sm:$0xf] %v1381
      %1384 = vst [vmem:[#allocation3 + $0x48] sm:$0xf] %v1382
      %v1385 = vld [vmem:[%s4] sm:$0xff]
      %v1386 = vld [vmem:[#allocation3] sm:$0xff]
      %v1387 = vld [vmem:[#allocation3 + $0x8] sm:$0xff]
      %v1388 = vld [vmem:[#allocation3 + $0x10] sm:$0xff]
      %v1389 = vld [vmem:[#allocation3 + $0x18] sm:$0xff]
      %v1390 = vld [vmem:[#allocation3 + $0x20] sm:$0xff]
      %v1391 = vld [vmem:[#allocation3 + $0x28] sm:$0xff]
      %v1392 = vld [vmem:[#allocation3 + $0x30] sm:$0xff]
      %v1393 = vld [vmem:[#allocation3 + $0x38] sm:$0xff]
      %v1394 = vld [vmem:[#allocation3 + $0x40] sm:$0xf]
      %v1395 = vld [vmem:[#allocation3 + $0x48] sm:$0xf]
      %vm1396 = vcmask 293888
      %v1398 = vsel %vm1396, %v1385, 0
      %vm1400 = vcmask 1043456
      %v1402 = vsel %vm1400, %v1394, 0
      %v1405 = vsel %vm1400, %v1395, 0
      %1407 = vmatprep.subr.mxu0 %v1387
      %1408 = vmatpush1.msra.mxu0 %v1386
      %1409 = vmatprep.subr.mxu0 %v1389
      %1410 = vmatpush1.msra.mxu0 %v1388
      %1411 = vmatprep.subr.mxu0 %v1391
      %1412 = vmatpush1.msra.mxu0 %v1390
      %1413 = vmatprep.subr.mxu0 %v1393
      %1414 = vmatpush1.msra.mxu0 %v1392
      %1415 = vmatprep.subr.mxu0 %v1405
      %1416 = vmatpush1.msra.mxu0 %v1402
      %1417 = vmatprep.subr.mxu0 0.0
      %1418 = vmatpush1.msra.mxu0 0.0
      %1419 = vmatprep.subr.mxu0 0.0
      %1420 = vmatpush1.msra.mxu0 0.0
      %1421 = vmatprep.subr.mxu0 0.0
      %1422 = vmatpush1.msra.mxu0 0.0
      %1423 = vmatprep.subr.mxu0 0.0
      %1424 = vmatpush1.msra.mxu0 0.0
      %1425 = vmatprep.subr.mxu0 0.0
      %1426 = vmatpush1.msra.mxu0 0.0
      %1427 = vmatprep.subr.mxu0 0.0
      %1428 = vmatpush1.msra.mxu0 0.0
      %1429 = vmatprep.subr.mxu0 0.0
      %1430 = vmatpush1.msra.mxu0 0.0
      %1431 = vmatprep.subr.mxu0 0.0
      %1432 = vmatpush1.msra.mxu0 0.0
      %1433 = vmatprep.subr.mxu0 0.0
      %1434 = vmatpush1.msra.mxu0 0.0
      %1435 = vmatprep.subr.mxu0 0.0
      %1436 = vmatpush1.msra.mxu0 0.0
      %1437 = vmatprep.subr.mxu0 0.0
      %1438 = vmatpush1.msra.mxu0 0.0
      %1439 = vmatprep.subr.mxu0 0.0
      %1440 = vmatpush1.msra.mxu0 0.0
      %1441 = vmatprep.subr.mxu0 0.0
      %1442 = vmatpush1.msra.mxu0 0.0
      %1443 = vmatprep.subr.mxu0 0.0
      %1444 = vmatpush1.msra.mxu0 0.0
      %1445 = vmatprep.subr.mxu0 0.0
      %1446 = vmatpush1.msra.mxu0 0.0
      %1447 = vmatprep.subr.mxu0 0.0
      %1448 = vmatpush1.msra.mxu0 0.0
      %1449 = vmatprep.subr.mxu0 0.0
      %1450 = vmatpush1.msra.mxu0 0.0
      %1451 = vmatprep.subr.mxu0 0.0
      %1452 = vmatpush1.msra.mxu0 0.0
      %1453 = vmatprep.subr.mxu0 0.0
      %1454 = vmatpush1.msra.mxu0 0.0
      %1455 = vmatprep.subr.mxu0 0.0
      %1456 = vmatpush1.msra.mxu0 0.0
      %1457 = vmatprep.subr.mxu0 0.0
      %1458 = vmatpush1.msra.mxu0 0.0
      %1459 = vmatprep.subr.mxu0 0.0
      %1460 = vmatpush1.msra.mxu0 0.0
      %1461 = vmatprep.subr.mxu0 0.0
      %1462 = vmatpush1.msra.mxu0 0.0
      %1463 = vmatprep.subr.mxu0 0.0
      %1464 = vmatpush1.msra.mxu0 0.0
      %1465 = vmatprep.subr.mxu0 0.0
      %1466 = vmatpush1.msra.mxu0 0.0
      %1467 = vmatprep.subr.mxu0 0.0
      %1468 = vmatpush1.msra.mxu0 0.0
      %1469 = vmatprep.subr.mxu0 0.0
      %1470 = vmatpush1.msra.mxu0 0.0
      %1471 = vmatprep.mubr.f32.mxu0 0.0
      %1472 = vmatmul.mubr.f32.gmra.mrb[0].mxu0 %v1398
      %v1473 = vpop.f32.mrb[0].mxu0
      %v1474 = vadd.f32 0.0, %v1473
      %v1475 = vpop.f32.mrb[0].mxu0
      %v1476 = vadd.f32 0.0, %v1475
      %1477 = vdwg.mxu0
      %v1478 = vld [vmem:[%s5] sm:$0xff]
      %1480 = vset.pattern.permute.xlu0 0
      %1481 = vperm.xlu0 %1480, %v1478
      %v1482 = vpop.permute.xlu0 %1481
      %v1484 = vmul.f32 %v1474, %v1482
      %v1485 = vmul.f32 %v1476, %v1482
      %v1486 = vld [vmem:[%s6] sm:$0xff]
      %1488 = vset.pattern.permute.xlu0 0
      %1489 = vperm.xlu0 %1488, %v1486
      %v1490 = vpop.permute.xlu0 %1489
      %v1492 = vadd.f32 %v1484, %v1490
      %v1493 = vadd.f32 %v1485, %v1490
      %v1494 = vmax.f32 %v1492, 0.0
      %v1495 = vmax.f32 %v1493, 0.0
      %1498 = vrot.lane.b32.xlu0 %v1494, 17
      %v1499 = vpop.permute.xlu0 %1498
      %1500 = vrot.lane.b32.xlu0 %v1495, 17
      %v1501 = vpop.permute.xlu0 %1500
      %v1502 = vsel %vm751, %v1499, %v1501
      %vm1506 = vcmask 1047688
      %1507 = vst.msk [vmem:[#allocation2] sm:$0xff] %vm1506, %v1499
      %1508 = vst [vmem:[#allocation2 + $0x8] sm:$0xff] %v1502
      %1509 = vst.msk [vmem:[#allocation2 + $0x10] sm:$0xff] %vm751, %v1501
      %v1510 = vld [vmem:[#allocation2] sm:$0xff]
      %v1511 = vld [vmem:[#allocation2 + $0x8] sm:$0xff]
      %v1512 = vsel %vm1203, %v1510, 0.0
      %v1513 = vsel %vm1204, %v1511, 0.0
      %1514 = vst [vmem:[#allocation3] sm:$0xff] %v1512
      %1515 = vst [vmem:[#allocation3 + $0x8] sm:$0xff] %v1513
      %v1516 = vld [vmem:[#allocation2] sm:$0xff]
      %v1517 = vld [vmem:[#allocation2 + $0x8] sm:$0xff]
      %v1518 = vld [vmem:[#allocation2 + $0x10] sm:$0xff]
      %1522 = vrot.lane.b32.xlu0 %v1516, 127
      %v1523 = vpop.permute.xlu0 %1522
      %1524 = vrot.lane.b32.xlu0 %v1517, 127
      %v1525 = vpop.permute.xlu0 %1524
      %1526 = vrot.lane.b32.xlu0 %v1518, 127
      %v1527 = vpop.permute.xlu0 %1526
      %v1528 = vsel %vm811, %v1523, %v1525
      %v1529 = vsel %vm811, %v1525, %v1527
      %1532 = vst [vmem:[#allocation3 + $0x10] sm:$0xff] %v1528
      %1533 = vst [vmem:[#allocation3 + $0x18] sm:$0xff] %v1529
      %v1534 = vld [vmem:[#allocation2] sm:$0xff]
      %v1535 = vld [vmem:[#allocation2 + $0x8] sm:$0xff]
      %v1536 = vld [vmem:[#allocation2 + $0x10] sm:$0xff]
      %1540 = vrot.lane.b32.xlu0 %v1534, 126
      %v1541 = vpop.permute.xlu0 %1540
      %1542 = vrot.lane.b32.xlu0 %v1535, 126
      %v1543 = vpop.permute.xlu0 %1542
      %1544 = vrot.lane.b32.xlu0 %v1536, 126
      %v1545 = vpop.permute.xlu0 %1544
      %v1546 = vsel %vm837, %v1541, %v1543
      %v1547 = vsel %vm837, %v1543, %v1545
      %v1550 = vsel %vm1235, %v1546, 0.0
      %v1551 = vsel %vm1236, %v1547, 0.0
      %1552 = vst [vmem:[#allocation3 + $0x20] sm:$0xff] %v1550
      %1553 = vst [vmem:[#allocation3 + $0x28] sm:$0xff] %v1551
      %v1554 = vld [vmem:[#allocation2] sm:$0xff]
      %v1555 = vld [vmem:[#allocation2 + $0x8] sm:$0xff]
      %v1556 = vld [vmem:[#allocation2 + $0x10] sm:$0xff]
      %1560 = vrot.lane.b32.xlu0 %v1554, 112
      %v1561 = vpop.permute.xlu0 %1560
      %1562 = vrot.lane.b32.xlu0 %v1555, 112
      %v1563 = vpop.permute.xlu0 %1562
      %1564 = vrot.lane.b32.xlu0 %v1556, 112
      %v1565 = vpop.permute.xlu0 %1564
      %v1566 = vsel %vm885, %v1561, %v1563
      %v1567 = vsel %vm885, %v1563, %v1565
      %v1570 = vsel %vm1203, %v1566, 0.0
      %v1571 = vsel %vm1204, %v1567, 0.0
      %1572 = vst [vmem:[#allocation3 + $0x30] sm:$0xff] %v1570
      %1573 = vst [vmem:[#allocation3 + $0x38] sm:$0xff] %v1571
      %v1574 = vld [vmem:[#allocation2] sm:$0xff]
      %v1575 = vld [vmem:[#allocation2 + $0x8] sm:$0xff]
      %v1576 = vld [vmem:[#allocation2 + $0x10] sm:$0xff]
      %1580 = vrot.lane.b32.xlu0 %v1574, 111
      %v1581 = vpop.permute.xlu0 %1580
      %1582 = vrot.lane.b32.xlu0 %v1575, 111
      %v1583 = vpop.permute.xlu0 %1582
      %1584 = vrot.lane.b32.xlu0 %v1576, 111
      %v1585 = vpop.permute.xlu0 %1584
      %v1586 = vsel %vm918, %v1581, %v1583
      %v1587 = vsel %vm918, %v1583, %v1585
      %1590 = vst [vmem:[#allocation3 + $0x40] sm:$0xff] %v1586
      %1591 = vst [vmem:[#allocation3 + $0x48] sm:$0xff] %v1587
      %v1592 = vld [vmem:[#allocation2] sm:$0xff]
      %v1593 = vld [vmem:[#allocation2 + $0x8] sm:$0xff]
      %v1594 = vld [vmem:[#allocation2 + $0x10] sm:$0xff]
      %1598 = vrot.lane.b32.xlu0 %v1592, 110
      %v1599 = vpop.permute.xlu0 %1598
      %1600 = vrot.lane.b32.xlu0 %v1593, 110
      %v1601 = vpop.permute.xlu0 %1600
      %1602 = vrot.lane.b32.xlu0 %v1594, 110
      %v1603 = vpop.permute.xlu0 %1602
      %v1604 = vsel %vm944, %v1599, %v1601
      %v1605 = vsel %vm944, %v1601, %v1603
      %v1608 = vsel %vm1235, %v1604, 0.0
      %v1609 = vsel %vm1236, %v1605, 0.0
      %1610 = vst [vmem:[#allocation3 + $0x50] sm:$0xff] %v1608
      %1611 = vst [vmem:[#allocation3 + $0x58] sm:$0xff] %v1609
      %v1612 = vld [vmem:[#allocation2] sm:$0xff]
      %v1613 = vld [vmem:[#allocation2 + $0x8] sm:$0xff]
      %v1614 = vld [vmem:[#allocation2 + $0x10] sm:$0xff]
      %1618 = vrot.lane.b32.xlu0 %v1612, 96
      %v1619 = vpop.permute.xlu0 %1618
      %1620 = vrot.lane.b32.xlu0 %v1613, 96
      %v1621 = vpop.permute.xlu0 %1620
      %1622 = vrot.lane.b32.xlu0 %v1614, 96
      %v1623 = vpop.permute.xlu0 %1622
      %v1624 = vsel %vm992, %v1619, %v1621
      %v1625 = vsel %vm992, %v1621, %v1623
      %v1628 = vsel %vm1203, %v1624, 0.0
      %v1629 = vsel %vm1204, %v1625, 0.0
      %1630 = vst [vmem:[#allocation3 + $0x60] sm:$0xff] %v1628
      %1631 = vst [vmem:[#allocation3 + $0x68] sm:$0xff] %v1629
      %v1632 = vld [vmem:[#allocation2] sm:$0xff]
      %v1633 = vld [vmem:[#allocation2 + $0x8] sm:$0xff]
      %v1634 = vld [vmem:[#allocation2 + $0x10] sm:$0xff]
      %1638 = vrot.lane.b32.xlu0 %v1632, 95
      %v1639 = vpop.permute.xlu0 %1638
      %1640 = vrot.lane.b32.xlu0 %v1633, 95
      %v1641 = vpop.permute.xlu0 %1640
      %1642 = vrot.lane.b32.xlu0 %v1634, 95
      %v1643 = vpop.permute.xlu0 %1642
      %v1644 = vsel %vm1025, %v1639, %v1641
      %v1645 = vsel %vm1025, %v1641, %v1643
      %1648 = vst [vmem:[#allocation3 + $0x70] sm:$0xff] %v1644
      %1649 = vst [vmem:[#allocation3 + $0x78] sm:$0xff] %v1645
      %v1650 = vld [vmem:[#allocation2] sm:$0xff]
      %v1651 = vld [vmem:[#allocation2 + $0x8] sm:$0xff]
      %v1652 = vld [vmem:[#allocation2 + $0x10] sm:$0xff]
      %1656 = vrot.lane.b32.xlu0 %v1650, 94
      %v1657 = vpop.permute.xlu0 %1656
      %1658 = vrot.lane.b32.xlu0 %v1651, 94
      %v1659 = vpop.permute.xlu0 %1658
      %1660 = vrot.lane.b32.xlu0 %v1652, 94
      %v1661 = vpop.permute.xlu0 %1660
      %v1662 = vsel %vm1051, %v1657, %v1659
      %v1663 = vsel %vm1051, %v1659, %v1661
      %v1666 = vsel %vm1235, %v1662, 0.0
      %v1667 = vsel %vm1236, %v1663, 0.0
      %1668 = vst [vmem:[#allocation3 + $0x80] sm:$0xff] %v1666
      %1669 = vst [vmem:[#allocation3 + $0x88] sm:$0xff] %v1667
      %v1670 = vld [vmem:[%s7] sm:$0xff]
      %v1671 = vld [vmem:[%s7 + $0x8] sm:$0xff]
      %v1672 = vld [vmem:[#allocation3] sm:$0xff]
      %v1673 = vld [vmem:[#allocation3 + $0x8] sm:$0xff]
      %v1674 = vld [vmem:[#allocation3 + $0x10] sm:$0xff]
      %v1675 = vld [vmem:[#allocation3 + $0x18] sm:$0xff]
      %v1676 = vld [vmem:[#allocation3 + $0x20] sm:$0xff]
      %v1677 = vld [vmem:[#allocation3 + $0x28] sm:$0xff]
      %v1678 = vld [vmem:[#allocation3 + $0x30] sm:$0xff]
      %v1679 = vld [vmem:[#allocation3 + $0x38] sm:$0xff]
      %v1680 = vld [vmem:[#allocation3 + $0x40] sm:$0xff]
      %v1681 = vld [vmem:[#allocation3 + $0x48] sm:$0xff]
      %v1682 = vld [vmem:[#allocation3 + $0x50] sm:$0xff]
      %v1683 = vld [vmem:[#allocation3 + $0x58] sm:$0xff]
      %v1684 = vld [vmem:[#allocation3 + $0x60] sm:$0xff]
      %v1685 = vld [vmem:[#allocation3 + $0x68] sm:$0xff]
      %v1686 = vld [vmem:[#allocation3 + $0x70] sm:$0xff]
      %v1687 = vld [vmem:[#allocation3 + $0x78] sm:$0xff]
      %v1688 = vld [vmem:[#allocation3 + $0x80] sm:$0xff]
      %v1689 = vld [vmem:[#allocation3 + $0x88] sm:$0xff]
      %vm1690 = vcmask 588800
      %v1692 = vsel %vm1690, %v1670, 0
      %v1695 = vsel %vm1690, %v1671, 0
      %1697 = vmatprep.subr.mxu0 %v1673
      %1698 = vmatpush1.msra.mxu0 %v1672
      %1699 = vmatprep.subr.mxu0 %v1675
      %1700 = vmatpush1.msra.mxu0 %v1674
      %1701 = vmatprep.subr.mxu0 %v1677
      %1702 = vmatpush1.msra.mxu0 %v1676
      %1703 = vmatprep.subr.mxu0 %v1679
      %1704 = vmatpush1.msra.mxu0 %v1678
      %1705 = vmatprep.subr.mxu0 %v1681
      %1706 = vmatpush1.msra.mxu0 %v1680
      %1707 = vmatprep.subr.mxu0 %v1683
      %1708 = vmatpush1.msra.mxu0 %v1682
      %1709 = vmatprep.subr.mxu0 %v1685
      %1710 = vmatpush1.msra.mxu0 %v1684
      %1711 = vmatprep.subr.mxu0 %v1687
      %1712 = vmatpush1.msra.mxu0 %v1686
      %1713 = vmatprep.subr.mxu0 %v1689
      %1714 = vmatpush1.msra.mxu0 %v1688
      %1715 = vmatprep.subr.mxu0 0.0
      %1716 = vmatpush1.msra.mxu0 0.0
      %1717 = vmatprep.subr.mxu0 0.0
      %1718 = vmatpush1.msra.mxu0 0.0
      %1719 = vmatprep.subr.mxu0 0.0
      %1720 = vmatpush1.msra.mxu0 0.0
      %1721 = vmatprep.subr.mxu0 0.0
      %1722 = vmatpush1.msra.mxu0 0.0
      %1723 = vmatprep.subr.mxu0 0.0
      %1724 = vmatpush1.msra.mxu0 0.0
      %1725 = vmatprep.subr.mxu0 0.0
      %1726 = vmatpush1.msra.mxu0 0.0
      %1727 = vmatprep.subr.mxu0 0.0
      %1728 = vmatpush1.msra.mxu0 0.0
      %1729 = vmatprep.subr.mxu0 0.0
      %1730 = vmatpush1.msra.mxu0 0.0
      %1731 = vmatprep.subr.mxu0 0.0
      %1732 = vmatpush1.msra.mxu0 0.0
      %1733 = vmatprep.subr.mxu0 0.0
      %1734 = vmatpush1.msra.mxu0 0.0
      %1735 = vmatprep.subr.mxu0 0.0
      %1736 = vmatpush1.msra.mxu0 0.0
      %1737 = vmatprep.subr.mxu0 0.0
      %1738 = vmatpush1.msra.mxu0 0.0
      %1739 = vmatprep.subr.mxu0 0.0
      %1740 = vmatpush1.msra.mxu0 0.0
      %1741 = vmatprep.subr.mxu0 0.0
      %1742 = vmatpush1.msra.mxu0 0.0
      %1743 = vmatprep.subr.mxu0 0.0
      %1744 = vmatpush1.msra.mxu0 0.0
      %1745 = vmatprep.subr.mxu0 0.0
      %1746 = vmatpush1.msra.mxu0 0.0
      %1747 = vmatprep.subr.mxu0 0.0
      %1748 = vmatpush1.msra.mxu0 0.0
      %1749 = vmatprep.subr.mxu0 0.0
      %1750 = vmatpush1.msra.mxu0 0.0
      %1751 = vmatprep.subr.mxu0 0.0
      %1752 = vmatpush1.msra.mxu0 0.0
      %1753 = vmatprep.subr.mxu0 0.0
      %1754 = vmatpush1.msra.mxu0 0.0
      %1755 = vmatprep.subr.mxu0 0.0
      %1756 = vmatpush1.msra.mxu0 0.0
      %1757 = vmatprep.subr.mxu0 0.0
      %1758 = vmatpush1.msra.mxu0 0.0
      %1759 = vmatprep.subr.mxu0 0.0
      %1760 = vmatpush1.msra.mxu0 0.0
      %1761 = vmatprep.mubr.f32.mxu0 0.0
      %1762 = vmatmul.mubr.f32.gmra.mrb[0].mxu0 %v1692
      %v1763 = vpop.f32.mrb[0].mxu0
      %v1764 = vadd.f32 0.0, %v1763
      %v1765 = vpop.f32.mrb[0].mxu0
      %v1766 = vadd.f32 0.0, %v1765
      %1767 = vmatprep.mubr.f32.mxu0 0.0
      %1768 = vmatmul.mubr.f32.gmra.mrb[0].mxu0 %v1695
      %v1769 = vpop.f32.mrb[0].mxu0
      %v1770 = vadd.f32 0.0, %v1769
      %v1771 = vpop.f32.mrb[0].mxu0
      %v1772 = vadd.f32 0.0, %v1771
      %1773 = vdwg.mxu0
      %v1774 = vld [vmem:[%s8] sm:$0xff]
      %v1775 = vld [vmem:[%s8 + $0x8] sm:$0xff]
      %1777 = vset.pattern.permute.xlu0 0
      %1778 = vperm.xlu0 %1777, %v1774
      %v1779 = vpop.permute.xlu0 %1778
      %1782 = vset.pattern.permute.xlu0 0
      %1783 = vperm.xlu0 %1782, %v1775
      %v1784 = vpop.permute.xlu0 %1783
      %v1786 = vmul.f32 %v1764, %v1779
      %v1787 = vmul.f32 %v1766, %v1779
      %v1788 = vmul.f32 %v1770, %v1784
      %v1789 = vmul.f32 %v1772, %v1784
      %v1790 = vld [vmem:[%s9] sm:$0xff]
      %v1791 = vld [vmem:[%s9 + $0x8] sm:$0xff]
      %1793 = vset.pattern.permute.xlu0 0
      %1794 = vperm.xlu0 %1793, %v1790
      %v1795 = vpop.permute.xlu0 %1794
      %1798 = vset.pattern.permute.xlu0 0
      %1799 = vperm.xlu0 %1798, %v1791
      %v1800 = vpop.permute.xlu0 %1799
      %v1802 = vadd.f32 %v1786, %v1795
      %v1803 = vadd.f32 %v1787, %v1795
      %v1804 = vadd.f32 %v1788, %v1800
      %v1805 = vadd.f32 %v1789, %v1800
      %v1806 = vmax.f32 %v1802, 0.0
      %v1807 = vmax.f32 %v1803, 0.0
      %v1808 = vmax.f32 %v1804, 0.0
      %v1809 = vmax.f32 %v1805, 0.0
      %1814 = vrot.lane.b32.xlu0 %v1806, 17
      %v1815 = vpop.permute.xlu0 %1814
      %1816 = vrot.lane.b32.xlu0 %v1807, 17
      %v1817 = vpop.permute.xlu0 %1816
      %1818 = vrot.lane.b32.xlu0 %v1808, 17
      %v1819 = vpop.permute.xlu0 %1818
      %1820 = vrot.lane.b32.xlu0 %v1809, 17
      %v1821 = vpop.permute.xlu0 %1820
      %v1822 = vsel %vm751, %v1815, %v1817
      %v1823 = vsel %vm751, %v1819, %v1821
      %1830 = vst.msk [vmem:[#allocation2] sm:$0xff] %vm1506, %v1815
      %1831 = vst [vmem:[#allocation2 + $0x8] sm:$0xff] %v1822
      %1832 = vst.msk [vmem:[#allocation2 + $0x10] sm:$0xff] %vm751, %v1817
      %1833 = vst.msk [vmem:[#allocation2 + $0x18] sm:$0xff] %vm1506, %v1819
      %1834 = vst [vmem:[#allocation2 + $0x20] sm:$0xff] %v1823
      %1835 = vst.msk [vmem:[#allocation2 + $0x28] sm:$0xff] %vm751, %v1821
      %v1836 = vld [vmem:[#allocation2] sm:$0xff]
      %v1837 = vld [vmem:[#allocation2 + $0x8] sm:$0xff]
      %v1838 = vld [vmem:[#allocation2 + $0x18] sm:$0xff]
      %v1839 = vld [vmem:[#allocation2 + $0x20] sm:$0xff]
      %v1840 = vsel %vm1203, %v1836, 0.0
      %v1841 = vsel %vm1204, %v1837, 0.0
      %v1842 = vsel %vm1203, %v1838, 0.0
      %v1843 = vsel %vm1204, %v1839, 0.0
      %1844 = vst [vmem:[#allocation3] sm:$0xff] %v1840
      %1845 = vst [vmem:[#allocation3 + $0x8] sm:$0xff] %v1841
      %1846 = vst [vmem:[#allocation3 + $0x10] sm:$0xff] %v1842
      %1847 = vst [vmem:[#allocation3 + $0x18] sm:$0xff] %v1843
      %v1848 = vld [vmem:[#allocation2] sm:$0xff]
      %v1849 = vld [vmem:[#allocation2 + $0x8] sm:$0xff]
      %v1850 = vld [vmem:[#allocation2 + $0x10] sm:$0xff]
      %v1851 = vld [vmem:[#allocation2 + $0x18] sm:$0xff]
      %v1852 = vld [vmem:[#allocation2 + $0x20] sm:$0xff]
      %v1853 = vld [vmem:[#allocation2 + $0x28] sm:$0xff]
      %1860 = vrot.lane.b32.xlu0 %v1848, 127
      %v1861 = vpop.permute.xlu0 %1860
      %1862 = vrot.lane.b32.xlu0 %v1849, 127
      %v1863 = vpop.permute.xlu0 %1862
      %1864 = vrot.lane.b32.xlu0 %v1850, 127
      %v1865 = vpop.permute.xlu0 %1864
      %1866 = vrot.lane.b32.xlu0 %v1851, 127
      %v1867 = vpop.permute.xlu0 %1866
      %1868 = vrot.lane.b32.xlu0 %v1852, 127
      %v1869 = vpop.permute.xlu0 %1868
      %1870 = vrot.lane.b32.xlu0 %v1853, 127
      %v1871 = vpop.permute.xlu0 %1870
      %v1872 = vsel %vm811, %v1861, %v1863
      %v1873 = vsel %vm811, %v1863, %v1865
      %v1874 = vsel %vm811, %v1867, %v1869
      %v1875 = vsel %vm811, %v1869, %v1871
      %1880 = vst [vmem:[#allocation3 + $0x20] sm:$0xff] %v1872
      %1881 = vst [vmem:[#allocation3 + $0x28] sm:$0xff] %v1873
      %1882 = vst [vmem:[#allocation3 + $0x30] sm:$0xff] %v1874
      %1883 = vst [vmem:[#allocation3 + $0x38] sm:$0xff] %v1875
      %v1884 = vld [vmem:[#allocation2] sm:$0xff]
      %v1885 = vld [vmem:[#allocation2 + $0x8] sm:$0xff]
      %v1886 = vld [vmem:[#allocation2 + $0x10] sm:$0xff]
      %v1887 = vld [vmem:[#allocation2 + $0x18] sm:$0xff]
      %v1888 = vld [vmem:[#allocation2 + $0x20] sm:$0xff]
      %v1889 = vld [vmem:[#allocation2 + $0x28] sm:$0xff]
      %1896 = vrot.lane.b32.xlu0 %v1884, 126
      %v1897 = vpop.permute.xlu0 %1896
      %1898 = vrot.lane.b32.xlu0 %v1885, 126
      %v1899 = vpop.permute.xlu0 %1898
      %1900 = vrot.lane.b32.xlu0 %v1886, 126
      %v1901 = vpop.permute.xlu0 %1900
      %1902 = vrot.lane.b32.xlu0 %v1887, 126
      %v1903 = vpop.permute.xlu0 %1902
      %1904 = vrot.lane.b32.xlu0 %v1888, 126
      %v1905 = vpop.permute.xlu0 %1904
      %1906 = vrot.lane.b32.xlu0 %v1889, 126
      %v1907 = vpop.permute.xlu0 %1906
      %v1908 = vsel %vm837, %v1897, %v1899
      %v1909 = vsel %vm837, %v1899, %v1901
      %v1910 = vsel %vm837, %v1903, %v1905
      %v1911 = vsel %vm837, %v1905, %v1907
      %v1916 = vsel %vm1235, %v1908, 0.0
      %v1917 = vsel %vm1236, %v1909, 0.0
      %v1918 = vsel %vm1235, %v1910, 0.0
      %v1919 = vsel %vm1236, %v1911, 0.0
      %1920 = vst [vmem:[#allocation3 + $0x40] sm:$0xff] %v1916
      %1921 = vst [vmem:[#allocation3 + $0x48] sm:$0xff] %v1917
      %1922 = vst [vmem:[#allocation3 + $0x50] sm:$0xff] %v1918
      %1923 = vst [vmem:[#allocation3 + $0x58] sm:$0xff] %v1919
      %v1924 = vld [vmem:[#allocation2] sm:$0xff]
      %v1925 = vld [vmem:[#allocation2 + $0x8] sm:$0xff]
      %v1926 = vld [vmem:[#allocation2 + $0x10] sm:$0xff]
      %v1927 = vld [vmem:[#allocation2 + $0x18] sm:$0xff]
      %v1928 = vld [vmem:[#allocation2 + $0x20] sm:$0xff]
      %v1929 = vld [vmem:[#allocation2 + $0x28] sm:$0xff]
      %1936 = vrot.lane.b32.xlu0 %v1924, 112
      %v1937 = vpop.permute.xlu0 %1936
      %1938 = vrot.lane.b32.xlu0 %v1925, 112
      %v1939 = vpop.permute.xlu0 %1938
      %1940 = vrot.lane.b32.xlu0 %v1926, 112
      %v1941 = vpop.permute.xlu0 %1940
      %1942 = vrot.lane.b32.xlu0 %v1927, 112
      %v1943 = vpop.permute.xlu0 %1942
      %1944 = vrot.lane.b32.xlu0 %v1928, 112
      %v1945 = vpop.permute.xlu0 %1944
      %1946 = vrot.lane.b32.xlu0 %v1929, 112
      %v1947 = vpop.permute.xlu0 %1946
      %v1948 = vsel %vm885, %v1937, %v1939
      %v1949 = vsel %vm885, %v1939, %v1941
      %v1950 = vsel %vm885, %v1943, %v1945
      %v1951 = vsel %vm885, %v1945, %v1947
      %v1956 = vsel %vm1203, %v1948, 0.0
      %v1957 = vsel %vm1204, %v1949, 0.0
      %v1958 = vsel %vm1203, %v1950, 0.0
      %v1959 = vsel %vm1204, %v1951, 0.0
      %1960 = vst [vmem:[#allocation3 + $0x60] sm:$0xff] %v1956
      %1961 = vst [vmem:[#allocation3 + $0x68] sm:$0xff] %v1957
      %1962 = vst [vmem:[#allocation3 + $0x70] sm:$0xff] %v1958
      %1963 = vst [vmem:[#allocation3 + $0x78] sm:$0xff] %v1959
      %v1964 = vld [vmem:[#allocation2] sm:$0xff]
      %v1965 = vld [vmem:[#allocation2 + $0x8] sm:$0xff]
      %v1966 = vld [vmem:[#allocation2 + $0x10] sm:$0xff]
      %v1967 = vld [vmem:[#allocation2 + $0x18] sm:$0xff]
      %v1968 = vld [vmem:[#allocation2 + $0x20] sm:$0xff]
      %v1969 = vld [vmem:[#allocation2 + $0x28] sm:$0xff]
      %1976 = vrot.lane.b32.xlu0 %v1964, 111
      %v1977 = vpop.permute.xlu0 %1976
      %1978 = vrot.lane.b32.xlu0 %v1965, 111
      %v1979 = vpop.permute.xlu0 %1978
      %1980 = vrot.lane.b32.xlu0 %v1966, 111
      %v1981 = vpop.permute.xlu0 %1980
      %1982 = vrot.lane.b32.xlu0 %v1967, 111
      %v1983 = vpop.permute.xlu0 %1982
      %1984 = vrot.lane.b32.xlu0 %v1968, 111
      %v1985 = vpop.permute.xlu0 %1984
      %1986 = vrot.lane.b32.xlu0 %v1969, 111
      %v1987 = vpop.permute.xlu0 %1986
      %v1988 = vsel %vm918, %v1977, %v1979
      %v1989 = vsel %vm918, %v1979, %v1981
      %v1990 = vsel %vm918, %v1983, %v1985
      %v1991 = vsel %vm918, %v1985, %v1987
      %1996 = vst [vmem:[#allocation3 + $0x80] sm:$0xff] %v1988
      %1997 = vst [vmem:[#allocation3 + $0x88] sm:$0xff] %v1989
      %1998 = vst [vmem:[#allocation3 + $0x90] sm:$0xff] %v1990
      %1999 = vst [vmem:[#allocation3 + $0x98] sm:$0xff] %v1991
      %v2000 = vld [vmem:[#allocation2] sm:$0xff]
      %v2001 = vld [vmem:[#allocation2 + $0x8] sm:$0xff]
      %v2002 = vld [vmem:[#allocation2 + $0x10] sm:$0xff]
      %v2003 = vld [vmem:[#allocation2 + $0x18] sm:$0xff]
      %v2004 = vld [vmem:[#allocation2 + $0x20] sm:$0xff]
      %v2005 = vld [vmem:[#allocation2 + $0x28] sm:$0xff]
      %2012 = vrot.lane.b32.xlu0 %v2000, 110
      %v2013 = vpop.permute.xlu0 %2012
      %2014 = vrot.lane.b32.xlu0 %v2001, 110
      %v2015 = vpop.permute.xlu0 %2014
      %2016 = vrot.lane.b32.xlu0 %v2002, 110
      %v2017 = vpop.permute.xlu0 %2016
      %2018 = vrot.lane.b32.xlu0 %v2003, 110
      %v2019 = vpop.permute.xlu0 %2018
      %2020 = vrot.lane.b32.xlu0 %v2004, 110
      %v2021 = vpop.permute.xlu0 %2020
      %2022 = vrot.lane.b32.xlu0 %v2005, 110
      %v2023 = vpop.permute.xlu0 %2022
      %v2024 = vsel %vm944, %v2013, %v2015
      %v2025 = vsel %vm944, %v2015, %v2017
      %v2026 = vsel %vm944, %v2019, %v2021
      %v2027 = vsel %vm944, %v2021, %v2023
      %v2032 = vsel %vm1235, %v2024, 0.0
      %v2033 = vsel %vm1236, %v2025, 0.0
      %v2034 = vsel %vm1235, %v2026, 0.0
      %v2035 = vsel %vm1236, %v2027, 0.0
      %2036 = vst [vmem:[#allocation3 + $0xa0] sm:$0xff] %v2032
      %2037 = vst [vmem:[#allocation3 + $0xa8] sm:$0xff] %v2033
      %2038 = vst [vmem:[#allocation3 + $0xb0] sm:$0xff] %v2034
      %2039 = vst [vmem:[#allocation3 + $0xb8] sm:$0xff] %v2035
      %v2040 = vld [vmem:[#allocation2] sm:$0xff]
      %v2041 = vld [vmem:[#allocation2 + $0x8] sm:$0xff]
      %v2042 = vld [vmem:[#allocation2 + $0x10] sm:$0xff]
      %v2043 = vld [vmem:[#allocation2 + $0x18] sm:$0xff]
      %v2044 = vld [vmem:[#allocation2 + $0x20] sm:$0xff]
      %v2045 = vld [vmem:[#allocation2 + $0x28] sm:$0xff]
      %2052 = vrot.lane.b32.xlu0 %v2040, 96
      %v2053 = vpop.permute.xlu0 %2052
      %2054 = vrot.lane.b32.xlu0 %v2041, 96
      %v2055 = vpop.permute.xlu0 %2054
      %2056 = vrot.lane.b32.xlu0 %v2042, 96
      %v2057 = vpop.permute.xlu0 %2056
      %2058 = vrot.lane.b32.xlu0 %v2043, 96
      %v2059 = vpop.permute.xlu0 %2058
      %2060 = vrot.lane.b32.xlu0 %v2044, 96
      %v2061 = vpop.permute.xlu0 %2060
      %2062 = vrot.lane.b32.xlu0 %v2045, 96
      %v2063 = vpop.permute.xlu0 %2062
      %v2064 = vsel %vm992, %v2053, %v2055
      %v2065 = vsel %vm992, %v2055, %v2057
      %v2066 = vsel %vm992, %v2059, %v2061
      %v2067 = vsel %vm992, %v2061, %v2063
      %v2072 = vsel %vm1203, %v2064, 0.0
      %v2073 = vsel %vm1204, %v2065, 0.0
      %v2074 = vsel %vm1203, %v2066, 0.0
      %v2075 = vsel %vm1204, %v2067, 0.0
      %2076 = vst [vmem:[#allocation3 + $0xc0] sm:$0xff] %v2072
      %2077 = vst [vmem:[#allocation3 + $0xc8] sm:$0xff] %v2073
      %2078 = vst [vmem:[#allocation3 + $0xd0] sm:$0xff] %v2074
      %2079 = vst [vmem:[#allocation3 + $0xd8] sm:$0xff] %v2075
      %v2080 = vld [vmem:[#allocation2] sm:$0xff]
      %v2081 = vld [vmem:[#allocation2 + $0x8] sm:$0xff]
      %v2082 = vld [vmem:[#allocation2 + $0x10] sm:$0xff]
      %v2083 = vld [vmem:[#allocation2 + $0x18] sm:$0xff]
      %v2084 = vld [vmem:[#allocation2 + $0x20] sm:$0xff]
      %v2085 = vld [vmem:[#allocation2 + $0x28] sm:$0xff]
      %2092 = vrot.lane.b32.xlu0 %v2080, 95
      %v2093 = vpop.permute.xlu0 %2092
      %2094 = vrot.lane.b32.xlu0 %v2081, 95
      %v2095 = vpop.permute.xlu0 %2094
      %2096 = vrot.lane.b32.xlu0 %v2082, 95
      %v2097 = vpop.permute.xlu0 %2096
      %2098 = vrot.lane.b32.xlu0 %v2083, 95
      %v2099 = vpop.permute.xlu0 %2098
      %2100 = vrot.lane.b32.xlu0 %v2084, 95
      %v2101 = vpop.permute.xlu0 %2100
      %2102 = vrot.lane.b32.xlu0 %v2085, 95
      %v2103 = vpop.permute.xlu0 %2102
      %v2104 = vsel %vm1025, %v2093, %v2095
      %v2105 = vsel %vm1025, %v2095, %v2097
      %v2106 = vsel %vm1025, %v2099, %v2101
      %v2107 = vsel %vm1025, %v2101, %v2103
      %2112 = vst [vmem:[#allocation3 + $0xe0] sm:$0xff] %v2104
      %2113 = vst [vmem:[#allocation3 + $0xe8] sm:$0xff] %v2105
      %2114 = vst [vmem:[#allocation3 + $0xf0] sm:$0xff] %v2106
      %2115 = vst [vmem:[#allocation3 + $0xf8] sm:$0xff] %v2107
      %v2116 = vld [vmem:[#allocation2] sm:$0xff]
      %v2117 = vld [vmem:[#allocation2 + $0x8] sm:$0xff]
      %v2118 = vld [vmem:[#allocation2 + $0x10] sm:$0xff]
      %v2119 = vld [vmem:[#allocation2 + $0x18] sm:$0xff]
      %v2120 = vld [vmem:[#allocation2 + $0x20] sm:$0xff]
      %v2121 = vld [vmem:[#allocation2 + $0x28] sm:$0xff]
      %2128 = vrot.lane.b32.xlu0 %v2116, 94
      %v2129 = vpop.permute.xlu0 %2128
      %2130 = vrot.lane.b32.xlu0 %v2117, 94
      %v2131 = vpop.permute.xlu0 %2130
      %2132 = vrot.lane.b32.xlu0 %v2118, 94
      %v2133 = vpop.permute.xlu0 %2132
      %2134 = vrot.lane.b32.xlu0 %v2119, 94
      %v2135 = vpop.permute.xlu0 %2134
      %2136 = vrot.lane.b32.xlu0 %v2120, 94
      %v2137 = vpop.permute.xlu0 %2136
      %2138 = vrot.lane.b32.xlu0 %v2121, 94
      %v2139 = vpop.permute.xlu0 %2138
      %v2140 = vsel %vm1051, %v2129, %v2131
      %v2141 = vsel %vm1051, %v2131, %v2133
      %v2142 = vsel %vm1051, %v2135, %v2137
      %v2143 = vsel %vm1051, %v2137, %v2139
      %v2148 = vsel %vm1235, %v2140, 0.0
      %v2149 = vsel %vm1236, %v2141, 0.0
      %v2150 = vsel %vm1235, %v2142, 0.0
      %v2151 = vsel %vm1236, %v2143, 0.0
      %2152 = vst [vmem:[#allocation3 + $0x100] sm:$0xff] %v2148
      %2153 = vst [vmem:[#allocation3 + $0x108] sm:$0xff] %v2149
      %2154 = vst [vmem:[#allocation3 + $0x110] sm:$0xff] %v2150
      %2155 = vst [vmem:[#allocation3 + $0x118] sm:$0xff] %v2151
      %v2156 = vld [vmem:[%s10] sm:$0xff]
      %v2157 = vld [vmem:[%s10 + $0x8] sm:$0xff]
      %v2158 = vld [vmem:[%s10 + $0x10] sm:$0xff]
      %v2159 = vld [vmem:[%s10 + $0x18] sm:$0xff]
      %v2160 = vld [vmem:[%s10 + $0x20] sm:$0xff]
      %v2161 = vld [vmem:[%s10 + $0x28] sm:$0xff]
      %v2162 = vld [vmem:[%s10 + $0x30] sm:$0xff]
      %v2163 = vld [vmem:[%s10 + $0x38] sm:$0xff]
      %v2164 = vld [vmem:[#allocation3] sm:$0xff]
      %v2165 = vld [vmem:[#allocation3 + $0x8] sm:$0xff]
      %v2166 = vld [vmem:[#allocation3 + $0x10] sm:$0xff]
      %v2167 = vld [vmem:[#allocation3 + $0x18] sm:$0xff]
      %v2168 = vld [vmem:[#allocation3 + $0x20] sm:$0xff]
      %v2169 = vld [vmem:[#allocation3 + $0x28] sm:$0xff]
      %v2170 = vld [vmem:[#allocation3 + $0x30] sm:$0xff]
      %v2171 = vld [vmem:[#allocation3 + $0x38] sm:$0xff]
      %v2172 = vld [vmem:[#allocation3 + $0x40] sm:$0xff]
      %v2173 = vld [vmem:[#allocation3 + $0x48] sm:$0xff]
      %v2174 = vld [vmem:[#allocation3 + $0x50] sm:$0xff]
      %v2175 = vld [vmem:[#allocation3 + $0x58] sm:$0xff]
      %v2176 = vld [vmem:[#allocation3 + $0x60] sm:$0xff]
      %v2177 = vld [vmem:[#allocation3 + $0x68] sm:$0xff]
      %v2178 = vld [vmem:[#allocation3 + $0x70] sm:$0xff]
      %v2179 = vld [vmem:[#allocation3 + $0x78] sm:$0xff]
      %v2180 = vld [vmem:[#allocation3 + $0x80] sm:$0xff]
      %v2181 = vld [vmem:[#allocation3 + $0x88] sm:$0xff]
      %v2182 = vld [vmem:[#allocation3 + $0x90] sm:$0xff]
      %v2183 = vld [vmem:[#allocation3 + $0x98] sm:$0xff]
      %v2184 = vld [vmem:[#allocation3 + $0xa0] sm:$0xff]
      %v2185 = vld [vmem:[#allocation3 + $0xa8] sm:$0xff]
      %v2186 = vld [vmem:[#allocation3 + $0xb0] sm:$0xff]
      %v2187 = vld [vmem:[#allocation3 + $0xb8] sm:$0xff]
      %v2188 = vld [vmem:[#allocation3 + $0xc0] sm:$0xff]
      %v2189 = vld [vmem:[#allocation3 + $0xc8] sm:$0xff]
      %v2190 = vld [vmem:[#allocation3 + $0xd0] sm:$0xff]
      %v2191 = vld [vmem:[#allocation3 + $0xd8] sm:$0xff]
      %v2192 = vld [vmem:[#allocation3 + $0xe0] sm:$0xff]
      %v2193 = vld [vmem:[#allocation3 + $0xe8] sm:$0xff]
      %v2194 = vld [vmem:[#allocation3 + $0xf0] sm:$0xff]
      %v2195 = vld [vmem:[#allocation3 + $0xf8] sm:$0xff]
      %v2196 = vld [vmem:[#allocation3 + $0x100] sm:$0xff]
      %v2197 = vld [vmem:[#allocation3 + $0x108] sm:$0xff]
      %v2198 = vld [vmem:[#allocation3 + $0x110] sm:$0xff]
      %v2199 = vld [vmem:[#allocation3 + $0x118] sm:$0xff]
      %vm2200 = vcmask 130048
      %v2202 = vsel %vm2200, %v2157, 0
      %v2205 = vsel %vm2200, %v2159, 0
      %v2208 = vsel %vm2200, %v2161, 0
      %v2211 = vsel %vm2200, %v2163, 0
      %2213 = vmatprep.subr.mxu0 %v2165
      %2214 = vmatpush1.msra.mxu0 %v2164
      %2215 = vmatprep.subr.mxu0 %v2167
      %2216 = vmatpush1.msra.mxu0 %v2166
      %2217 = vmatprep.subr.mxu0 %v2169
      %2218 = vmatpush1.msra.mxu0 %v2168
      %2219 = vmatprep.subr.mxu0 %v2171
      %2220 = vmatpush1.msra.mxu0 %v2170
      %2221 = vmatprep.subr.mxu0 %v2173
      %2222 = vmatpush1.msra.mxu0 %v2172
      %2223 = vmatprep.subr.mxu0 %v2175
      %2224 = vmatpush1.msra.mxu0 %v2174
      %2225 = vmatprep.subr.mxu0 %v2177
      %2226 = vmatpush1.msra.mxu0 %v2176
      %2227 = vmatprep.subr.mxu0 %v2179
      %2228 = vmatpush1.msra.mxu0 %v2178
      %2229 = vmatprep.subr.mxu0 %v2181
      %2230 = vmatpush1.msra.mxu0 %v2180
      %2231 = vmatprep.subr.mxu0 %v2183
      %2232 = vmatpush1.msra.mxu0 %v2182
      %2233 = vmatprep.subr.mxu0 %v2185
      %2234 = vmatpush1.msra.mxu0 %v2184
      %2235 = vmatprep.subr.mxu0 %v2187
      %2236 = vmatpush1.msra.mxu0 %v2186
      %2237 = vmatprep.subr.mxu0 %v2189
      %2238 = vmatpush1.msra.mxu0 %v2188
      %2239 = vmatprep.subr.mxu0 %v2191
      %2240 = vmatpush1.msra.mxu0 %v2190
      %2241 = vmatprep.subr.mxu0 %v2193
      %2242 = vmatpush1.msra.mxu0 %v2192
      %2243 = vmatprep.subr.mxu0 %v2195
      %2244 = vmatpush1.msra.mxu0 %v2194
      %2245 = vmatprep.subr.mxu0 %v2197
      %2246 = vmatpush1.msra.mxu0 %v2196
      %2247 = vmatprep.subr.mxu0 %v2199
      %2248 = vmatpush1.msra.mxu0 %v2198
      %2249 = vmatprep.subr.mxu0 0.0
      %2250 = vmatpush1.msra.mxu0 0.0
      %2251 = vmatprep.subr.mxu0 0.0
      %2252 = vmatpush1.msra.mxu0 0.0
      %2253 = vmatprep.subr.mxu0 0.0
      %2254 = vmatpush1.msra.mxu0 0.0
      %2255 = vmatprep.subr.mxu0 0.0
      %2256 = vmatpush1.msra.mxu0 0.0
      %2257 = vmatprep.subr.mxu0 0.0
      %2258 = vmatpush1.msra.mxu0 0.0
      %2259 = vmatprep.subr.mxu0 0.0
      %2260 = vmatpush1.msra.mxu0 0.0
      %2261 = vmatprep.subr.mxu0 0.0
      %2262 = vmatpush1.msra.mxu0 0.0
      %2263 = vmatprep.subr.mxu0 0.0
      %2264 = vmatpush1.msra.mxu0 0.0
      %2265 = vmatprep.subr.mxu0 0.0
      %2266 = vmatpush1.msra.mxu0 0.0
      %2267 = vmatprep.subr.mxu0 0.0
      %2268 = vmatpush1.msra.mxu0 0.0
      %2269 = vmatprep.subr.mxu0 0.0
      %2270 = vmatpush1.msra.mxu0 0.0
      %2271 = vmatprep.subr.mxu0 0.0
      %2272 = vmatpush1.msra.mxu0 0.0
      %2273 = vmatprep.subr.mxu0 0.0
      %2274 = vmatpush1.msra.mxu0 0.0
      %2275 = vmatprep.subr.mxu0 0.0
      %2276 = vmatpush1.msra.mxu0 0.0
      %2277 = vmatprep.mubr.f32.mxu0 %v2202
      %2278 = vmatmul.mubr.f32.gmra.mrb[0].mxu0 %v2156
      %v2279 = vpop.f32.mrb[0].mxu0
      %v2280 = vadd.f32 0.0, %v2279
      %v2281 = vpop.f32.mrb[0].mxu0
      %v2282 = vadd.f32 0.0, %v2281
      %2283 = vmatprep.mubr.f32.mxu0 %v2205
      %2284 = vmatmul.mubr.f32.gmra.mrb[0].mxu0 %v2158
      %v2285 = vpop.f32.mrb[0].mxu0
      %v2286 = vadd.f32 0.0, %v2285
      %v2287 = vpop.f32.mrb[0].mxu0
      %v2288 = vadd.f32 0.0, %v2287
      %2289 = vmatprep.mubr.f32.mxu0 %v2208
      %2290 = vmatmul.mubr.f32.gmra.mrb[0].mxu0 %v2160
      %v2291 = vpop.f32.mrb[0].mxu0
      %v2292 = vadd.f32 0.0, %v2291
      %v2293 = vpop.f32.mrb[0].mxu0
      %v2294 = vadd.f32 0.0, %v2293
      %2295 = vmatprep.mubr.f32.mxu0 %v2211
      %2296 = vmatmul.mubr.f32.gmra.mrb[0].mxu0 %v2162
      %v2297 = vpop.f32.mrb[0].mxu0
      %v2298 = vadd.f32 0.0, %v2297
      %v2299 = vpop.f32.mrb[0].mxu0
      %v2300 = vadd.f32 0.0, %v2299
      %2301 = vdwg.mxu0
      %v2302 = vld [vmem:[%s11] sm:$0xff]
      %v2303 = vld [vmem:[%s11 + $0x8] sm:$0xff]
      %v2304 = vld [vmem:[%s11 + $0x10] sm:$0xff]
      %v2305 = vld [vmem:[%s11 + $0x18] sm:$0xff]
      %2307 = vset.pattern.permute.xlu0 0
      %2308 = vperm.xlu0 %2307, %v2302
      %v2309 = vpop.permute.xlu0 %2308
      %2312 = vset.pattern.permute.xlu0 0
      %2313 = vperm.xlu0 %2312, %v2303
      %v2314 = vpop.permute.xlu0 %2313
      %2317 = vset.pattern.permute.xlu0 0
      %2318 = vperm.xlu0 %2317, %v2304
      %v2319 = vpop.permute.xlu0 %2318
      %2322 = vset.pattern.permute.xlu0 0
      %2323 = vperm.xlu0 %2322, %v2305
      %v2324 = vpop.permute.xlu0 %2323
      %v2326 = vmul.f32 %v2280, %v2309
      %v2327 = vmul.f32 %v2282, %v2309
      %v2328 = vmul.f32 %v2286, %v2314
      %v2329 = vmul.f32 %v2288, %v2314
      %v2330 = vmul.f32 %v2292, %v2319
      %v2331 = vmul.f32 %v2294, %v2319
      %v2332 = vmul.f32 %v2298, %v2324
      %v2333 = vmul.f32 %v2300, %v2324
      %v2334 = vld [vmem:[%s12] sm:$0xff]
      %v2335 = vld [vmem:[%s12 + $0x8] sm:$0xff]
      %v2336 = vld [vmem:[%s12 + $0x10] sm:$0xff]
      %v2337 = vld [vmem:[%s12 + $0x18] sm:$0xff]
      %2339 = vset.pattern.permute.xlu0 0
      %2340 = vperm.xlu0 %2339, %v2334
      %v2341 = vpop.permute.xlu0 %2340
      %2344 = vset.pattern.permute.xlu0 0
      %2345 = vperm.xlu0 %2344, %v2335
      %v2346 = vpop.permute.xlu0 %2345
      %2349 = vset.pattern.permute.xlu0 0
      %2350 = vperm.xlu0 %2349, %v2336
      %v2351 = vpop.permute.xlu0 %2350
      %2354 = vset.pattern.permute.xlu0 0
      %2355 = vperm.xlu0 %2354, %v2337
      %v2356 = vpop.permute.xlu0 %2355
      %v2358 = vadd.f32 %v2326, %v2341
      %v2359 = vadd.f32 %v2327, %v2341
      %v2360 = vadd.f32 %v2328, %v2346
      %v2361 = vadd.f32 %v2329, %v2346
      %v2362 = vadd.f32 %v2330, %v2351
      %v2363 = vadd.f32 %v2331, %v2351
      %v2364 = vadd.f32 %v2332, %v2356
      %v2365 = vadd.f32 %v2333, %v2356
      %v2366 = vmax.f32 %v2358, 0.0
      %v2367 = vmax.f32 %v2359, 0.0
      %v2368 = vmax.f32 %v2360, 0.0
      %v2369 = vmax.f32 %v2361, 0.0
      %v2370 = vmax.f32 %v2362, 0.0
      %v2371 = vmax.f32 %v2363, 0.0
      %v2372 = vmax.f32 %v2364, 0.0
      %v2373 = vmax.f32 %v2365, 0.0
      %2382 = vrot.lane.b32.xlu0 %v2366, 17
      %v2383 = vpop.permute.xlu0 %2382
      %2384 = vrot.lane.b32.xlu0 %v2367, 17
      %v2385 = vpop.permute.xlu0 %2384
      %2386 = vrot.lane.b32.xlu0 %v2368, 17
      %v2387 = vpop.permute.xlu0 %2386
      %2388 = vrot.lane.b32.xlu0 %v2369, 17
      %v2389 = vpop.permute.xlu0 %2388
      %2390 = vrot.lane.b32.xlu0 %v2370, 17
      %v2391 = vpop.permute.xlu0 %2390
      %2392 = vrot.lane.b32.xlu0 %v2371, 17
      %v2393 = vpop.permute.xlu0 %2392
      %2394 = vrot.lane.b32.xlu0 %v2372, 17
      %v2395 = vpop.permute.xlu0 %2394
      %2396 = vrot.lane.b32.xlu0 %v2373, 17
      %v2397 = vpop.permute.xlu0 %2396
      %v2398 = vsel %vm751, %v2383, %v2385
      %v2399 = vsel %vm751, %v2387, %v2389
      %v2400 = vsel %vm751, %v2391, %v2393
      %v2401 = vsel %vm751, %v2395, %v2397
      %2414 = vst.msk [vmem:[#allocation2] sm:$0xff] %vm1506, %v2383
      %2415 = vst [vmem:[#allocation2 + $0x8] sm:$0xff] %v2398
      %2416 = vst.msk [vmem:[#allocation2 + $0x10] sm:$0xff] %vm751, %v2385
      %2417 = vst.msk [vmem:[#allocation2 + $0x18] sm:$0xff] %vm1506, %v2387
      %2418 = vst [vmem:[#allocation2 + $0x20] sm:$0xff] %v2399
      %2419 = vst.msk [vmem:[#allocation2 + $0x28] sm:$0xff] %vm751, %v2389
      %2420 = vst.msk [vmem:[#allocation2 + $0x30] sm:$0xff] %vm1506, %v2391
      %2421 = vst [vmem:[#allocation2 + $0x38] sm:$0xff] %v2400
      %2422 = vst.msk [vmem:[#allocation2 + $0x40] sm:$0xff] %vm751, %v2393
      %2423 = vst.msk [vmem:[#allocation2 + $0x48] sm:$0xff] %vm1506, %v2395
      %2424 = vst [vmem:[#allocation2 + $0x50] sm:$0xff] %v2401
      %2425 = vst.msk [vmem:[#allocation2 + $0x58] sm:$0xff] %vm751, %v2397
      %v2426 = vld [vmem:[#allocation2] sm:$0xff]
      %v2427 = vld [vmem:[#allocation2 + $0x8] sm:$0xff]
      %v2428 = vld [vmem:[#allocation2 + $0x18] sm:$0xff]
      %v2429 = vld [vmem:[#allocation2 + $0x20] sm:$0xff]
      %v2430 = vld [vmem:[#allocation2 + $0x30] sm:$0xff]
      %v2431 = vld [vmem:[#allocation2 + $0x38] sm:$0xff]
      %v2432 = vld [vmem:[#allocation2 + $0x48] sm:$0xff]
      %v2433 = vld [vmem:[#allocation2 + $0x50] sm:$0xff]
      %v2434 = vsel %vm1203, %v2426, 0.0
      %v2435 = vsel %vm1204, %v2427, 0.0
      %v2436 = vsel %vm1203, %v2428, 0.0
      %v2437 = vsel %vm1204, %v2429, 0.0
      %v2438 = vsel %vm1203, %v2430, 0.0
      %v2439 = vsel %vm1204, %v2431, 0.0
      %v2440 = vsel %vm1203, %v2432, 0.0
      %v2441 = vsel %vm1204, %v2433, 0.0
      %2442 = vst [vmem:[#allocation3] sm:$0xff] %v2434
      %2443 = vst [vmem:[#allocation3 + $0x8] sm:$0xff] %v2435
      %2444 = vst [vmem:[#allocation3 + $0x10] sm:$0xff] %v2436
      %2445 = vst [vmem:[#allocation3 + $0x18] sm:$0xff] %v2437
      %2446 = vst [vmem:[#allocation3 + $0x20] sm:$0xff] %v2438
      %2447 = vst [vmem:[#allocation3 + $0x28] sm:$0xff] %v2439
      %2448 = vst [vmem:[#allocation3 + $0x30] sm:$0xff] %v2440
      %2449 = vst [vmem:[#allocation3 + $0x38] sm:$0xff] %v2441
      %v2450 = vld [vmem:[#allocation2] sm:$0xff]
      %v2451 = vld [vmem:[#allocation2 + $0x8] sm:$0xff]
      %v2452 = vld [vmem:[#allocation2 + $0x10] sm:$0xff]
      %v2453 = vld [vmem:[#allocation2 + $0x18] sm:$0xff]
      %v2454 = vld [vmem:[#allocation2 + $0x20] sm:$0xff]
      %v2455 = vld [vmem:[#allocation2 + $0x28] sm:$0xff]
      %v2456 = vld [vmem:[#allocation2 + $0x30] sm:$0xff]
      %v2457 = vld [vmem:[#allocation2 + $0x38] sm:$0xff]
      %v2458 = vld [vmem:[#allocation2 + $0x40] sm:$0xff]
      %v2459 = vld [vmem:[#allocation2 + $0x48] sm:$0xff]
      %v2460 = vld [vmem:[#allocation2 + $0x50] sm:$0xff]
      %v2461 = vld [vmem:[#allocation2 + $0x58] sm:$0xff]
      %2474 = vrot.lane.b32.xlu0 %v2450, 127
      %v2475 = vpop.permute.xlu0 %2474
      %2476 = vrot.lane.b32.xlu0 %v2451, 127
      %v2477 = vpop.permute.xlu0 %2476
      %2478 = vrot.lane.b32.xlu0 %v2452, 127
      %v2479 = vpop.permute.xlu0 %2478
      %2480 = vrot.lane.b32.xlu0 %v2453, 127
      %v2481 = vpop.permute.xlu0 %2480
      %2482 = vrot.lane.b32.xlu0 %v2454, 127
      %v2483 = vpop.permute.xlu0 %2482
      %2484 = vrot.lane.b32.xlu0 %v2455, 127
      %v2485 = vpop.permute.xlu0 %2484
      %2486 = vrot.lane.b32.xlu0 %v2456, 127
      %v2487 = vpop.permute.xlu0 %2486
      %2488 = vrot.lane.b32.xlu0 %v2457, 127
      %v2489 = vpop.permute.xlu0 %2488
      %2490 = vrot.lane.b32.xlu0 %v2458, 127
      %v2491 = vpop.permute.xlu0 %2490
      %2492 = vrot.lane.b32.xlu0 %v2459, 127
      %v2493 = vpop.permute.xlu0 %2492
      %2494 = vrot.lane.b32.xlu0 %v2460, 127
      %v2495 = vpop.permute.xlu0 %2494
      %2496 = vrot.lane.b32.xlu0 %v2461, 127
      %v2497 = vpop.permute.xlu0 %2496
      %v2498 = vsel %vm811, %v2475, %v2477
      %v2499 = vsel %vm811, %v2477, %v2479
      %v2500 = vsel %vm811, %v2481, %v2483
      %v2501 = vsel %vm811, %v2483, %v2485
      %v2502 = vsel %vm811, %v2487, %v2489
      %v2503 = vsel %vm811, %v2489, %v2491
      %v2504 = vsel %vm811, %v2493, %v2495
      %v2505 = vsel %vm811, %v2495, %v2497
      %2514 = vst [vmem:[#allocation3 + $0x40] sm:$0xff] %v2498
      %2515 = vst [vmem:[#allocation3 + $0x48] sm:$0xff] %v2499
      %2516 = vst [vmem:[#allocation3 + $0x50] sm:$0xff] %v2500
      %2517 = vst [vmem:[#allocation3 + $0x58] sm:$0xff] %v2501
      %2518 = vst [vmem:[#allocation3 + $0x60] sm:$0xff] %v2502
      %2519 = vst [vmem:[#allocation3 + $0x68] sm:$0xff] %v2503
      %2520 = vst [vmem:[#allocation3 + $0x70] sm:$0xff] %v2504
      %2521 = vst [vmem:[#allocation3 + $0x78] sm:$0xff] %v2505
      %v2522 = vld [vmem:[#allocation2] sm:$0xff]
      %v2523 = vld [vmem:[#allocation2 + $0x8] sm:$0xff]
      %v2524 = vld [vmem:[#allocation2 + $0x10] sm:$0xff]
      %v2525 = vld [vmem:[#allocation2 + $0x18] sm:$0xff]
      %v2526 = vld [vmem:[#allocation2 + $0x20] sm:$0xff]
      %v2527 = vld [vmem:[#allocation2 + $0x28] sm:$0xff]
      %v2528 = vld [vmem:[#allocation2 + $0x30] sm:$0xff]
      %v2529 = vld [vmem:[#allocation2 + $0x38] sm:$0xff]
      %v2530 = vld [vmem:[#allocation2 + $0x40] sm:$0xff]
      %v2531 = vld [vmem:[#allocation2 + $0x48] sm:$0xff]
      %v2532 = vld [vmem:[#allocation2 + $0x50] sm:$0xff]
      %v2533 = vld [vmem:[#allocation2 + $0x58] sm:$0xff]
      %2546 = vrot.lane.b32.xlu0 %v2522, 126
      %v2547 = vpop.permute.xlu0 %2546
      %2548 = vrot.lane.b32.xlu0 %v2523, 126
      %v2549 = vpop.permute.xlu0 %2548
      %2550 = vrot.lane.b32.xlu0 %v2524, 126
      %v2551 = vpop.permute.xlu0 %2550
      %2552 = vrot.lane.b32.xlu0 %v2525, 126
      %v2553 = vpop.permute.xlu0 %2552
      %2554 = vrot.lane.b32.xlu0 %v2526, 126
      %v2555 = vpop.permute.xlu0 %2554
      %2556 = vrot.lane.b32.xlu0 %v2527, 126
      %v2557 = vpop.permute.xlu0 %2556
      %2558 = vrot.lane.b32.xlu0 %v2528, 126
      %v2559 = vpop.permute.xlu0 %2558
      %2560 = vrot.lane.b32.xlu0 %v2529, 126
      %v2561 = vpop.permute.xlu0 %2560
      %2562 = vrot.lane.b32.xlu0 %v2530, 126
      %v2563 = vpop.permute.xlu0 %2562
      %2564 = vrot.lane.b32.xlu0 %v2531, 126
      %v2565 = vpop.permute.xlu0 %2564
      %2566 = vrot.lane.b32.xlu0 %v2532, 126
      %v2567 = vpop.permute.xlu0 %2566
      %2568 = vrot.lane.b32.xlu0 %v2533, 126
      %v2569 = vpop.permute.xlu0 %2568
      %v2570 = vsel %vm837, %v2547, %v2549
      %v2571 = vsel %vm837, %v2549, %v2551
      %v2572 = vsel %vm837, %v2553, %v2555
      %v2573 = vsel %vm837, %v2555, %v2557
      %v2574 = vsel %vm837, %v2559, %v2561
      %v2575 = vsel %vm837, %v2561, %v2563
      %v2576 = vsel %vm837, %v2565, %v2567
      %v2577 = vsel %vm837, %v2567, %v2569
      %v2586 = vsel %vm1235, %v2570, 0.0
      %v2587 = vsel %vm1236, %v2571, 0.0
      %v2588 = vsel %vm1235, %v2572, 0.0
      %v2589 = vsel %vm1236, %v2573, 0.0
      %v2590 = vsel %vm1235, %v2574, 0.0
      %v2591 = vsel %vm1236, %v2575, 0.0
      %v2592 = vsel %vm1235, %v2576, 0.0
      %v2593 = vsel %vm1236, %v2577, 0.0
      %2594 = vst [vmem:[#allocation3 + $0x80] sm:$0xff] %v2586
      %2595 = vst [vmem:[#allocation3 + $0x88] sm:$0xff] %v2587
      %2596 = vst [vmem:[#allocation3 + $0x90] sm:$0xff] %v2588
      %2597 = vst [vmem:[#allocation3 + $0x98] sm:$0xff] %v2589
      %2598 = vst [vmem:[#allocation3 + $0xa0] sm:$0xff] %v2590
      %2599 = vst [vmem:[#allocation3 + $0xa8] sm:$0xff] %v2591
      %2600 = vst [vmem:[#allocation3 + $0xb0] sm:$0xff] %v2592
      %2601 = vst [vmem:[#allocation3 + $0xb8] sm:$0xff] %v2593
      %v2602 = vld [vmem:[#allocation2] sm:$0xff]
      %v2603 = vld [vmem:[#allocation2 + $0x8] sm:$0xff]
      %v2604 = vld [vmem:[#allocation2 + $0x10] sm:$0xff]
      %v2605 = vld [vmem:[#allocation2 + $0x18] sm:$0xff]
      %v2606 = vld [vmem:[#allocation2 + $0x20] sm:$0xff]
      %v2607 = vld [vmem:[#allocation2 + $0x28] sm:$0xff]
      %v2608 = vld [vmem:[#allocation2 + $0x30] sm:$0xff]
      %v2609 = vld [vmem:[#allocation2 + $0x38] sm:$0xff]
      %v2610 = vld [vmem:[#allocation2 + $0x40] sm:$0xff]
      %v2611 = vld [vmem:[#allocation2 + $0x48] sm:$0xff]
      %v2612 = vld [vmem:[#allocation2 + $0x50] sm:$0xff]
      %v2613 = vld [vmem:[#allocation2 + $0x58] sm:$0xff]
      %2626 = vrot.lane.b32.xlu0 %v2602, 112
      %v2627 = vpop.permute.xlu0 %2626
      %2628 = vrot.lane.b32.xlu0 %v2603, 112
      %v2629 = vpop.permute.xlu0 %2628
      %2630 = vrot.lane.b32.xlu0 %v2604, 112
      %v2631 = vpop.permute.xlu0 %2630
      %2632 = vrot.lane.b32.xlu0 %v2605, 112
      %v2633 = vpop.permute.xlu0 %2632
      %2634 = vrot.lane.b32.xlu0 %v2606, 112
      %v2635 = vpop.permute.xlu0 %2634
      %2636 = vrot.lane.b32.xlu0 %v2607, 112
      %v2637 = vpop.permute.xlu0 %2636
      %2638 = vrot.lane.b32.xlu0 %v2608, 112
      %v2639 = vpop.permute.xlu0 %2638
      %2640 = vrot.lane.b32.xlu0 %v2609, 112
      %v2641 = vpop.permute.xlu0 %2640
      %2642 = vrot.lane.b32.xlu0 %v2610, 112
      %v2643 = vpop.permute.xlu0 %2642
      %2644 = vrot.lane.b32.xlu0 %v2611, 112
      %v2645 = vpop.permute.xlu0 %2644
      %2646 = vrot.lane.b32.xlu0 %v2612, 112
      %v2647 = vpop.permute.xlu0 %2646
      %2648 = vrot.lane.b32.xlu0 %v2613, 112
      %v2649 = vpop.permute.xlu0 %2648
      %v2650 = vsel %vm885, %v2627, %v2629
      %v2651 = vsel %vm885, %v2629, %v2631
      %v2652 = vsel %vm885, %v2633, %v2635
      %v2653 = vsel %vm885, %v2635, %v2637
      %v2654 = vsel %vm885, %v2639, %v2641
      %v2655 = vsel %vm885, %v2641, %v2643
      %v2656 = vsel %vm885, %v2645, %v2647
      %v2657 = vsel %vm885, %v2647, %v2649
      %v2666 = vsel %vm1203, %v2650, 0.0
      %v2667 = vsel %vm1204, %v2651, 0.0
      %v2668 = vsel %vm1203, %v2652, 0.0
      %v2669 = vsel %vm1204, %v2653, 0.0
      %v2670 = vsel %vm1203, %v2654, 0.0
      %v2671 = vsel %vm1204, %v2655, 0.0
      %v2672 = vsel %vm1203, %v2656, 0.0
      %v2673 = vsel %vm1204, %v2657, 0.0
      %2674 = vst [vmem:[#allocation3 + $0xc0] sm:$0xff] %v2666
      %2675 = vst [vmem:[#allocation3 + $0xc8] sm:$0xff] %v2667
      %2676 = vst [vmem:[#allocation3 + $0xd0] sm:$0xff] %v2668
      %2677 = vst [vmem:[#allocation3 + $0xd8] sm:$0xff] %v2669
      %2678 = vst [vmem:[#allocation3 + $0xe0] sm:$0xff] %v2670
      %2679 = vst [vmem:[#allocation3 + $0xe8] sm:$0xff] %v2671
      %2680 = vst [vmem:[#allocation3 + $0xf0] sm:$0xff] %v2672
      %2681 = vst [vmem:[#allocation3 + $0xf8] sm:$0xff] %v2673
      %v2682 = vld [vmem:[#allocation2] sm:$0xff]
      %v2683 = vld [vmem:[#allocation2 + $0x8] sm:$0xff]
      %v2684 = vld [vmem:[#allocation2 + $0x10] sm:$0xff]
      %v2685 = vld [vmem:[#allocation2 + $0x18] sm:$0xff]
      %v2686 = vld [vmem:[#allocation2 + $0x20] sm:$0xff]
      %v2687 = vld [vmem:[#allocation2 + $0x28] sm:$0xff]
      %v2688 = vld [vmem:[#allocation2 + $0x30] sm:$0xff]
      %v2689 = vld [vmem:[#allocation2 + $0x38] sm:$0xff]
      %v2690 = vld [vmem:[#allocation2 + $0x40] sm:$0xff]
      %v2691 = vld [vmem:[#allocation2 + $0x48] sm:$0xff]
      %v2692 = vld [vmem:[#allocation2 + $0x50] sm:$0xff]
      %v2693 = vld [vmem:[#allocation2 + $0x58] sm:$0xff]
      %2706 = vrot.lane.b32.xlu0 %v2682, 111
      %v2707 = vpop.permute.xlu0 %2706
      %2708 = vrot.lane.b32.xlu0 %v2683, 111
      %v2709 = vpop.permute.xlu0 %2708
      %2710 = vrot.lane.b32.xlu0 %v2684, 111
      %v2711 = vpop.permute.xlu0 %2710
      %2712 = vrot.lane.b32.xlu0 %v2685, 111
      %v2713 = vpop.permute.xlu0 %2712
      %2714 = vrot.lane.b32.xlu0 %v2686, 111
      %v2715 = vpop.permute.xlu0 %2714
      %2716 = vrot.lane.b32.xlu0 %v2687, 111
      %v2717 = vpop.permute.xlu0 %2716
      %2718 = vrot.lane.b32.xlu0 %v2688, 111
      %v2719 = vpop.permute.xlu0 %2718
      %2720 = vrot.lane.b32.xlu0 %v2689, 111
      %v2721 = vpop.permute.xlu0 %2720
      %2722 = vrot.lane.b32.xlu0 %v2690, 111
      %v2723 = vpop.permute.xlu0 %2722
      %2724 = vrot.lane.b32.xlu0 %v2691, 111
      %v2725 = vpop.permute.xlu0 %2724
      %2726 = vrot.lane.b32.xlu0 %v2692, 111
      %v2727 = vpop.permute.xlu0 %2726
      %2728 = vrot.lane.b32.xlu0 %v2693, 111
      %v2729 = vpop.permute.xlu0 %2728
      %v2730 = vsel %vm918, %v2707, %v2709
      %v2731 = vsel %vm918, %v2709, %v2711
      %v2732 = vsel %vm918, %v2713, %v2715
      %v2733 = vsel %vm918, %v2715, %v2717
      %v2734 = vsel %vm918, %v2719, %v2721
      %v2735 = vsel %vm918, %v2721, %v2723
      %v2736 = vsel %vm918, %v2725, %v2727
      %v2737 = vsel %vm918, %v2727, %v2729
      %2746 = vst [vmem:[#allocation3 + $0x100] sm:$0xff] %v2730
      %2747 = vst [vmem:[#allocation3 + $0x108] sm:$0xff] %v2731
      %2748 = vst [vmem:[#allocation3 + $0x110] sm:$0xff] %v2732
      %2749 = vst [vmem:[#allocation3 + $0x118] sm:$0xff] %v2733
      %2750 = vst [vmem:[#allocation3 + $0x120] sm:$0xff] %v2734
      %2751 = vst [vmem:[#allocation3 + $0x128] sm:$0xff] %v2735
      %2752 = vst [vmem:[#allocation3 + $0x130] sm:$0xff] %v2736
      %2753 = vst [vmem:[#allocation3 + $0x138] sm:$0xff] %v2737
      %v2754 = vld [vmem:[#allocation2] sm:$0xff]
      %v2755 = vld [vmem:[#allocation2 + $0x8] sm:$0xff]
      %v2756 = vld [vmem:[#allocation2 + $0x10] sm:$0xff]
      %v2757 = vld [vmem:[#allocation2 + $0x18] sm:$0xff]
      %v2758 = vld [vmem:[#allocation2 + $0x20] sm:$0xff]
      %v2759 = vld [vmem:[#allocation2 + $0x28] sm:$0xff]
      %v2760 = vld [vmem:[#allocation2 + $0x30] sm:$0xff]
      %v2761 = vld [vmem:[#allocation2 + $0x38] sm:$0xff]
      %v2762 = vld [vmem:[#allocation2 + $0x40] sm:$0xff]
      %v2763 = vld [vmem:[#allocation2 + $0x48] sm:$0xff]
      %v2764 = vld [vmem:[#allocation2 + $0x50] sm:$0xff]
      %v2765 = vld [vmem:[#allocation2 + $0x58] sm:$0xff]
      %2778 = vrot.lane.b32.xlu0 %v2754, 110
      %v2779 = vpop.permute.xlu0 %2778
      %2780 = vrot.lane.b32.xlu0 %v2755, 110
      %v2781 = vpop.permute.xlu0 %2780
      %2782 = vrot.lane.b32.xlu0 %v2756, 110
      %v2783 = vpop.permute.xlu0 %2782
      %2784 = vrot.lane.b32.xlu0 %v2757, 110
      %v2785 = vpop.permute.xlu0 %2784
      %2786 = vrot.lane.b32.xlu0 %v2758, 110
      %v2787 = vpop.permute.xlu0 %2786
      %2788 = vrot.lane.b32.xlu0 %v2759, 110
      %v2789 = vpop.permute.xlu0 %2788
      %2790 = vrot.lane.b32.xlu0 %v2760, 110
      %v2791 = vpop.permute.xlu0 %2790
      %2792 = vrot.lane.b32.xlu0 %v2761, 110
      %v2793 = vpop.permute.xlu0 %2792
      %2794 = vrot.lane.b32.xlu0 %v2762, 110
      %v2795 = vpop.permute.xlu0 %2794
      %2796 = vrot.lane.b32.xlu0 %v2763, 110
      %v2797 = vpop.permute.xlu0 %2796
      %2798 = vrot.lane.b32.xlu0 %v2764, 110
      %v2799 = vpop.permute.xlu0 %2798
      %2800 = vrot.lane.b32.xlu0 %v2765, 110
      %v2801 = vpop.permute.xlu0 %2800
      %v2802 = vsel %vm944, %v2779, %v2781
      %v2803 = vsel %vm944, %v2781, %v2783
      %v2804 = vsel %vm944, %v2785, %v2787
      %v2805 = vsel %vm944, %v2787, %v2789
      %v2806 = vsel %vm944, %v2791, %v2793
      %v2807 = vsel %vm944, %v2793, %v2795
      %v2808 = vsel %vm944, %v2797, %v2799
      %v2809 = vsel %vm944, %v2799, %v2801
      %v2818 = vsel %vm1235, %v2802, 0.0
      %v2819 = vsel %vm1236, %v2803, 0.0
      %v2820 = vsel %vm1235, %v2804, 0.0
      %v2821 = vsel %vm1236, %v2805, 0.0
      %v2822 = vsel %vm1235, %v2806, 0.0
      %v2823 = vsel %vm1236, %v2807, 0.0
      %v2824 = vsel %vm1235, %v2808, 0.0
      %v2825 = vsel %vm1236, %v2809, 0.0
      %2826 = vst [vmem:[#allocation3 + $0x140] sm:$0xff] %v2818
      %2827 = vst [vmem:[#allocation3 + $0x148] sm:$0xff] %v2819
      %2828 = vst [vmem:[#allocation3 + $0x150] sm:$0xff] %v2820
      %2829 = vst [vmem:[#allocation3 + $0x158] sm:$0xff] %v2821
      %2830 = vst [vmem:[#allocation3 + $0x160] sm:$0xff] %v2822
      %2831 = vst [vmem:[#allocation3 + $0x168] sm:$0xff] %v2823
      %2832 = vst [vmem:[#allocation3 + $0x170] sm:$0xff] %v2824
      %2833 = vst [vmem:[#allocation3 + $0x178] sm:$0xff] %v2825
      %v2834 = vld [vmem:[#allocation2] sm:$0xff]
      %v2835 = vld [vmem:[#allocation2 + $0x8] sm:$0xff]
      %v2836 = vld [vmem:[#allocation2 + $0x10] sm:$0xff]
      %v2837 = vld [vmem:[#allocation2 + $0x18] sm:$0xff]
      %v2838 = vld [vmem:[#allocation2 + $0x20] sm:$0xff]
      %v2839 = vld [vmem:[#allocation2 + $0x28] sm:$0xff]
      %v2840 = vld [vmem:[#allocation2 + $0x30] sm:$0xff]
      %v2841 = vld [vmem:[#allocation2 + $0x38] sm:$0xff]
      %v2842 = vld [vmem:[#allocation2 + $0x40] sm:$0xff]
      %v2843 = vld [vmem:[#allocation2 + $0x48] sm:$0xff]
      %v2844 = vld [vmem:[#allocation2 + $0x50] sm:$0xff]
      %v2845 = vld [vmem:[#allocation2 + $0x58] sm:$0xff]
      %2858 = vrot.lane.b32.xlu0 %v2834, 96
      %v2859 = vpop.permute.xlu0 %2858
      %2860 = vrot.lane.b32.xlu0 %v2835, 96
      %v2861 = vpop.permute.xlu0 %2860
      %2862 = vrot.lane.b32.xlu0 %v2836, 96
      %v2863 = vpop.permute.xlu0 %2862
      %2864 = vrot.lane.b32.xlu0 %v2837, 96
      %v2865 = vpop.permute.xlu0 %2864
      %2866 = vrot.lane.b32.xlu0 %v2838, 96
      %v2867 = vpop.permute.xlu0 %2866
      %2868 = vrot.lane.b32.xlu0 %v2839, 96
      %v2869 = vpop.permute.xlu0 %2868
      %2870 = vrot.lane.b32.xlu0 %v2840, 96
      %v2871 = vpop.permute.xlu0 %2870
      %2872 = vrot.lane.b32.xlu0 %v2841, 96
      %v2873 = vpop.permute.xlu0 %2872
      %2874 = vrot.lane.b32.xlu0 %v2842, 96
      %v2875 = vpop.permute.xlu0 %2874
      %2876 = vrot.lane.b32.xlu0 %v2843, 96
      %v2877 = vpop.permute.xlu0 %2876
      %2878 = vrot.lane.b32.xlu0 %v2844, 96
      %v2879 = vpop.permute.xlu0 %2878
      %2880 = vrot.lane.b32.xlu0 %v2845, 96
      %v2881 = vpop.permute.xlu0 %2880
      %v2882 = vsel %vm992, %v2859, %v2861
      %v2883 = vsel %vm992, %v2861, %v2863
      %v2884 = vsel %vm992, %v2865, %v2867
      %v2885 = vsel %vm992, %v2867, %v2869
      %v2886 = vsel %vm992, %v2871, %v2873
      %v2887 = vsel %vm992, %v2873, %v2875
      %v2888 = vsel %vm992, %v2877, %v2879
      %v2889 = vsel %vm992, %v2879, %v2881
      %v2898 = vsel %vm1203, %v2882, 0.0
      %v2899 = vsel %vm1204, %v2883, 0.0
      %v2900 = vsel %vm1203, %v2884, 0.0
      %v2901 = vsel %vm1204, %v2885, 0.0
      %v2902 = vsel %vm1203, %v2886, 0.0
      %v2903 = vsel %vm1204, %v2887, 0.0
      %v2904 = vsel %vm1203, %v2888, 0.0
      %v2905 = vsel %vm1204, %v2889, 0.0
      %2906 = vst [vmem:[#allocation3 + $0x180] sm:$0xff] %v2898
      %2907 = vst [vmem:[#allocation3 + $0x188] sm:$0xff] %v2899
      %2908 = vst [vmem:[#allocation3 + $0x190] sm:$0xff] %v2900
      %2909 = vst [vmem:[#allocation3 + $0x198] sm:$0xff] %v2901
      %2910 = vst [vmem:[#allocation3 + $0x1a0] sm:$0xff] %v2902
      %2911 = vst [vmem:[#allocation3 + $0x1a8] sm:$0xff] %v2903
      %2912 = vst [vmem:[#allocation3 + $0x1b0] sm:$0xff] %v2904
      %2913 = vst [vmem:[#allocation3 + $0x1b8] sm:$0xff] %v2905
      %v2914 = vld [vmem:[#allocation2] sm:$0xff]
      %v2915 = vld [vmem:[#allocation2 + $0x8] sm:$0xff]
      %v2916 = vld [vmem:[#allocation2 + $0x10] sm:$0xff]
      %v2917 = vld [vmem:[#allocation2 + $0x18] sm:$0xff]
      %v2918 = vld [vmem:[#allocation2 + $0x20] sm:$0xff]
      %v2919 = vld [vmem:[#allocation2 + $0x28] sm:$0xff]
      %v2920 = vld [vmem:[#allocation2 + $0x30] sm:$0xff]
      %v2921 = vld [vmem:[#allocation2 + $0x38] sm:$0xff]
      %v2922 = vld [vmem:[#allocation2 + $0x40] sm:$0xff]
      %v2923 = vld [vmem:[#allocation2 + $0x48] sm:$0xff]
      %v2924 = vld [vmem:[#allocation2 + $0x50] sm:$0xff]
      %v2925 = vld [vmem:[#allocation2 + $0x58] sm:$0xff]
      %2938 = vrot.lane.b32.xlu0 %v2914, 95
      %v2939 = vpop.permute.xlu0 %2938
      %2940 = vrot.lane.b32.xlu0 %v2915, 95
      %v2941 = vpop.permute.xlu0 %2940
      %2942 = vrot.lane.b32.xlu0 %v2916, 95
      %v2943 = vpop.permute.xlu0 %2942
      %2944 = vrot.lane.b32.xlu0 %v2917, 95
      %v2945 = vpop.permute.xlu0 %2944
      %2946 = vrot.lane.b32.xlu0 %v2918, 95
      %v2947 = vpop.permute.xlu0 %2946
      %2948 = vrot.lane.b32.xlu0 %v2919, 95
      %v2949 = vpop.permute.xlu0 %2948
      %2950 = vrot.lane.b32.xlu0 %v2920, 95
      %v2951 = vpop.permute.xlu0 %2950
      %2952 = vrot.lane.b32.xlu0 %v2921, 95
      %v2953 = vpop.permute.xlu0 %2952
      %2954 = vrot.lane.b32.xlu0 %v2922, 95
      %v2955 = vpop.permute.xlu0 %2954
      %2956 = vrot.lane.b32.xlu0 %v2923, 95
      %v2957 = vpop.permute.xlu0 %2956
      %2958 = vrot.lane.b32.xlu0 %v2924, 95
      %v2959 = vpop.permute.xlu0 %2958
      %2960 = vrot.lane.b32.xlu0 %v2925, 95
      %v2961 = vpop.permute.xlu0 %2960
      %v2962 = vsel %vm1025, %v2939, %v2941
      %v2963 = vsel %vm1025, %v2941, %v2943
      %v2964 = vsel %vm1025, %v2945, %v2947
      %v2965 = vsel %vm1025, %v2947, %v2949
      %v2966 = vsel %vm1025, %v2951, %v2953
      %v2967 = vsel %vm1025, %v2953, %v2955
      %v2968 = vsel %vm1025, %v2957, %v2959
      %v2969 = vsel %vm1025, %v2959, %v2961
      %2978 = vst [vmem:[#allocation3 + $0x1c0] sm:$0xff] %v2962
      %2979 = vst [vmem:[#allocation3 + $0x1c8] sm:$0xff] %v2963
      %2980 = vst [vmem:[#allocation3 + $0x1d0] sm:$0xff] %v2964
      %2981 = vst [vmem:[#allocation3 + $0x1d8] sm:$0xff] %v2965
      %2982 = vst [vmem:[#allocation3 + $0x1e0] sm:$0xff] %v2966
      %2983 = vst [vmem:[#allocation3 + $0x1e8] sm:$0xff] %v2967
      %2984 = vst [vmem:[#allocation3 + $0x1f0] sm:$0xff] %v2968
      %2985 = vst [vmem:[#allocation3 + $0x1f8] sm:$0xff] %v2969
      %v2986 = vld [vmem:[#allocation2] sm:$0xff]
      %v2987 = vld [vmem:[#allocation2 + $0x8] sm:$0xff]
      %v2988 = vld [vmem:[#allocation2 + $0x10] sm:$0xff]
      %v2989 = vld [vmem:[#allocation2 + $0x18] sm:$0xff]
      %v2990 = vld [vmem:[#allocation2 + $0x20] sm:$0xff]
      %v2991 = vld [vmem:[#allocation2 + $0x28] sm:$0xff]
      %v2992 = vld [vmem:[#allocation2 + $0x30] sm:$0xff]
      %v2993 = vld [vmem:[#allocation2 + $0x38] sm:$0xff]
      %v2994 = vld [vmem:[#allocation2 + $0x40] sm:$0xff]
      %v2995 = vld [vmem:[#allocation2 + $0x48] sm:$0xff]
      %v2996 = vld [vmem:[#allocation2 + $0x50] sm:$0xff]
      %v2997 = vld [vmem:[#allocation2 + $0x58] sm:$0xff]
      %3010 = vrot.lane.b32.xlu0 %v2986, 94
      %v3011 = vpop.permute.xlu0 %3010
      %3012 = vrot.lane.b32.xlu0 %v2987, 94
      %v3013 = vpop.permute.xlu0 %3012
      %3014 = vrot.lane.b32.xlu0 %v2988, 94
      %v3015 = vpop.permute.xlu0 %3014
      %3016 = vrot.lane.b32.xlu0 %v2989, 94
      %v3017 = vpop.permute.xlu0 %3016
      %3018 = vrot.lane.b32.xlu0 %v2990, 94
      %v3019 = vpop.permute.xlu0 %3018
      %3020 = vrot.lane.b32.xlu0 %v2991, 94
      %v3021 = vpop.permute.xlu0 %3020
      %3022 = vrot.lane.b32.xlu0 %v2992, 94
      %v3023 = vpop.permute.xlu0 %3022
      %3024 = vrot.lane.b32.xlu0 %v2993, 94
      %v3025 = vpop.permute.xlu0 %3024
      %3026 = vrot.lane.b32.xlu0 %v2994, 94
      %v3027 = vpop.permute.xlu0 %3026
      %3028 = vrot.lane.b32.xlu0 %v2995, 94
      %v3029 = vpop.permute.xlu0 %3028
      %3030 = vrot.lane.b32.xlu0 %v2996, 94
      %v3031 = vpop.permute.xlu0 %3030
      %3032 = vrot.lane.b32.xlu0 %v2997, 94
      %v3033 = vpop.permute.xlu0 %3032
      %v3034 = vsel %vm1051, %v3011, %v3013
      %v3035 = vsel %vm1051, %v3013, %v3015
      %v3036 = vsel %vm1051, %v3017, %v3019
      %v3037 = vsel %vm1051, %v3019, %v3021
      %v3038 = vsel %vm1051, %v3023, %v3025
      %v3039 = vsel %vm1051, %v3025, %v3027
      %v3040 = vsel %vm1051, %v3029, %v3031
      %v3041 = vsel %vm1051, %v3031, %v3033
      %v3050 = vsel %vm1235, %v3034, 0.0
      %v3051 = vsel %vm1236, %v3035, 0.0
      %v3052 = vsel %vm1235, %v3036, 0.0
      %v3053 = vsel %vm1236, %v3037, 0.0
      %v3054 = vsel %vm1235, %v3038, 0.0
      %v3055 = vsel %vm1236, %v3039, 0.0
      %v3056 = vsel %vm1235, %v3040, 0.0
      %v3057 = vsel %vm1236, %v3041, 0.0
      %3058 = vst [vmem:[#allocation3 + $0x200] sm:$0xff] %v3050
      %3059 = vst [vmem:[#allocation3 + $0x208] sm:$0xff] %v3051
      %3060 = vst [vmem:[#allocation3 + $0x210] sm:$0xff] %v3052
      %3061 = vst [vmem:[#allocation3 + $0x218] sm:$0xff] %v3053
      %3062 = vst [vmem:[#allocation3 + $0x220] sm:$0xff] %v3054
      %3063 = vst [vmem:[#allocation3 + $0x228] sm:$0xff] %v3055
      %3064 = vst [vmem:[#allocation3 + $0x230] sm:$0xff] %v3056
      %3065 = vst [vmem:[#allocation3 + $0x238] sm:$0xff] %v3057
      %v3066 = vld [vmem:[%s13] sm:$0xff]
      %v3067 = vld [vmem:[%s13 + $0x8] sm:$0xff]
      %v3068 = vld [vmem:[%s13 + $0x10] sm:$0xff]
      %v3069 = vld [vmem:[%s13 + $0x18] sm:$0xff]
      %v3070 = vld [vmem:[%s13 + $0x20] sm:$0xff]
      %v3071 = vld [vmem:[%s13 + $0x28] sm:$0xff]
      %v3072 = vld [vmem:[#allocation3] sm:$0xff]
      %v3073 = vld [vmem:[#allocation3 + $0x8] sm:$0xff]
      %v3074 = vld [vmem:[#allocation3 + $0x10] sm:$0xff]
      %v3075 = vld [vmem:[#allocation3 + $0x18] sm:$0xff]
      %v3076 = vld [vmem:[#allocation3 + $0x20] sm:$0xff]
      %v3077 = vld [vmem:[#allocation3 + $0x28] sm:$0xff]
      %v3078 = vld [vmem:[#allocation3 + $0x30] sm:$0xff]
      %v3079 = vld [vmem:[#allocation3 + $0x38] sm:$0xff]
      %v3080 = vld [vmem:[#allocation3 + $0x40] sm:$0xff]
      %v3081 = vld [vmem:[#allocation3 + $0x48] sm:$0xff]
      %v3082 = vld [vmem:[#allocation3 + $0x50] sm:$0xff]
      %v3083 = vld [vmem:[#allocation3 + $0x58] sm:$0xff]
      %v3084 = vld [vmem:[#allocation3 + $0x60] sm:$0xff]
      %v3085 = vld [vmem:[#allocation3 + $0x68] sm:$0xff]
      %v3086 = vld [vmem:[#allocation3 + $0x70] sm:$0xff]
      %v3087 = vld [vmem:[#allocation3 + $0x78] sm:$0xff]
      %v3088 = vld [vmem:[#allocation3 + $0x80] sm:$0xff]
      %v3089 = vld [vmem:[#allocation3 + $0x88] sm:$0xff]
      %v3090 = vld [vmem:[#allocation3 + $0x90] sm:$0xff]
      %v3091 = vld [vmem:[#allocation3 + $0x98] sm:$0xff]
      %v3092 = vld [vmem:[#allocation3 + $0xa0] sm:$0xff]
      %v3093 = vld [vmem:[#allocation3 + $0xa8] sm:$0xff]
      %v3094 = vld [vmem:[#allocation3 + $0xb0] sm:$0xff]
      %v3095 = vld [vmem:[#allocation3 + $0xb8] sm:$0xff]
      %v3096 = vld [vmem:[#allocation3 + $0xc0] sm:$0xff]
      %v3097 = vld [vmem:[#allocation3 + $0xc8] sm:$0xff]
      %v3098 = vld [vmem:[#allocation3 + $0xd0] sm:$0xff]
      %v3099 = vld [vmem:[#allocation3 + $0xd8] sm:$0xff]
      %v3100 = vld [vmem:[#allocation3 + $0xe0] sm:$0xff]
      %v3101 = vld [vmem:[#allocation3 + $0xe8] sm:$0xff]
      %v3102 = vld [vmem:[#allocation3 + $0xf0] sm:$0xff]
      %v3103 = vld [vmem:[#allocation3 + $0xf8] sm:$0xff]
      %v3104 = vld [vmem:[#allocation3 + $0x100] sm:$0xff]
      %v3105 = vld [vmem:[#allocation3 + $0x108] sm:$0xff]
      %v3106 = vld [vmem:[#allocation3 + $0x110] sm:$0xff]
      %v3107 = vld [vmem:[#allocation3 + $0x118] sm:$0xff]
      %v3108 = vld [vmem:[#allocation3 + $0x120] sm:$0xff]
      %v3109 = vld [vmem:[#allocation3 + $0x128] sm:$0xff]
      %v3110 = vld [vmem:[#allocation3 + $0x130] sm:$0xff]
      %v3111 = vld [vmem:[#allocation3 + $0x138] sm:$0xff]
      %v3112 = vld [vmem:[#allocation3 + $0x140] sm:$0xff]
      %v3113 = vld [vmem:[#allocation3 + $0x148] sm:$0xff]
      %v3114 = vld [vmem:[#allocation3 + $0x150] sm:$0xff]
      %v3115 = vld [vmem:[#allocation3 + $0x158] sm:$0xff]
      %v3116 = vld [vmem:[#allocation3 + $0x160] sm:$0xff]
      %v3117 = vld [vmem:[#allocation3 + $0x168] sm:$0xff]
      %v3118 = vld [vmem:[#allocation3 + $0x170] sm:$0xff]
      %v3119 = vld [vmem:[#allocation3 + $0x178] sm:$0xff]
      %v3120 = vld [vmem:[#allocation3 + $0x180] sm:$0xff]
      %v3121 = vld [vmem:[#allocation3 + $0x188] sm:$0xff]
      %v3122 = vld [vmem:[#allocation3 + $0x190] sm:$0xff]
      %v3123 = vld [vmem:[#allocation3 + $0x198] sm:$0xff]
      %v3124 = vld [vmem:[#allocation3 + $0x1a0] sm:$0xff]
      %v3125 = vld [vmem:[#allocation3 + $0x1a8] sm:$0xff]
      %v3126 = vld [vmem:[#allocation3 + $0x1b0] sm:$0xff]
      %v3127 = vld [vmem:[#allocation3 + $0x1b8] sm:$0xff]
      %v3128 = vld [vmem:[#allocation3 + $0x1c0] sm:$0xff]
      %v3129 = vld [vmem:[#allocation3 + $0x1c8] sm:$0xff]
      %v3130 = vld [vmem:[#allocation3 + $0x1d0] sm:$0xff]
      %v3131 = vld [vmem:[#allocation3 + $0x1d8] sm:$0xff]
      %v3132 = vld [vmem:[#allocation3 + $0x1e0] sm:$0xff]
      %v3133 = vld [vmem:[#allocation3 + $0x1e8] sm:$0xff]
      %v3134 = vld [vmem:[#allocation3 + $0x1f0] sm:$0xff]
      %v3135 = vld [vmem:[#allocation3 + $0x1f8] sm:$0xff]
      %v3136 = vld [vmem:[#allocation3 + $0x200] sm:$0xff]
      %v3137 = vld [vmem:[#allocation3 + $0x208] sm:$0xff]
      %v3138 = vld [vmem:[#allocation3 + $0x210] sm:$0xff]
      %v3139 = vld [vmem:[#allocation3 + $0x218] sm:$0xff]
      %v3140 = vld [vmem:[#allocation3 + $0x220] sm:$0xff]
      %v3141 = vld [vmem:[#allocation3 + $0x228] sm:$0xff]
      %v3142 = vld [vmem:[#allocation3 + $0x230] sm:$0xff]
      %v3143 = vld [vmem:[#allocation3 + $0x238] sm:$0xff]
      %vm3144 = vcmask 261120
      %v3146 = vsel %vm3144, %v3068, 0
      %v3149 = vsel %vm3144, %v3071, 0
      %3151 = vmatprep.subr.mxu0 %v3073
      %3152 = vmatpush1.msra.mxu0 %v3072
      %3153 = vmatprep.subr.mxu0 %v3075
      %3154 = vmatpush1.msra.mxu0 %v3074
      %3155 = vmatprep.subr.mxu0 %v3077
      %3156 = vmatpush1.msra.mxu0 %v3076
      %3157 = vmatprep.subr.mxu0 %v3079
      %3158 = vmatpush1.msra.mxu0 %v3078
      %3159 = vmatprep.subr.mxu0 %v3081
      %3160 = vmatpush1.msra.mxu0 %v3080
      %3161 = vmatprep.subr.mxu0 %v3083
      %3162 = vmatpush1.msra.mxu0 %v3082
      %3163 = vmatprep.subr.mxu0 %v3085
      %3164 = vmatpush1.msra.mxu0 %v3084
      %3165 = vmatprep.subr.mxu0 %v3087
      %3166 = vmatpush1.msra.mxu0 %v3086
      %3167 = vmatprep.subr.mxu0 %v3089
      %3168 = vmatpush1.msra.mxu0 %v3088
      %3169 = vmatprep.subr.mxu0 %v3091
      %3170 = vmatpush1.msra.mxu0 %v3090
      %3171 = vmatprep.subr.mxu0 %v3093
      %3172 = vmatpush1.msra.mxu0 %v3092
      %3173 = vmatprep.subr.mxu0 %v3095
      %3174 = vmatpush1.msra.mxu0 %v3094
      %3175 = vmatprep.subr.mxu0 %v3097
      %3176 = vmatpush1.msra.mxu0 %v3096
      %3177 = vmatprep.subr.mxu0 %v3099
      %3178 = vmatpush1.msra.mxu0 %v3098
      %3179 = vmatprep.subr.mxu0 %v3101
      %3180 = vmatpush1.msra.mxu0 %v3100
      %3181 = vmatprep.subr.mxu0 %v3103
      %3182 = vmatpush1.msra.mxu0 %v3102
      %3183 = vmatprep.subr.mxu0 %v3105
      %3184 = vmatpush1.msra.mxu0 %v3104
      %3185 = vmatprep.subr.mxu0 %v3107
      %3186 = vmatpush1.msra.mxu0 %v3106
      %3187 = vmatprep.subr.mxu0 %v3109
      %3188 = vmatpush1.msra.mxu0 %v3108
      %3189 = vmatprep.subr.mxu0 %v3111
      %3190 = vmatpush1.msra.mxu0 %v3110
      %3191 = vmatprep.subr.mxu0 %v3113
      %3192 = vmatpush1.msra.mxu0 %v3112
      %3193 = vmatprep.subr.mxu0 %v3115
      %3194 = vmatpush1.msra.mxu0 %v3114
      %3195 = vmatprep.subr.mxu0 %v3117
      %3196 = vmatpush1.msra.mxu0 %v3116
      %3197 = vmatprep.subr.mxu0 %v3119
      %3198 = vmatpush1.msra.mxu0 %v3118
      %3199 = vmatprep.subr.mxu0 %v3121
      %3200 = vmatpush1.msra.mxu0 %v3120
      %3201 = vmatprep.subr.mxu0 %v3123
      %3202 = vmatpush1.msra.mxu0 %v3122
      %3203 = vmatprep.subr.mxu0 %v3125
      %3204 = vmatpush1.msra.mxu0 %v3124
      %3205 = vmatprep.subr.mxu0 %v3127
      %3206 = vmatpush1.msra.mxu0 %v3126
      %3207 = vmatprep.subr.mxu0 %v3129
      %3208 = vmatpush1.msra.mxu0 %v3128
      %3209 = vmatprep.subr.mxu0 %v3131
      %3210 = vmatpush1.msra.mxu0 %v3130
      %3211 = vmatprep.subr.mxu0 %v3133
      %3212 = vmatpush1.msra.mxu0 %v3132
      %3213 = vmatprep.subr.mxu0 %v3135
      %3214 = vmatpush1.msra.mxu0 %v3134
      %3215 = vmatprep.mubr.f32.mxu0 %v3067
      %3216 = vmatmul.mubr.f32.gmra.mrb[0].mxu0 %v3066
      %v3217 = vpop.f32.mrb[0].mxu0
      %v3218 = vadd.f32 0.0, %v3217
      %v3219 = vpop.f32.mrb[0].mxu0
      %v3220 = vadd.f32 0.0, %v3219
      %3221 = vmatprep.mubr.f32.mxu0 %v3070
      %3222 = vmatmul.mubr.f32.gmra.mrb[0].mxu0 %v3069
      %v3223 = vpop.f32.mrb[0].mxu0
      %v3224 = vadd.f32 0.0, %v3223
      %v3225 = vpop.f32.mrb[0].mxu0
      %v3226 = vadd.f32 0.0, %v3225
      %3227 = vdwg.mxu0
      %3228 = vmatprep.subr.mxu0 %v3137
      %3229 = vmatpush1.msra.mxu0 %v3136
      %3230 = vmatprep.subr.mxu0 %v3139
      %3231 = vmatpush1.msra.mxu0 %v3138
      %3232 = vmatprep.subr.mxu0 %v3141
      %3233 = vmatpush1.msra.mxu0 %v3140
      %3234 = vmatprep.subr.mxu0 %v3143
      %3235 = vmatpush1.msra.mxu0 %v3142
      %3236 = vmatprep.subr.mxu0 0.0
      %3237 = vmatpush1.msra.mxu0 0.0
      %3238 = vmatprep.subr.mxu0 0.0
      %3239 = vmatpush1.msra.mxu0 0.0
      %3240 = vmatprep.subr.mxu0 0.0
      %3241 = vmatpush1.msra.mxu0 0.0
      %3242 = vmatprep.subr.mxu0 0.0
      %3243 = vmatpush1.msra.mxu0 0.0
      %3244 = vmatprep.subr.mxu0 0.0
      %3245 = vmatpush1.msra.mxu0 0.0
      %3246 = vmatprep.subr.mxu0 0.0
      %3247 = vmatpush1.msra.mxu0 0.0
      %3248 = vmatprep.subr.mxu0 0.0
      %3249 = vmatpush1.msra.mxu0 0.0
      %3250 = vmatprep.subr.mxu0 0.0
      %3251 = vmatpush1.msra.mxu0 0.0
      %3252 = vmatprep.subr.mxu0 0.0
      %3253 = vmatpush1.msra.mxu0 0.0
      %3254 = vmatprep.subr.mxu0 0.0
      %3255 = vmatpush1.msra.mxu0 0.0
      %3256 = vmatprep.subr.mxu0 0.0
      %3257 = vmatpush1.msra.mxu0 0.0
      %3258 = vmatprep.subr.mxu0 0.0
      %3259 = vmatpush1.msra.mxu0 0.0
      %3260 = vmatprep.subr.mxu0 0.0
      %3261 = vmatpush1.msra.mxu0 0.0
      %3262 = vmatprep.subr.mxu0 0.0
      %3263 = vmatpush1.msra.mxu0 0.0
      %3264 = vmatprep.subr.mxu0 0.0
      %3265 = vmatpush1.msra.mxu0 0.0
      %3266 = vmatprep.subr.mxu0 0.0
      %3267 = vmatpush1.msra.mxu0 0.0
      %3268 = vmatprep.subr.mxu0 0.0
      %3269 = vmatpush1.msra.mxu0 0.0
      %3270 = vmatprep.subr.mxu0 0.0
      %3271 = vmatpush1.msra.mxu0 0.0
      %3272 = vmatprep.subr.mxu0 0.0
      %3273 = vmatpush1.msra.mxu0 0.0
      %3274 = vmatprep.subr.mxu0 0.0
      %3275 = vmatpush1.msra.mxu0 0.0
      %3276 = vmatprep.subr.mxu0 0.0
      %3277 = vmatpush1.msra.mxu0 0.0
      %3278 = vmatprep.subr.mxu0 0.0
      %3279 = vmatpush1.msra.mxu0 0.0
      %3280 = vmatprep.subr.mxu0 0.0
      %3281 = vmatpush1.msra.mxu0 0.0
      %3282 = vmatprep.subr.mxu0 0.0
      %3283 = vmatpush1.msra.mxu0 0.0
      %3284 = vmatprep.subr.mxu0 0.0
      %3285 = vmatpush1.msra.mxu0 0.0
      %3286 = vmatprep.subr.mxu0 0.0
      %3287 = vmatpush1.msra.mxu0 0.0
      %3288 = vmatprep.subr.mxu0 0.0
      %3289 = vmatpush1.msra.mxu0 0.0
      %3290 = vmatprep.subr.mxu0 0.0
      %3291 = vmatpush1.msra.mxu0 0.0
      %3292 = vmatprep.mubr.f32.mxu0 0.0
      %3293 = vmatmul.mubr.f32.gmra.mrb[0].mxu0 %v3146
      %v3294 = vpop.f32.mrb[0].mxu0
      %v3295 = vadd.f32 %v3218, %v3294
      %v3296 = vpop.f32.mrb[0].mxu0
      %v3297 = vadd.f32 %v3220, %v3296
      %3298 = vmatprep.mubr.f32.mxu0 0.0
      %3299 = vmatmul.mubr.f32.gmra.mrb[0].mxu0 %v3149
      %v3300 = vpop.f32.mrb[0].mxu0
      %v3301 = vadd.f32 %v3224, %v3300
      %v3302 = vpop.f32.mrb[0].mxu0
      %v3303 = vadd.f32 %v3226, %v3302
      %3304 = vdwg.mxu0
      %3309 = vrot.lane.b32.xlu0 %v3295, 17
      %v3310 = vpop.permute.xlu0 %3309
      %3311 = vrot.lane.b32.xlu0 %v3297, 17
      %v3312 = vpop.permute.xlu0 %3311
      %3313 = vrot.lane.b32.xlu0 %v3301, 17
      %v3314 = vpop.permute.xlu0 %3313
      %3315 = vrot.lane.b32.xlu0 %v3303, 17
      %v3316 = vpop.permute.xlu0 %3315
      %v3317 = vsel %vm751, %v3310, %v3312
      %v3318 = vsel %vm751, %v3314, %v3316
      %3325 = vst.msk [vmem:[#allocation2] sm:$0xff] %vm1506, %v3310
      %3326 = vst [vmem:[#allocation2 + $0x8] sm:$0xff] %v3317
      %3327 = vst.msk [vmem:[#allocation2 + $0x10] sm:$0xff] %vm751, %v3312
      %3328 = vst.msk [vmem:[#allocation2 + $0x18] sm:$0xff] %vm1506, %v3314
      %3329 = vst [vmem:[#allocation2 + $0x20] sm:$0xff] %v3318
      %3330 = vst.msk [vmem:[#allocation2 + $0x28] sm:$0xff] %vm751, %v3316
      %v3331 = vld [vmem:[#allocation2] sm:$0xff]
      %v3332 = vld [vmem:[#allocation2 + $0x8] sm:$0xff]
      %v3333 = vld [vmem:[#allocation2 + $0x10] sm:$0xff]
      %v3334 = vld [vmem:[#allocation2 + $0x18] sm:$0xff]
      %v3335 = vld [vmem:[#allocation2 + $0x20] sm:$0xff]
      %v3336 = vld [vmem:[#allocation2 + $0x28] sm:$0xff]
      %3343 = vrot.lane.b32.xlu0 %v3331, 110
      %v3344 = vpop.permute.xlu0 %3343
      %3345 = vrot.lane.b32.xlu0 %v3332, 110
      %v3346 = vpop.permute.xlu0 %3345
      %3347 = vrot.lane.b32.xlu0 %v3333, 110
      %v3348 = vpop.permute.xlu0 %3347
      %3349 = vrot.lane.b32.xlu0 %v3334, 110
      %v3350 = vpop.permute.xlu0 %3349
      %3351 = vrot.lane.b32.xlu0 %v3335, 110
      %v3352 = vpop.permute.xlu0 %3351
      %3353 = vrot.lane.b32.xlu0 %v3336, 110
      %v3354 = vpop.permute.xlu0 %3353
      %v3355 = vsel %vm944, %v3344, %v3346
      %v3356 = vsel %vm944, %v3346, %v3348
      %v3357 = vsel %vm944, %v3350, %v3352
      %v3358 = vsel %vm944, %v3352, %v3354
      %v3363 = vmax.f32 %v3295, %v3355
      %v3364 = vmax.f32 %v3297, %v3356
      %v3365 = vmax.f32 %v3301, %v3357
      %v3366 = vmax.f32 %v3303, %v3358
      %3367 = vrot.lane.b32.xlu0 %v3331, 127
      %v3368 = vpop.permute.xlu0 %3367
      %3369 = vrot.lane.b32.xlu0 %v3332, 127
      %v3370 = vpop.permute.xlu0 %3369
      %3371 = vrot.lane.b32.xlu0 %v3333, 127
      %v3372 = vpop.permute.xlu0 %3371
      %3373 = vrot.lane.b32.xlu0 %v3334, 127
      %v3374 = vpop.permute.xlu0 %3373
      %3375 = vrot.lane.b32.xlu0 %v3335, 127
      %v3376 = vpop.permute.xlu0 %3375
      %3377 = vrot.lane.b32.xlu0 %v3336, 127
      %v3378 = vpop.permute.xlu0 %3377
      %v3379 = vsel %vm811, %v3368, %v3370
      %v3380 = vsel %vm811, %v3370, %v3372
      %v3381 = vsel %vm811, %v3374, %v3376
      %v3382 = vsel %vm811, %v3376, %v3378
      %v3389 = vmax.f32 %v3331, %v3379
      %v3390 = vmax.f32 %v3332, %v3380
      %v3391 = vmax.f32 %v3333, %v3372
      %v3392 = vmax.f32 %v3334, %v3381
      %v3393 = vmax.f32 %v3335, %v3382
      %v3394 = vmax.f32 %v3336, %v3378
      %3401 = vrot.lane.b32.xlu0 %v3389, 95
      %v3402 = vpop.permute.xlu0 %3401
      %3403 = vrot.lane.b32.xlu0 %v3390, 95
      %v3404 = vpop.permute.xlu0 %3403
      %3405 = vrot.lane.b32.xlu0 %v3391, 95
      %v3406 = vpop.permute.xlu0 %3405
      %3407 = vrot.lane.b32.xlu0 %v3392, 95
      %v3408 = vpop.permute.xlu0 %3407
      %3409 = vrot.lane.b32.xlu0 %v3393, 95
      %v3410 = vpop.permute.xlu0 %3409
      %3411 = vrot.lane.b32.xlu0 %v3394, 95
      %v3412 = vpop.permute.xlu0 %3411
      %v3413 = vsel %vm1025, %v3402, %v3404
      %v3414 = vsel %vm1025, %v3404, %v3406
      %v3415 = vsel %vm1025, %v3408, %v3410
      %v3416 = vsel %vm1025, %v3410, %v3412
      %v3421 = vmax.f32 %v3363, %v3413
      %v3422 = vmax.f32 %v3364, %v3414
      %v3423 = vmax.f32 %v3365, %v3415
      %v3424 = vmax.f32 %v3366, %v3416
      %v3425 = vld [vmem:[%s22] sm:$0xff]
      %v3426 = vld [vmem:[%s22 + $0x8] sm:$0xff]
      %v3427 = vld [vmem:[%s22 + $0x10] sm:$0xff]
      %v3428 = vld [vmem:[%s22 + $0x18] sm:$0xff]
      %v3429 = vld [vmem:[%s22 + $0x20] sm:$0xff]
      %v3430 = vld [vmem:[%s22 + $0x28] sm:$0xff]
      %v3431 = vld [vmem:[%s22 + $0x30] sm:$0xff]
      %v3432 = vld [vmem:[%s22 + $0x38] sm:$0xff]
      %v3433 = vld [vmem:[%s22 + $0x40] sm:$0xff]
      %v3434 = vld [vmem:[%s22 + $0x48] sm:$0xff]
      %v3435 = vld [vmem:[%s22 + $0x50] sm:$0xff]
      %v3436 = vld [vmem:[%s22 + $0x58] sm:$0xff]
      %v3437 = vld [vmem:[%s22 + $0x60] sm:$0xff]
      %v3438 = vld [vmem:[%s22 + $0x68] sm:$0xff]
      %v3439 = vld [vmem:[%s22 + $0x70] sm:$0xff]
      %v3440 = vld [vmem:[%s22 + $0x78] sm:$0xff]
      %v3441 = vld [vmem:[%s22 + $0x80] sm:$0xff]
      %v3442 = vld [vmem:[%s22 + $0x88] sm:$0xff]
      %v3443 = vld [vmem:[%s22 + $0x90] sm:$0xff]
      %v3444 = vld [vmem:[%s22 + $0x98] sm:$0xff]
      %v3445 = vld [vmem:[%s22 + $0xa0] sm:$0xff]
      %v3446 = vld [vmem:[%s22 + $0xa8] sm:$0xff]
      %v3447 = vld [vmem:[%s22 + $0xb0] sm:$0xff]
      %v3448 = vld [vmem:[%s22 + $0xb8] sm:$0xff]
      %v3449 = vld [vmem:[%s22 + $0xc0] sm:$0xff]
      %v3450 = vld [vmem:[%s22 + $0xc8] sm:$0xff]
      %v3451 = vld [vmem:[%s22 + $0xd0] sm:$0xff]
      %v3452 = vld [vmem:[%s22 + $0xd8] sm:$0xff]
      %v3453 = vld [vmem:[%s22 + $0xe0] sm:$0xff]
      %v3454 = vld [vmem:[%s22 + $0xe8] sm:$0xff]
      %v3455 = vld [vmem:[%s22 + $0xf0] sm:$0xff]
      %v3456 = vld [vmem:[%s22 + $0xf8] sm:$0xff]
      %3457 = vmatprep.subr.mxu0 0.0
      %3458 = vmatpush1.msra.mxu0 %v3425
      %3459 = vmatprep.subr.mxu0 0.0
      %3460 = vmatpush1.msra.mxu0 %v3426
      %3461 = vmatprep.subr.mxu0 0.0
      %3462 = vmatpush1.msra.mxu0 %v3427
      %3463 = vmatprep.subr.mxu0 0.0
      %3464 = vmatpush1.msra.mxu0 %v3428
      %3465 = vmatprep.subr.mxu0 0.0
      %3466 = vmatpush1.msra.mxu0 %v3429
      %3467 = vmatprep.subr.mxu0 0.0
      %3468 = vmatpush1.msra.mxu0 %v3430
      %3469 = vmatprep.subr.mxu0 0.0
      %3470 = vmatpush1.msra.mxu0 %v3431
      %3471 = vmatprep.subr.mxu0 0.0
      %3472 = vmatpush1.msra.mxu0 %v3432
      %3473 = vmatprep.subr.mxu0 0.0
      %3474 = vmatpush1.msra.mxu0 %v3433
      %3475 = vmatprep.subr.mxu0 0.0
      %3476 = vmatpush1.msra.mxu0 %v3434
      %3477 = vmatprep.subr.mxu0 0.0
      %3478 = vmatpush1.msra.mxu0 %v3435
      %3479 = vmatprep.subr.mxu0 0.0
      %3480 = vmatpush1.msra.mxu0 %v3436
      %3481 = vmatprep.subr.mxu0 0.0
      %3482 = vmatpush1.msra.mxu0 %v3437
      %3483 = vmatprep.subr.mxu0 0.0
      %3484 = vmatpush1.msra.mxu0 %v3438
      %3485 = vmatprep.subr.mxu0 0.0
      %3486 = vmatpush1.msra.mxu0 %v3439
      %3487 = vmatprep.subr.mxu0 0.0
      %3488 = vmatpush1.msra.mxu0 %v3440
      %3489 = vmatprep.subr.mxu0 0.0
      %3490 = vmatpush1.msra.mxu0 %v3441
      %3491 = vmatprep.subr.mxu0 0.0
      %3492 = vmatpush1.msra.mxu0 %v3442
      %3493 = vmatprep.subr.mxu0 0.0
      %3494 = vmatpush1.msra.mxu0 %v3443
      %3495 = vmatprep.subr.mxu0 0.0
      %3496 = vmatpush1.msra.mxu0 %v3444
      %3497 = vmatprep.subr.mxu0 0.0
      %3498 = vmatpush1.msra.mxu0 %v3445
      %3499 = vmatprep.subr.mxu0 0.0
      %3500 = vmatpush1.msra.mxu0 %v3446
      %3501 = vmatprep.subr.mxu0 0.0
      %3502 = vmatpush1.msra.mxu0 %v3447
      %3503 = vmatprep.subr.mxu0 0.0
      %3504 = vmatpush1.msra.mxu0 %v3448
      %3505 = vmatprep.subr.mxu0 0.0
      %3506 = vmatpush1.msra.mxu0 %v3449
      %3507 = vmatprep.subr.mxu0 0.0
      %3508 = vmatpush1.msra.mxu0 %v3450
      %3509 = vmatprep.subr.mxu0 0.0
      %3510 = vmatpush1.msra.mxu0 %v3451
      %3511 = vmatprep.subr.mxu0 0.0
      %3512 = vmatpush1.msra.mxu0 %v3452
      %3513 = vmatprep.subr.mxu0 0.0
      %3514 = vmatpush1.msra.mxu0 %v3453
      %3515 = vmatprep.subr.mxu0 0.0
      %3516 = vmatpush1.msra.mxu0 %v3454
      %3517 = vmatprep.subr.mxu0 0.0
      %3518 = vmatpush1.msra.mxu0 %v3455
      %3519 = vmatprep.subr.mxu0 0.0
      %3520 = vmatpush1.msra.mxu0 %v3456
      %3521 = vmatprep.mubr.f32.mxu0 %v3422
      %3522 = vmatmul.mubr.f32.gmra.mrb[0].mxu0 %v3421
      %v3523 = vpop.f32.mrb[0].mxu0
      %v3524 = vadd.f32 0.0, %v3523
      %v3525 = vpop.f32.mrb[0].mxu0
      %3526 = vmatprep.mubr.f32.mxu0 %v3424
      %3527 = vmatmul.mubr.f32.gmra.mrb[0].mxu0 %v3423
      %v3528 = vpop.f32.mrb[0].mxu0
      %v3529 = vadd.f32 0.0, %v3528
      %v3530 = vpop.f32.mrb[0].mxu0
      %3531 = vdwg.mxu0
      %v3532 = vld [vmem:[%s14] sm:$0xff]
      %v3533 = vld [vmem:[%s14 + $0x8] sm:$0xff]
      %3535 = vset.pattern.permute.xlu0 0
      %3536 = vperm.xlu0 %3535, %v3532
      %v3537 = vpop.permute.xlu0 %3536
      %3540 = vset.pattern.permute.xlu0 0
      %3541 = vperm.xlu0 %3540, %v3533
      %v3542 = vpop.permute.xlu0 %3541
      %v3544 = vmul.f32 %v3524, %v3537
      %v3545 = vmul.f32 %v3529, %v3542
      %v3546 = vld [vmem:[%s15] sm:$0xff]
      %v3547 = vld [vmem:[%s15 + $0x8] sm:$0xff]
      %3549 = vset.pattern.permute.xlu0 0
      %3550 = vperm.xlu0 %3549, %v3546
      %v3551 = vpop.permute.xlu0 %3550
      %3554 = vset.pattern.permute.xlu0 0
      %3555 = vperm.xlu0 %3554, %v3547
      %v3556 = vpop.permute.xlu0 %3555
      %v3558 = vadd.f32 %v3544, %v3551
      %v3559 = vadd.f32 %v3545, %v3556
      %v3560 = vmax.f32 %v3558, 0.0
      %v3561 = vmax.f32 %v3559, 0.0
      %vm3562 = vcmask 736904
      %3563 = vst.msk [vmem:[#allocation2] sm:$0xff] %vm3562, 0.0
      %3564 = vst.msk [vmem:[#allocation2 + $0x18] sm:$0xff] %vm3562, 0.0
      %3567 = vrot.lane.b32.xlu0 %v3560, 17
      %v3568 = vpop.permute.xlu0 %3567
      %3569 = vrot.lane.b32.xlu0 %v3561, 17
      %v3570 = vpop.permute.xlu0 %3569
      %vm3573 = vcmask 662664
      %3574 = vst.msk [vmem:[#allocation2] sm:$0xff] %vm3573, %v3568
      %3575 = vst.msk [vmem:[#allocation2 + $0x18] sm:$0xff] %vm3573, %v3570
      %v3576 = vand.u32 %v761, 7
      %vm3577 = vcmp.ge.s32.totalorder %v3576, 1
      %vm3578 = vcmp.le.s32.totalorder %v3576, 6
      %v3579 = vld [vmem:[#allocation2] sm:$0xff]
      %v3580 = vld [vmem:[#allocation2 + $0x18] sm:$0xff]
      %v3581 = vsel %vm3577, 1, 0
      %vm3582 = vcmp.eq.s32.totalorder %v3581, 1
      %3585 = vrot.lane.b32.xlu0 %v3579, 120
      %v3586 = vpop.permute.xlu0 %3585
      %3587 = vrot.lane.b32.xlu0 %v3580, 120
      %v3588 = vpop.permute.xlu0 %3587
      %v3591 = vsel %vm3582, %v3586, 0.0
      %v3592 = vsel %vm3582, %v3588, 0.0
      %vm3593 = vcmask 523264
      %3594 = vst.msk [vmem:[#allocation3] sm:$0xff] %vm3593, %v3591
      %3595 = vst.msk [vmem:[#allocation3 + $0x10] sm:$0xff] %vm3593, %v3592
      %v3596 = vld [vmem:[#allocation2] sm:$0xff]
      %v3597 = vld [vmem:[#allocation2 + $0x18] sm:$0xff]
      %3600 = vrot.lane.b32.xlu0 %v3596, 119
      %v3601 = vpop.permute.xlu0 %3600
      %3602 = vrot.lane.b32.xlu0 %v3597, 119
      %v3603 = vpop.permute.xlu0 %3602
      %3606 = vst.msk [vmem:[#allocation3 + $0x20] sm:$0xff] %vm3593, %v3601
      %3607 = vst.msk [vmem:[#allocation3 + $0x30] sm:$0xff] %vm3593, %v3603
      %v3608 = vld [vmem:[#allocation2] sm:$0xff]
      %v3609 = vld [vmem:[#allocation2 + $0x18] sm:$0xff]
      %v3610 = vsel %vm3578, 1, 0
      %vm3611 = vcmp.eq.s32.totalorder %v3610, 1
      %3614 = vrot.lane.b32.xlu0 %v3608, 118
      %v3615 = vpop.permute.xlu0 %3614
      %3616 = vrot.lane.b32.xlu0 %v3609, 118
      %v3617 = vpop.permute.xlu0 %3616
      %v3620 = vsel %vm3611, %v3615, 0.0
      %v3621 = vsel %vm3611, %v3617, 0.0
      %3622 = vst.msk [vmem:[#allocation3 + $0x40] sm:$0xff] %vm3593, %v3620
      %3623 = vst.msk [vmem:[#allocation3 + $0x50] sm:$0xff] %vm3593, %v3621
      %v3624 = vld [vmem:[#allocation2] sm:$0xff]
      %v3625 = vld [vmem:[#allocation2 + $0x18] sm:$0xff]
      %3628 = vrot.lane.b32.xlu0 %v3624, 112
      %v3629 = vpop.permute.xlu0 %3628
      %3630 = vrot.lane.b32.xlu0 %v3625, 112
      %v3631 = vpop.permute.xlu0 %3630
      %v3634 = vsel %vm3582, %v3629, 0.0
      %v3635 = vsel %vm3582, %v3631, 0.0
      %3636 = vst.msk [vmem:[#allocation3 + $0x60] sm:$0xff] %vm3593, %v3634
      %3637 = vst.msk [vmem:[#allocation3 + $0x70] sm:$0xff] %vm3593, %v3635
      %v3638 = vld [vmem:[#allocation2] sm:$0xff]
      %v3639 = vld [vmem:[#allocation2 + $0x18] sm:$0xff]
      %3642 = vrot.lane.b32.xlu0 %v3638, 111
      %v3643 = vpop.permute.xlu0 %3642
      %3644 = vrot.lane.b32.xlu0 %v3639, 111
      %v3645 = vpop.permute.xlu0 %3644
      %3648 = vst.msk [vmem:[#allocation3 + $0x80] sm:$0xff] %vm3593, %v3643
      %3649 = vst.msk [vmem:[#allocation3 + $0x90] sm:$0xff] %vm3593, %v3645
      %v3650 = vld [vmem:[#allocation2] sm:$0xff]
      %v3651 = vld [vmem:[#allocation2 + $0x18] sm:$0xff]
      %3654 = vrot.lane.b32.xlu0 %v3650, 110
      %v3655 = vpop.permute.xlu0 %3654
      %3656 = vrot.lane.b32.xlu0 %v3651, 110
      %v3657 = vpop.permute.xlu0 %3656
      %v3660 = vsel %vm3611, %v3655, 0.0
      %v3661 = vsel %vm3611, %v3657, 0.0
      %3662 = vst.msk [vmem:[#allocation3 + $0xa0] sm:$0xff] %vm3593, %v3660
      %3663 = vst.msk [vmem:[#allocation3 + $0xb0] sm:$0xff] %vm3593, %v3661
      %v3664 = vld [vmem:[#allocation2] sm:$0xff]
      %v3665 = vld [vmem:[#allocation2 + $0x18] sm:$0xff]
      %3668 = vrot.lane.b32.xlu0 %v3664, 104
      %v3669 = vpop.permute.xlu0 %3668
      %3670 = vrot.lane.b32.xlu0 %v3665, 104
      %v3671 = vpop.permute.xlu0 %3670
      %v3674 = vsel %vm3582, %v3669, 0.0
      %v3675 = vsel %vm3582, %v3671, 0.0
      %3676 = vst.msk [vmem:[#allocation3 + $0xc0] sm:$0xff] %vm3593, %v3674
      %3677 = vst.msk [vmem:[#allocation3 + $0xd0] sm:$0xff] %vm3593, %v3675
      %v3678 = vld [vmem:[#allocation2] sm:$0xff]
      %v3679 = vld [vmem:[#allocation2 + $0x18] sm:$0xff]
      %3682 = vrot.lane.b32.xlu0 %v3678, 103
      %v3683 = vpop.permute.xlu0 %3682
      %3684 = vrot.lane.b32.xlu0 %v3679, 103
      %v3685 = vpop.permute.xlu0 %3684
      %3688 = vst.msk [vmem:[#allocation3 + $0xe0] sm:$0xff] %vm3593, %v3683
      %3689 = vst.msk [vmem:[#allocation3 + $0xf0] sm:$0xff] %vm3593, %v3685
      %v3690 = vld [vmem:[#allocation2] sm:$0xff]
      %v3691 = vld [vmem:[#allocation2 + $0x18] sm:$0xff]
      %3694 = vrot.lane.b32.xlu0 %v3690, 102
      %v3695 = vpop.permute.xlu0 %3694
      %3696 = vrot.lane.b32.xlu0 %v3691, 102
      %v3697 = vpop.permute.xlu0 %3696
      %v3700 = vsel %vm3611, %v3695, 0.0
      %v3701 = vsel %vm3611, %v3697, 0.0
      %3702 = vst.msk [vmem:[#allocation3 + $0x100] sm:$0xff] %vm3593, %v3700
      %3703 = vst.msk [vmem:[#allocation3 + $0x110] sm:$0xff] %vm3593, %v3701
      %v3704 = vld [vmem:[%s16] sm:$0xff]
      %v3705 = vld [vmem:[%s16 + $0x8] sm:$0xff]
      %v3706 = vld [vmem:[#allocation3] sm:$0xff]
      %v3707 = vld [vmem:[#allocation3 + $0x10] sm:$0xff]
      %v3708 = vld [vmem:[#allocation3 + $0x20] sm:$0xff]
      %v3709 = vld [vmem:[#allocation3 + $0x30] sm:$0xff]
      %v3710 = vld [vmem:[#allocation3 + $0x40] sm:$0xff]
      %v3711 = vld [vmem:[#allocation3 + $0x50] sm:$0xff]
      %v3712 = vld [vmem:[#allocation3 + $0x60] sm:$0xff]
      %v3713 = vld [vmem:[#allocation3 + $0x70] sm:$0xff]
      %v3714 = vld [vmem:[#allocation3 + $0x80] sm:$0xff]
      %v3715 = vld [vmem:[#allocation3 + $0x90] sm:$0xff]
      %v3716 = vld [vmem:[#allocation3 + $0xa0] sm:$0xff]
      %v3717 = vld [vmem:[#allocation3 + $0xb0] sm:$0xff]
      %v3718 = vld [vmem:[#allocation3 + $0xc0] sm:$0xff]
      %v3719 = vld [vmem:[#allocation3 + $0xd0] sm:$0xff]
      %v3720 = vld [vmem:[#allocation3 + $0xe0] sm:$0xff]
      %v3721 = vld [vmem:[#allocation3 + $0xf0] sm:$0xff]
      %v3722 = vld [vmem:[#allocation3 + $0x100] sm:$0xff]
      %v3723 = vld [vmem:[#allocation3 + $0x110] sm:$0xff]
      %v3725 = vsel %vm2200, %v3705, 0
      %3727 = vmatprep.subr.mxu0 0.0
      %3728 = vmatpush1.msra.mxu0 %v3706
      %3729 = vmatprep.subr.mxu0 0.0
      %3730 = vmatpush1.msra.mxu0 %v3707
      %3731 = vmatprep.subr.mxu0 0.0
      %3732 = vmatpush1.msra.mxu0 %v3708
      %3733 = vmatprep.subr.mxu0 0.0
      %3734 = vmatpush1.msra.mxu0 %v3709
      %3735 = vmatprep.subr.mxu0 0.0
      %3736 = vmatpush1.msra.mxu0 %v3710
      %3737 = vmatprep.subr.mxu0 0.0
      %3738 = vmatpush1.msra.mxu0 %v3711
      %3739 = vmatprep.subr.mxu0 0.0
      %3740 = vmatpush1.msra.mxu0 %v3712
      %3741 = vmatprep.subr.mxu0 0.0
      %3742 = vmatpush1.msra.mxu0 %v3713
      %3743 = vmatprep.subr.mxu0 0.0
      %3744 = vmatpush1.msra.mxu0 %v3714
      %3745 = vmatprep.subr.mxu0 0.0
      %3746 = vmatpush1.msra.mxu0 %v3715
      %3747 = vmatprep.subr.mxu0 0.0
      %3748 = vmatpush1.msra.mxu0 %v3716
      %3749 = vmatprep.subr.mxu0 0.0
      %3750 = vmatpush1.msra.mxu0 %v3717
      %3751 = vmatprep.subr.mxu0 0.0
      %3752 = vmatpush1.msra.mxu0 %v3718
      %3753 = vmatprep.subr.mxu0 0.0
      %3754 = vmatpush1.msra.mxu0 %v3719
      %3755 = vmatprep.subr.mxu0 0.0
      %3756 = vmatpush1.msra.mxu0 %v3720
      %3757 = vmatprep.subr.mxu0 0.0
      %3758 = vmatpush1.msra.mxu0 %v3721
      %3759 = vmatprep.subr.mxu0 0.0
      %3760 = vmatpush1.msra.mxu0 %v3722
      %3761 = vmatprep.subr.mxu0 0.0
      %3762 = vmatpush1.msra.mxu0 %v3723
      %3763 = vmatprep.subr.mxu0 0.0
      %3764 = vmatpush1.msra.mxu0 0.0
      %3765 = vmatprep.subr.mxu0 0.0
      %3766 = vmatpush1.msra.mxu0 0.0
      %3767 = vmatprep.subr.mxu0 0.0
      %3768 = vmatpush1.msra.mxu0 0.0
      %3769 = vmatprep.subr.mxu0 0.0
      %3770 = vmatpush1.msra.mxu0 0.0
      %3771 = vmatprep.subr.mxu0 0.0
      %3772 = vmatpush1.msra.mxu0 0.0
      %3773 = vmatprep.subr.mxu0 0.0
      %3774 = vmatpush1.msra.mxu0 0.0
      %3775 = vmatprep.subr.mxu0 0.0
      %3776 = vmatpush1.msra.mxu0 0.0
      %3777 = vmatprep.subr.mxu0 0.0
      %3778 = vmatpush1.msra.mxu0 0.0
      %3779 = vmatprep.subr.mxu0 0.0
      %3780 = vmatpush1.msra.mxu0 0.0
      %3781 = vmatprep.subr.mxu0 0.0
      %3782 = vmatpush1.msra.mxu0 0.0
      %3783 = vmatprep.subr.mxu0 0.0
      %3784 = vmatpush1.msra.mxu0 0.0
      %3785 = vmatprep.subr.mxu0 0.0
      %3786 = vmatpush1.msra.mxu0 0.0
      %3787 = vmatprep.subr.mxu0 0.0
      %3788 = vmatpush1.msra.mxu0 0.0
      %3789 = vmatprep.subr.mxu0 0.0
      %3790 = vmatpush1.msra.mxu0 0.0
      %3791 = vmatprep.mubr.f32.mxu0 %v3725
      %3792 = vmatmul.mubr.f32.gmra.mrb[0].mxu0 %v3704
      %v3793 = vpop.f32.mrb[0].mxu0
      %v3794 = vadd.f32 0.0, %v3793
      %v3795 = vpop.f32.mrb[0].mxu0
      %3796 = vdwg.mxu0
      %3798 = vrot.lane.b32.xlu0 %v3794, 17
      %v3799 = vpop.permute.xlu0 %3798
      %3801 = vst.msk [vmem:[#allocation2] sm:$0xff] %vm3573, %v3799
      %v3802 = vld [vmem:[#allocation2] sm:$0xff]
      %3804 = vrot.lane.b32.xlu0 %v3802, 110
      %v3805 = vpop.permute.xlu0 %3804
      %v3807 = vmax.f32 %v3794, %v3805
      %3808 = vrot.lane.b32.xlu0 %v3802, 127
      %v3809 = vpop.permute.xlu0 %3808
      %v3811 = vmax.f32 %v3802, %v3809
      %3813 = vrot.lane.b32.xlu0 %v3811, 103
      %v3814 = vpop.permute.xlu0 %3813
      %v3816 = vmax.f32 %v3807, %v3814
      %v3817 = vld [vmem:[%s23] sm:$0xff]
      %v3818 = vld [vmem:[%s23 + $0x8] sm:$0xff]
      %v3819 = vld [vmem:[%s23 + $0x10] sm:$0xff]
      %v3820 = vld [vmem:[%s23 + $0x18] sm:$0xff]
      %v3821 = vld [vmem:[%s23 + $0x20] sm:$0xff]
      %v3822 = vld [vmem:[%s23 + $0x28] sm:$0xff]
      %v3823 = vld [vmem:[%s23 + $0x30] sm:$0xff]
      %v3824 = vld [vmem:[%s23 + $0x38] sm:$0xff]
      %v3826 = vsel %vm3593, %v3816, 0
      %3828 = vmatprep.subr.mxu0 0.0
      %3829 = vmatpush1.msra.mxu0 %v3817
      %3830 = vmatprep.subr.mxu0 0.0
      %3831 = vmatpush1.msra.mxu0 %v3818
      %3832 = vmatprep.subr.mxu0 0.0
      %3833 = vmatpush1.msra.mxu0 %v3819
      %3834 = vmatprep.subr.mxu0 0.0
      %3835 = vmatpush1.msra.mxu0 %v3820
      %3836 = vmatprep.subr.mxu0 0.0
      %3837 = vmatpush1.msra.mxu0 %v3821
      %3838 = vmatprep.subr.mxu0 0.0
      %3839 = vmatpush1.msra.mxu0 %v3822
      %3840 = vmatprep.subr.mxu0 0.0
      %3841 = vmatpush1.msra.mxu0 %v3823
      %3842 = vmatprep.subr.mxu0 0.0
      %3843 = vmatpush1.msra.mxu0 %v3824
      %3844 = vmatprep.subr.mxu0 0.0
      %3845 = vmatpush1.msra.mxu0 0.0
      %3846 = vmatprep.subr.mxu0 0.0
      %3847 = vmatpush1.msra.mxu0 0.0
      %3848 = vmatprep.subr.mxu0 0.0
      %3849 = vmatpush1.msra.mxu0 0.0
      %3850 = vmatprep.subr.mxu0 0.0
      %3851 = vmatpush1.msra.mxu0 0.0
      %3852 = vmatprep.subr.mxu0 0.0
      %3853 = vmatpush1.msra.mxu0 0.0
      %3854 = vmatprep.subr.mxu0 0.0
      %3855 = vmatpush1.msra.mxu0 0.0
      %3856 = vmatprep.subr.mxu0 0.0
      %3857 = vmatpush1.msra.mxu0 0.0
      %3858 = vmatprep.subr.mxu0 0.0
      %3859 = vmatpush1.msra.mxu0 0.0
      %3860 = vmatprep.subr.mxu0 0.0
      %3861 = vmatpush1.msra.mxu0 0.0
      %3862 = vmatprep.subr.mxu0 0.0
      %3863 = vmatpush1.msra.mxu0 0.0
      %3864 = vmatprep.subr.mxu0 0.0
      %3865 = vmatpush1.msra.mxu0 0.0
      %3866 = vmatprep.subr.mxu0 0.0
      %3867 = vmatpush1.msra.mxu0 0.0
      %3868 = vmatprep.subr.mxu0 0.0
      %3869 = vmatpush1.msra.mxu0 0.0
      %3870 = vmatprep.subr.mxu0 0.0
      %3871 = vmatpush1.msra.mxu0 0.0
      %3872 = vmatprep.subr.mxu0 0.0
      %3873 = vmatpush1.msra.mxu0 0.0
      %3874 = vmatprep.subr.mxu0 0.0
      %3875 = vmatpush1.msra.mxu0 0.0
      %3876 = vmatprep.subr.mxu0 0.0
      %3877 = vmatpush1.msra.mxu0 0.0
      %3878 = vmatprep.subr.mxu0 0.0
      %3879 = vmatpush1.msra.mxu0 0.0
      %3880 = vmatprep.subr.mxu0 0.0
      %3881 = vmatpush1.msra.mxu0 0.0
      %3882 = vmatprep.subr.mxu0 0.0
      %3883 = vmatpush1.msra.mxu0 0.0
      %3884 = vmatprep.subr.mxu0 0.0
      %3885 = vmatpush1.msra.mxu0 0.0
      %3886 = vmatprep.subr.mxu0 0.0
      %3887 = vmatpush1.msra.mxu0 0.0
      %3888 = vmatprep.subr.mxu0 0.0
      %3889 = vmatpush1.msra.mxu0 0.0
      %3890 = vmatprep.subr.mxu0 0.0
      %3891 = vmatpush1.msra.mxu0 0.0
      %3892 = vmatprep.mubr.f32.mxu0 0.0
      %3893 = vmatmul.mubr.f32.gmra.mrb[0].mxu0 %v3826
      %v3894 = vpop.f32.mrb[0].mxu0
      %v3895 = vadd.f32 0.0, %v3894
      %v3896 = vpop.f32.mrb[0].mxu0
      %3897 = vdwg.mxu0
      %v3898 = vld [vmem:[%s17] sm:$0xff]
      %3900 = vset.pattern.permute.xlu0 0
      %3901 = vperm.xlu0 %3900, %v3898
      %v3902 = vpop.permute.xlu0 %3901
      %v3904 = vmul.f32 %v3895, %v3902
      %v3905 = vld [vmem:[%s18] sm:$0xff]
      %3907 = vset.pattern.permute.xlu0 0
      %3908 = vperm.xlu0 %3907, %v3905
      %v3909 = vpop.permute.xlu0 %3908
      %v3911 = vadd.f32 %v3904, %v3909
      %v3912 = vmax.f32 %v3911, 0.0
      %vm3913 = vcmask 310536
      %3914 = vst.msk [vmem:[#allocation2] sm:$0xff] %vm3913, 0.0
      %3916 = vrot.lane.b32.xlu0 %v3912, 17
      %v3917 = vpop.permute.xlu0 %3916
      %vm3919 = vcmask 269448
      %3920 = vst.msk [vmem:[#allocation2] sm:$0xff] %vm3919, %v3917
      %v3921 = vand.u32 %v761, 3
      %vm3922 = vcmp.ge.s32.totalorder %v3921, 1
      %vm3923 = vcmp.le.s32.totalorder %v3921, 2
      %v3924 = vld [vmem:[#allocation2] sm:$0xff]
      %v3925 = vsel %vm3922, 1, 0
      %vm3926 = vcmp.eq.s32.totalorder %v3925, 1
      %3928 = vrot.lane.b32.xlu0 %v3924, 116
      %v3929 = vpop.permute.xlu0 %3928
      %v3931 = vsel %vm3926, %v3929, 0.0
      %3932 = vst.msk [vmem:[#allocation3] sm:$0xff] %vm2200, %v3931
      %v3933 = vld [vmem:[#allocation2] sm:$0xff]
      %3935 = vrot.lane.b32.xlu0 %v3933, 115
      %v3936 = vpop.permute.xlu0 %3935
      %3938 = vst.msk [vmem:[#allocation3 + $0x10] sm:$0xff] %vm2200, %v3936
      %v3939 = vld [vmem:[#allocation2] sm:$0xff]
      %v3940 = vsel %vm3923, 1, 0
      %vm3941 = vcmp.eq.s32.totalorder %v3940, 1
      %3943 = vrot.lane.b32.xlu0 %v3939, 114
      %v3944 = vpop.permute.xlu0 %3943
      %v3946 = vsel %vm3941, %v3944, 0.0
      %3947 = vst.msk [vmem:[#allocation3 + $0x20] sm:$0xff] %vm2200, %v3946
      %v3948 = vld [vmem:[#allocation2] sm:$0xff]
      %3950 = vrot.lane.b32.xlu0 %v3948, 112
      %v3951 = vpop.permute.xlu0 %3950
      %v3953 = vsel %vm3926, %v3951, 0.0
      %3954 = vst.msk [vmem:[#allocation3 + $0x30] sm:$0xff] %vm2200, %v3953
      %v3955 = vld [vmem:[#allocation2] sm:$0xff]
      %3957 = vrot.lane.b32.xlu0 %v3955, 111
      %v3958 = vpop.permute.xlu0 %3957
      %3960 = vst.msk [vmem:[#allocation3 + $0x40] sm:$0xff] %vm2200, %v3958
      %v3961 = vld [vmem:[#allocation2] sm:$0xff]
      %3963 = vrot.lane.b32.xlu0 %v3961, 110
      %v3964 = vpop.permute.xlu0 %3963
      %v3966 = vsel %vm3941, %v3964, 0.0
      %3967 = vst.msk [vmem:[#allocation3 + $0x50] sm:$0xff] %vm2200, %v3966
      %v3968 = vld [vmem:[#allocation2] sm:$0xff]
      %3970 = vrot.lane.b32.xlu0 %v3968, 108
      %v3971 = vpop.permute.xlu0 %3970
      %v3973 = vsel %vm3926, %v3971, 0.0
      %3974 = vst.msk [vmem:[#allocation3 + $0x60] sm:$0xff] %vm2200, %v3973
      %v3975 = vld [vmem:[#allocation2] sm:$0xff]
      %3977 = vrot.lane.b32.xlu0 %v3975, 107
      %v3978 = vpop.permute.xlu0 %3977
      %3980 = vst.msk [vmem:[#allocation3 + $0x70] sm:$0xff] %vm2200, %v3978
      %v3981 = vld [vmem:[#allocation2] sm:$0xff]
      %3983 = vrot.lane.b32.xlu0 %v3981, 106
      %v3984 = vpop.permute.xlu0 %3983
      %v3986 = vsel %vm3941, %v3984, 0.0
      %3987 = vst.msk [vmem:[#allocation3 + $0x80] sm:$0xff] %vm2200, %v3986
      %v3988 = vld [vmem:[%s19] sm:$0x3]
      %v3989 = vld [vmem:[#allocation3] sm:$0xff]
      %v3990 = vld [vmem:[#allocation3 + $0x10] sm:$0xff]
      %v3991 = vld [vmem:[#allocation3 + $0x20] sm:$0xff]
      %v3992 = vld [vmem:[#allocation3 + $0x30] sm:$0xff]
      %v3993 = vld [vmem:[#allocation3 + $0x40] sm:$0xff]
      %v3994 = vld [vmem:[#allocation3 + $0x50] sm:$0xff]
      %v3995 = vld [vmem:[#allocation3 + $0x60] sm:$0xff]
      %v3996 = vld [vmem:[#allocation3 + $0x70] sm:$0xff]
      %v3997 = vld [vmem:[#allocation3 + $0x80] sm:$0xff]
      %v3999 = vsel %vm1690, %v3988, 0
      %4001 = vmatprep.subr.mxu0 0.0
      %4002 = vmatpush1.msra.mxu0 %v3989
      %4003 = vmatprep.subr.mxu0 0.0
      %4004 = vmatpush1.msra.mxu0 %v3990
      %4005 = vmatprep.subr.mxu0 0.0
      %4006 = vmatpush1.msra.mxu0 %v3991
      %4007 = vmatprep.subr.mxu0 0.0
      %4008 = vmatpush1.msra.mxu0 %v3992
      %4009 = vmatprep.subr.mxu0 0.0
      %4010 = vmatpush1.msra.mxu0 %v3993
      %4011 = vmatprep.subr.mxu0 0.0
      %4012 = vmatpush1.msra.mxu0 %v3994
      %4013 = vmatprep.subr.mxu0 0.0
      %4014 = vmatpush1.msra.mxu0 %v3995
      %4015 = vmatprep.subr.mxu0 0.0
      %4016 = vmatpush1.msra.mxu0 %v3996
      %4017 = vmatprep.subr.mxu0 0.0
      %4018 = vmatpush1.msra.mxu0 %v3997
      %4019 = vmatprep.subr.mxu0 0.0
      %4020 = vmatpush1.msra.mxu0 0.0
      %4021 = vmatprep.subr.mxu0 0.0
      %4022 = vmatpush1.msra.mxu0 0.0
      %4023 = vmatprep.subr.mxu0 0.0
      %4024 = vmatpush1.msra.mxu0 0.0
      %4025 = vmatprep.subr.mxu0 0.0
      %4026 = vmatpush1.msra.mxu0 0.0
      %4027 = vmatprep.subr.mxu0 0.0
      %4028 = vmatpush1.msra.mxu0 0.0
      %4029 = vmatprep.subr.mxu0 0.0
      %4030 = vmatpush1.msra.mxu0 0.0
      %4031 = vmatprep.subr.mxu0 0.0
      %4032 = vmatpush1.msra.mxu0 0.0
      %4033 = vmatprep.subr.mxu0 0.0
      %4034 = vmatpush1.msra.mxu0 0.0
      %4035 = vmatprep.subr.mxu0 0.0
      %4036 = vmatpush1.msra.mxu0 0.0
      %4037 = vmatprep.subr.mxu0 0.0
      %4038 = vmatpush1.msra.mxu0 0.0
      %4039 = vmatprep.subr.mxu0 0.0
      %4040 = vmatpush1.msra.mxu0 0.0
      %4041 = vmatprep.subr.mxu0 0.0
      %4042 = vmatpush1.msra.mxu0 0.0
      %4043 = vmatprep.subr.mxu0 0.0
      %4044 = vmatpush1.msra.mxu0 0.0
      %4045 = vmatprep.subr.mxu0 0.0
      %4046 = vmatpush1.msra.mxu0 0.0
      %4047 = vmatprep.subr.mxu0 0.0
      %4048 = vmatpush1.msra.mxu0 0.0
      %4049 = vmatprep.subr.mxu0 0.0
      %4050 = vmatpush1.msra.mxu0 0.0
      %4051 = vmatprep.subr.mxu0 0.0
      %4052 = vmatpush1.msra.mxu0 0.0
      %4053 = vmatprep.subr.mxu0 0.0
      %4054 = vmatpush1.msra.mxu0 0.0
      %4055 = vmatprep.subr.mxu0 0.0
      %4056 = vmatpush1.msra.mxu0 0.0
      %4057 = vmatprep.subr.mxu0 0.0
      %4058 = vmatpush1.msra.mxu0 0.0
      %4059 = vmatprep.subr.mxu0 0.0
      %4060 = vmatpush1.msra.mxu0 0.0
      %4061 = vmatprep.subr.mxu0 0.0
      %4062 = vmatpush1.msra.mxu0 0.0
      %4063 = vmatprep.subr.mxu0 0.0
      %4064 = vmatpush1.msra.mxu0 0.0
      %4065 = vmatprep.mubr.f32.mxu0 0.0
      %4066 = vmatmul.mubr.f32.gmra.mrb[0].mxu0 %v3999
      %v4067 = vpop.f32.mrb[0].mxu0
      %v4068 = vadd.f32 0.0, %v4067
      %v4069 = vpop.f32.mrb[0].mxu0
      %4070 = vdwg.mxu0
      %v4071 = vld [vmem:[%s20] sm:$0x3]
      %4073 = vset.pattern.permute.xlu0 0
      %4074 = vperm.xlu0 %4073, %v4071
      %v4075 = vpop.permute.xlu0 %4074
      %v4077 = vmul.f32 %v4068, %v4075
      %v4078 = vld [vmem:[%s21] sm:$0x3]
      %4080 = vset.pattern.permute.xlu0 0
      %4081 = vperm.xlu0 %4080, %v4078
      %v4082 = vpop.permute.xlu0 %4081
      %v4084 = vadd.f32 %v4077, %v4082
      %vm4085 = vcmask 123904
      %4086 = vst.msk [vmem:[%s732] sm:$0x3] %vm4085, %v4084
      %p4087 = scmp.lt.s32.totalorder %s35, 1
      %s4088 = scalar_select %p4087, %s35, 1
      %s4089 = smul.addr %s4088, 2
      %s4090 = scalar_lea.vmem %s24, %s4089
      // Predicated region
      $region117: #{_lambda_.1} parent=115 // pred_check
        %p4091 = pneg %p562
      $region118: #{_lambda_.1} parent=115 // pred_check_branch
        %4093 = sbr.rel (%p4091) target = $region120
      $region119: #{_lambda_.1} parent=115 // pred_region
        _
      $region120: #{_lambda_.1} parent=115 // pred_fallthru
        _
    $region116: #{_lambda_.1} parent=5 // pred_fallthru
      _
    %p4094 = scmp.le.s32.totalorder 2, %s30
    // Predicated region
    $region121: #{_lambda_.1} parent=5 // pred_check
      %p4095 = pneg %p4094
    $region122: #{_lambda_.1} parent=5 // pred_check_branch
      %4097 = sbr.rel (%p4095) target = $region124
    $region123: #{_lambda_.1} parent=5 // pred_region
      %s4098 = ssub.s32 %s30, 2
      // Predicated region
      $region125: #{_lambda_.1} parent=123 // pred_check
        %p4099 = pneg %p568
      $region126: #{_lambda_.1} parent=123 // pred_check_branch
        %4101 = sbr.rel (%p4099) target = $region128
      $region127: #{_lambda_.1} parent=123 // pred_region
        %p4102 = scmp.lt.s32.totalorder %s36, 1
        %s4103 = scalar_select %p4102, %s36, 1
        %s4104 = smul.addr %s4103, 2
        %s4105 = scalar_lea.vmem %s24, %s4104
      $region128: #{_lambda_.1} parent=123 // pred_fallthru
        _
    $region124: #{_lambda_.1} parent=5 // pred_fallthru
      _
  $region6: #{_lambda_.1} parent=0 // loop_footer
    %s34 = sadd.s32 1, %s30
  $region7: #{_lambda_.1} parent=0 // loop_footer_branch
    %29 = sbr.rel target = $region3
  $region8: #{_lambda_.1} parent=0 // loop_exit
    _

</llo_original>
